<compile_context>
chip_gen: v7x
topology: tpu7x:2x2x1
jax: 0.10.0
libtpu: 0.0.40
codegen_flags: <defaults>
</compile_context>

<pallas_src>
import jax
import jax.numpy as jnp
from jax.experimental import pallas as pl
from jax.experimental.pallas import tpu as pltpu

H_IN, W_IN = 4, 4
C_IN, C1, C2 = 384, 192, 64
NEG_SLOPE = 0.01  # PyTorch LeakyReLU default


def _lrelu(v):
    return jnp.where(v >= 0, v, NEG_SLOPE * v)


def _round_up(x, m):
    return (x + m - 1) // m * m


def _chip_defaults():
    """Pick (batch_tile, vmem_limit_bytes) from the local chip's VMEM size."""
    vmem_cap = 64 * 1024 * 1024            # conservative fallback: v7x, 64 MiB/TC
    try:
        cap = int(pltpu.get_tpu_info().vmem_capacity_bytes)
        if cap > 0:
            vmem_cap = cap
    except Exception:
        pass
    if vmem_cap >= 128 * 1024 * 1024:      # v5e / v6e (128 MiB physical VMEM)
        return 2048, 96 * 1024 * 1024
    return 1024, 52 * 1024 * 1024          # v7x (64 MiB per TensorCore)


def discriminator_kernel(x_ref, w1_ref, b1_ref, w2_ref, b2_ref, w3_ref, b3_ref,
                         o_ref):
    # x_ref : (16, TB, 384) bf16   (spatial index h*4+w on the leading axis)
    # w1_ref: (9, 384, 192) bf16   b1_ref: (1, 192) f32
    # w2_ref: (768, 64)     bf16   b2_ref: (1, 64)  f32
    # w3_ref: (1, 64) f32          b3_ref: (1, 1)   f32
    # o_ref : (TB, 1) f32
    tb = x_ref.shape[1]

    # Hoisted single loads of the small vectors (broadcast_in_dim is not CSE'd).
    b1 = b1_ref[...]
    b2 = b2_ref[...]
    w3 = w3_ref[...]
    b3 = b3_ref[...]

    # ---- conv1: 3x3, stride 1, VALID on 4x4 -> 2x2 ---------------------------
    # Weight-stationary over (kh, kw). For a fixed output row oh the two ow
    # positions read contiguous taps (oh+kh)*4+kw and (oh+kh)*4+kw+1 on the
    # leading axis, so they are merged into one (2*TB, 384) LHS: 18 MXU calls
    # instead of 36, with each (384,192) weight slice pushed once per oh pair.
    accs = [jnp.zeros((2 * tb, C1), jnp.float32) for _ in range(2)]  # oh = 0, 1
    for kh in range(3):
        for kw in range(3):
            w = w1_ref[kh * 3 + kw]                                # (384, 192)
            for oh in range(2):
                base = (oh + kh) * W_IN + kw
                # (2, TB, 384) -> (2*TB, 384): leading-dim merge, free view.
                xin = x_ref[pl.ds(base, 2)].reshape(2 * tb, C_IN)
                accs[oh] = accs[oh] + jnp.dot(
                    xin, w, preferred_element_type=jnp.float32)

    # bias + LeakyReLU in f32, cast back to bf16 for the next MXU pass.
    # accs[oh] rows [0:TB] = position (oh,0), rows [TB:2TB] = position (oh,1).
    h1 = [_lrelu(a + b1).astype(jnp.bfloat16) for a in accs]        # (2*TB, 192)

    # ---- conv2: 2x2, stride 1, VALID on 2x2 -> 1x1 as ONE K=768 matmul -------
    # Lane-concat the four conv1 output positions in (kh2*2+kw2) order to match
    # the prepacked (768, 64) w2.
    h1_cat = jnp.concatenate(
        [h1[0][:tb], h1[0][tb:], h1[1][:tb], h1[1][tb:]], axis=-1)  # (TB, 768)
    h2 = _lrelu(jnp.dot(h1_cat, w2_ref[...],
                        preferred_element_type=jnp.float32) + b2)   # (TB, 64)

    # ---- flatten (1x1 spatial) + Linear(64, 1) + LeakyReLU -------------------
    # A 1-column matmul would waste the MXU: VPU multiply + lane reduction.
    out = jnp.sum(h2 * w3, axis=-1, keepdims=True) + b3
    o_ref[...] = _lrelu(out).astype(o_ref.dtype)


def prepare_params(params):
    """One-time repack of PyTorch-layout params into kernel layout (hoisted
    out of the per-call path)."""
    w1, b1, w2, b2, w3, b3 = params
    # conv1: OIHW (192,384,3,3) -> (kh*3+kw, 384, 192) bf16
    w1_k = jnp.transpose(w1, (2, 3, 1, 0)).reshape(9, C_IN, C1).astype(jnp.bfloat16)
    # conv2: OIHW (64,192,2,2) -> (kh*2+kw, 192, 64) -> flat K axis (768, 64)
    w2_k = jnp.transpose(w2, (2, 3, 1, 0)).reshape(4 * C1, C2).astype(jnp.bfloat16)
    b1_k = b1.reshape(1, C1).astype(jnp.float32)
    b2_k = b2.reshape(1, C2).astype(jnp.float32)
    w3_k = w3.reshape(1, C2).astype(jnp.float32)   # row vector for the VPU dot
    b3_k = b3.reshape(1, 1).astype(jnp.float32)
    return w1_k, b1_k, w2_k, b2_k, w3_k, b3_k


def discriminator_forward(x_nchw, kparams, *, batch_tile=None):
    """x_nchw: (N, 384, 4, 4) float32 (PyTorch layout); kparams from prepare_params."""
    w1_k, b1_k, w2_k, b2_k, w3_k, b3_k = kparams
    n = x_nchw.shape[0]

    default_tile, vmem_limit = _chip_defaults()
    if batch_tile is None:
        batch_tile = default_tile

    tb = min(batch_tile, _round_up(n, 16))
    # v7x megacore: if the whole batch would fit one tile, split it so the
    # "parallel" grid axis spans both TensorCores (harmless on v5e/v6e).
    if tb > 16 and _round_up(n, tb) // tb < 2:
        tb = _round_up((tb + 1) // 2, 16)
    n_pad = _round_up(n, tb)

    # glue: cast first (halves the relayout traffic if unfused), then
    # NCHW -> (H*W, N, C) and pad the batch to a tile multiple. With
    # allow_input_fusion below XLA may fuse this chain into the pallas_call
    # operand so it is never materialized in HBM.
    x = x_nchw.astype(jnp.bfloat16)
    x = jnp.transpose(x, (2, 3, 0, 1)).reshape(H_IN * W_IN, n, C_IN)
    if n_pad != n:
        x = jnp.pad(x, ((0, 0), (0, n_pad - n), (0, 0)))

    const3 = lambda i: (0, 0, 0)
    const2 = lambda i: (0, 0)

    out = pl.pallas_call(
        discriminator_kernel,
        out_shape=jax.ShapeDtypeStruct((n_pad, 1), jnp.float32),
        grid_spec=pltpu.PrefetchScalarGridSpec(
            num_scalar_prefetch=0,
            grid=(n_pad // tb,),
            in_specs=[
                pl.BlockSpec((H_IN * W_IN, tb, C_IN), lambda i: (0, i, 0)),
                pl.BlockSpec((9, C_IN, C1), const3),   # weights: constant index
                pl.BlockSpec((1, C1), const2),         # -> stay VMEM-resident
                pl.BlockSpec((4 * C1, C2), const2),
                pl.BlockSpec((1, C2), const2),
                pl.BlockSpec((1, C2), const2),
                pl.BlockSpec((1, 1), const2),
            ],
            out_specs=pl.BlockSpec((tb, 1), lambda i: (i, 0)),
        ),
        compiler_params=pltpu.CompilerParams(
            dimension_semantics=("parallel",),          # megacore on v7x
            # Let XLA fuse the transpose/cast/pad producer into operand 0.
            allow_input_fusion=[True, False, False, False, False, False, False],
            vmem_limit_bytes=vmem_limit,
        ),
    )(x, w1_k, b1_k, w2_k, b2_k, w3_k, b3_k)
    return out[:n]


def reference_forward(x_nchw, params):
    """Pure-JAX f32 reference matching the PyTorch forward exactly."""
    w1, b1, w2, b2, w3, b3 = params

    def conv(x, w, b):
        y = jax.lax.conv_general_dilated(
            x, w, window_strides=(1, 1), padding="VALID",
            dimension_numbers=("NCHW", "OIHW", "NCHW"))
        return y + b[None, :, None, None]

    h = _lrelu(conv(x_nchw, w1, b1))
    h = _lrelu(conv(h, w2, b2))
    h = h.reshape(h.shape[0], -1)
    return _lrelu(h @ w3.T + b3)


if __name__ == "__main__":
    key = jax.random.PRNGKey(0)
    ks = jax.random.split(key, 7)
    N = 2

    x = jax.random.normal(ks[0], (N, C_IN, H_IN, W_IN), jnp.float32)
    w1 = jax.random.normal(ks[1], (C1, C_IN, 3, 3), jnp.float32) * 0.02
    b1 = jax.random.normal(ks[2], (C1,), jnp.float32) * 0.02
    w2 = jax.random.normal(ks[3], (C2, C1, 2, 2), jnp.float32) * 0.02
    b2 = jax.random.normal(ks[4], (C2,), jnp.float32) * 0.02
    w3 = jax.random.normal(ks[5], (1, C2), jnp.float32) * 0.02
    b3 = jax.random.normal(ks[6], (1,), jnp.float32) * 0.02
    params = (w1, b1, w2, b2, w3, b3)

    kparams = prepare_params(params)          # one-time weight repack
    fwd = jax.jit(discriminator_forward)

    out = jax.block_until_ready(fwd(x, kparams))
    ref = jax.block_until_ready(reference_forward(x, params))

    assert out.shape == (N, 1), out.shape
    # bf16 MXU inputs with f32 accumulation -> looser tolerance than pure f32.
    assert jnp.allclose(out, ref, atol=2e-2, rtol=2e-2), (out, ref)
    print("KERNEL_OK")
</pallas_src>

<mosaic_0001>
module attributes {stable_mosaic.version = 11 : i64} {
  func.func @discriminator_kernel(%arg0: i32, %arg1: memref<16x16x384xbf16, #tpu.memory_space<vmem>>, %arg2: memref<9x384x192xbf16, #tpu.memory_space<vmem>>, %arg3: memref<1x192xf32, #tpu.memory_space<vmem>>, %arg4: memref<768x64xbf16, #tpu.memory_space<vmem>>, %arg5: memref<1x64xf32, #tpu.memory_space<vmem>>, %arg6: memref<1x64xf32, #tpu.memory_space<vmem>>, %arg7: memref<1x1xf32, #tpu.memory_space<vmem>>, %arg8: memref<16x1xf32, #tpu.memory_space<vmem>>) attributes {dimension_semantics = [#tpu.dimension_semantics<parallel>], iteration_bounds = array<i64: 1>, scalar_prefetch = 0 : i64, scratch_operands = 0 : i64, tpu.core_type = #tpu.core_type<tc>, window_params = [{transform_indices = @transform_0, window_bounds = array<i64: 16, 16, 384>}, {pipeline_mode = #tpu.pipeline_mode<synchronous>, transform_indices = @transform_1, window_bounds = array<i64: 9, 384, 192>}, {pipeline_mode = #tpu.pipeline_mode<synchronous>, transform_indices = @transform_2, window_bounds = array<i64: 1, 192>}, {pipeline_mode = #tpu.pipeline_mode<synchronous>, transform_indices = @transform_3, window_bounds = array<i64: 768, 64>}, {pipeline_mode = #tpu.pipeline_mode<synchronous>, transform_indices = @transform_4, window_bounds = array<i64: 1, 64>}, {pipeline_mode = #tpu.pipeline_mode<synchronous>, transform_indices = @transform_5, window_bounds = array<i64: 1, 64>}, {pipeline_mode = #tpu.pipeline_mode<synchronous>, transform_indices = @transform_6, window_bounds = array<i64: 1, 1>}, {transform_indices = @transform_7, window_bounds = array<i64: 16, 1>}]} {
    %c0 = arith.constant 0 : index
    %c0_0 = arith.constant 0 : index
    %0 = vector.load %arg3[%c0, %c0_0] : memref<1x192xf32, #tpu.memory_space<vmem>>, vector<1x192xf32>
    %c0_1 = arith.constant 0 : index
    %c0_2 = arith.constant 0 : index
    %1 = vector.load %arg5[%c0_1, %c0_2] : memref<1x64xf32, #tpu.memory_space<vmem>>, vector<1x64xf32>
    %c0_3 = arith.constant 0 : index
    %c0_4 = arith.constant 0 : index
    %2 = vector.load %arg6[%c0_3, %c0_4] : memref<1x64xf32, #tpu.memory_space<vmem>>, vector<1x64xf32>
    %c0_5 = arith.constant 0 : index
    %c0_6 = arith.constant 0 : index
    %3 = vector.load %arg7[%c0_5, %c0_6] : memref<1x1xf32, #tpu.memory_space<vmem>>, vector<1x1xf32>
    %cst = arith.constant 0.000000e+00 : f32
    %4 = vector.broadcast %cst : f32 to vector<32x192xf32>
    %cst_7 = arith.constant 0.000000e+00 : f32
    %5 = vector.broadcast %cst_7 : f32 to vector<32x192xf32>
    %c0_8 = arith.constant 0 : index
    %c0_9 = arith.constant 0 : index
    %c0_10 = arith.constant 0 : index
    %6 = vector.load %arg2[%c0_8, %c0_9, %c0_10] : memref<9x384x192xbf16, #tpu.memory_space<vmem>>, vector<1x384x192xbf16>
    %7 = vector.shape_cast %6 : vector<1x384x192xbf16> to vector<384x192xbf16>
    %c0_11 = arith.constant 0 : index
    %c0_12 = arith.constant 0 : index
    %c0_13 = arith.constant 0 : index
    %8 = vector.load %arg1[%c0_11, %c0_12, %c0_13] : memref<16x16x384xbf16, #tpu.memory_space<vmem>>, vector<2x16x384xbf16>
    %9 = vector.shape_cast %8 : vector<2x16x384xbf16> to vector<32x384xbf16>
    %cst_14 = arith.constant dense<0.000000e+00> : vector<32x192xf32>
    %10 = tpu.matmul %9, %7, %cst_14 {dimension_numbers = #tpu.dot_dimension_numbers<[1], [0], [0], [1], [0, 0, 1, 1], [], []>} : vector<32x384xbf16>, vector<384x192xbf16>, vector<32x192xf32> -> vector<32x192xf32>
    %11 = arith.addf %4, %10 : vector<32x192xf32>
    %c4 = arith.constant 4 : index
    %c0_15 = arith.constant 0 : index
    %c0_16 = arith.constant 0 : index
    %12 = vector.load %arg1[%c4, %c0_15, %c0_16] : memref<16x16x384xbf16, #tpu.memory_space<vmem>>, vector<2x16x384xbf16>
    %13 = vector.shape_cast %12 : vector<2x16x384xbf16> to vector<32x384xbf16>
    %cst_17 = arith.constant dense<0.000000e+00> : vector<32x192xf32>
    %14 = tpu.matmul %13, %7, %cst_17 {dimension_numbers = #tpu.dot_dimension_numbers<[1], [0], [0], [1], [0, 0, 1, 1], [], []>} : vector<32x384xbf16>, vector<384x192xbf16>, vector<32x192xf32> -> vector<32x192xf32>
    %15 = arith.addf %5, %14 : vector<32x192xf32>
    %c1 = arith.constant 1 : index
    %c0_18 = arith.constant 0 : index
    %c0_19 = arith.constant 0 : index
    %16 = vector.load %arg2[%c1, %c0_18, %c0_19] : memref<9x384x192xbf16, #tpu.memory_space<vmem>>, vector<1x384x192xbf16>
    %17 = vector.shape_cast %16 : vector<1x384x192xbf16> to vector<384x192xbf16>
    %c1_20 = arith.constant 1 : index
    %c0_21 = arith.constant 0 : index
    %c0_22 = arith.constant 0 : index
    %18 = vector.load %arg1[%c1_20, %c0_21, %c0_22] : memref<16x16x384xbf16, #tpu.memory_space<vmem>>, vector<2x16x384xbf16>
    %19 = vector.shape_cast %18 : vector<2x16x384xbf16> to vector<32x384xbf16>
    %cst_23 = arith.constant dense<0.000000e+00> : vector<32x192xf32>
    %20 = tpu.matmul %19, %17, %cst_23 {dimension_numbers = #tpu.dot_dimension_numbers<[1], [0], [0], [1], [0, 0, 1, 1], [], []>} : vector<32x384xbf16>, vector<384x192xbf16>, vector<32x192xf32> -> vector<32x192xf32>
    %21 = arith.addf %11, %20 : vector<32x192xf32>
    %c5 = arith.constant 5 : index
    %c0_24 = arith.constant 0 : index
    %c0_25 = arith.constant 0 : index
    %22 = vector.load %arg1[%c5, %c0_24, %c0_25] : memref<16x16x384xbf16, #tpu.memory_space<vmem>>, vector<2x16x384xbf16>
    %23 = vector.shape_cast %22 : vector<2x16x384xbf16> to vector<32x384xbf16>
    %cst_26 = arith.constant dense<0.000000e+00> : vector<32x192xf32>
    %24 = tpu.matmul %23, %17, %cst_26 {dimension_numbers = #tpu.dot_dimension_numbers<[1], [0], [0], [1], [0, 0, 1, 1], [], []>} : vector<32x384xbf16>, vector<384x192xbf16>, vector<32x192xf32> -> vector<32x192xf32>
    %25 = arith.addf %15, %24 : vector<32x192xf32>
    %c2 = arith.constant 2 : index
    %c0_27 = arith.constant 0 : index
    %c0_28 = arith.constant 0 : index
    %26 = vector.load %arg2[%c2, %c0_27, %c0_28] : memref<9x384x192xbf16, #tpu.memory_space<vmem>>, vector<1x384x192xbf16>
    %27 = vector.shape_cast %26 : vector<1x384x192xbf16> to vector<384x192xbf16>
    %c2_29 = arith.constant 2 : index
    %c0_30 = arith.constant 0 : index
    %c0_31 = arith.constant 0 : index
    %28 = vector.load %arg1[%c2_29, %c0_30, %c0_31] : memref<16x16x384xbf16, #tpu.memory_space<vmem>>, vector<2x16x384xbf16>
    %29 = vector.shape_cast %28 : vector<2x16x384xbf16> to vector<32x384xbf16>
    %cst_32 = arith.constant dense<0.000000e+00> : vector<32x192xf32>
    %30 = tpu.matmul %29, %27, %cst_32 {dimension_numbers = #tpu.dot_dimension_numbers<[1], [0], [0], [1], [0, 0, 1, 1], [], []>} : vector<32x384xbf16>, vector<384x192xbf16>, vector<32x192xf32> -> vector<32x192xf32>
    %31 = arith.addf %21, %30 : vector<32x192xf32>
    %c6 = arith.constant 6 : index
    %c0_33 = arith.constant 0 : index
    %c0_34 = arith.constant 0 : index
    %32 = vector.load %arg1[%c6, %c0_33, %c0_34] : memref<16x16x384xbf16, #tpu.memory_space<vmem>>, vector<2x16x384xbf16>
    %33 = vector.shape_cast %32 : vector<2x16x384xbf16> to vector<32x384xbf16>
    %cst_35 = arith.constant dense<0.000000e+00> : vector<32x192xf32>
    %34 = tpu.matmul %33, %27, %cst_35 {dimension_numbers = #tpu.dot_dimension_numbers<[1], [0], [0], [1], [0, 0, 1, 1], [], []>} : vector<32x384xbf16>, vector<384x192xbf16>, vector<32x192xf32> -> vector<32x192xf32>
    %35 = arith.addf %25, %34 : vector<32x192xf32>
    %c3 = arith.constant 3 : index
    %c0_36 = arith.constant 0 : index
    %c0_37 = arith.constant 0 : index
    %36 = vector.load %arg2[%c3, %c0_36, %c0_37] : memref<9x384x192xbf16, #tpu.memory_space<vmem>>, vector<1x384x192xbf16>
    %37 = vector.shape_cast %36 : vector<1x384x192xbf16> to vector<384x192xbf16>
    %c4_38 = arith.constant 4 : index
    %c0_39 = arith.constant 0 : index
    %c0_40 = arith.constant 0 : index
    %38 = vector.load %arg1[%c4_38, %c0_39, %c0_40] : memref<16x16x384xbf16, #tpu.memory_space<vmem>>, vector<2x16x384xbf16>
    %39 = vector.shape_cast %38 : vector<2x16x384xbf16> to vector<32x384xbf16>
    %cst_41 = arith.constant dense<0.000000e+00> : vector<32x192xf32>
    %40 = tpu.matmul %39, %37, %cst_41 {dimension_numbers = #tpu.dot_dimension_numbers<[1], [0], [0], [1], [0, 0, 1, 1], [], []>} : vector<32x384xbf16>, vector<384x192xbf16>, vector<32x192xf32> -> vector<32x192xf32>
    %41 = arith.addf %31, %40 : vector<32x192xf32>
    %c8 = arith.constant 8 : index
    %c0_42 = arith.constant 0 : index
    %c0_43 = arith.constant 0 : index
    %42 = vector.load %arg1[%c8, %c0_42, %c0_43] : memref<16x16x384xbf16, #tpu.memory_space<vmem>>, vector<2x16x384xbf16>
    %43 = vector.shape_cast %42 : vector<2x16x384xbf16> to vector<32x384xbf16>
    %cst_44 = arith.constant dense<0.000000e+00> : vector<32x192xf32>
    %44 = tpu.matmul %43, %37, %cst_44 {dimension_numbers = #tpu.dot_dimension_numbers<[1], [0], [0], [1], [0, 0, 1, 1], [], []>} : vector<32x384xbf16>, vector<384x192xbf16>, vector<32x192xf32> -> vector<32x192xf32>
    %45 = arith.addf %35, %44 : vector<32x192xf32>
    %c4_45 = arith.constant 4 : index
    %c0_46 = arith.constant 0 : index
    %c0_47 = arith.constant 0 : index
    %46 = vector.load %arg2[%c4_45, %c0_46, %c0_47] : memref<9x384x192xbf16, #tpu.memory_space<vmem>>, vector<1x384x192xbf16>
    %47 = vector.shape_cast %46 : vector<1x384x192xbf16> to vector<384x192xbf16>
    %c5_48 = arith.constant 5 : index
    %c0_49 = arith.constant 0 : index
    %c0_50 = arith.constant 0 : index
    %48 = vector.load %arg1[%c5_48, %c0_49, %c0_50] : memref<16x16x384xbf16, #tpu.memory_space<vmem>>, vector<2x16x384xbf16>
    %49 = vector.shape_cast %48 : vector<2x16x384xbf16> to vector<32x384xbf16>
    %cst_51 = arith.constant dense<0.000000e+00> : vector<32x192xf32>
    %50 = tpu.matmul %49, %47, %cst_51 {dimension_numbers = #tpu.dot_dimension_numbers<[1], [0], [0], [1], [0, 0, 1, 1], [], []>} : vector<32x384xbf16>, vector<384x192xbf16>, vector<32x192xf32> -> vector<32x192xf32>
    %51 = arith.addf %41, %50 : vector<32x192xf32>
    %c9 = arith.constant 9 : index
    %c0_52 = arith.constant 0 : index
    %c0_53 = arith.constant 0 : index
    %52 = vector.load %arg1[%c9, %c0_52, %c0_53] : memref<16x16x384xbf16, #tpu.memory_space<vmem>>, vector<2x16x384xbf16>
    %53 = vector.shape_cast %52 : vector<2x16x384xbf16> to vector<32x384xbf16>
    %cst_54 = arith.constant dense<0.000000e+00> : vector<32x192xf32>
    %54 = tpu.matmul %53, %47, %cst_54 {dimension_numbers = #tpu.dot_dimension_numbers<[1], [0], [0], [1], [0, 0, 1, 1], [], []>} : vector<32x384xbf16>, vector<384x192xbf16>, vector<32x192xf32> -> vector<32x192xf32>
    %55 = arith.addf %45, %54 : vector<32x192xf32>
    %c5_55 = arith.constant 5 : index
    %c0_56 = arith.constant 0 : index
    %c0_57 = arith.constant 0 : index
    %56 = vector.load %arg2[%c5_55, %c0_56, %c0_57] : memref<9x384x192xbf16, #tpu.memory_space<vmem>>, vector<1x384x192xbf16>
    %57 = vector.shape_cast %56 : vector<1x384x192xbf16> to vector<384x192xbf16>
    %c6_58 = arith.constant 6 : index
    %c0_59 = arith.constant 0 : index
    %c0_60 = arith.constant 0 : index
    %58 = vector.load %arg1[%c6_58, %c0_59, %c0_60] : memref<16x16x384xbf16, #tpu.memory_space<vmem>>, vector<2x16x384xbf16>
    %59 = vector.shape_cast %58 : vector<2x16x384xbf16> to vector<32x384xbf16>
    %cst_61 = arith.constant dense<0.000000e+00> : vector<32x192xf32>
    %60 = tpu.matmul %59, %57, %cst_61 {dimension_numbers = #tpu.dot_dimension_numbers<[1], [0], [0], [1], [0, 0, 1, 1], [], []>} : vector<32x384xbf16>, vector<384x192xbf16>, vector<32x192xf32> -> vector<32x192xf32>
    %61 = arith.addf %51, %60 : vector<32x192xf32>
    %c10 = arith.constant 10 : index
    %c0_62 = arith.constant 0 : index
    %c0_63 = arith.constant 0 : index
    %62 = vector.load %arg1[%c10, %c0_62, %c0_63] : memref<16x16x384xbf16, #tpu.memory_space<vmem>>, vector<2x16x384xbf16>
    %63 = vector.shape_cast %62 : vector<2x16x384xbf16> to vector<32x384xbf16>
    %cst_64 = arith.constant dense<0.000000e+00> : vector<32x192xf32>
    %64 = tpu.matmul %63, %57, %cst_64 {dimension_numbers = #tpu.dot_dimension_numbers<[1], [0], [0], [1], [0, 0, 1, 1], [], []>} : vector<32x384xbf16>, vector<384x192xbf16>, vector<32x192xf32> -> vector<32x192xf32>
    %65 = arith.addf %55, %64 : vector<32x192xf32>
    %c6_65 = arith.constant 6 : index
    %c0_66 = arith.constant 0 : index
    %c0_67 = arith.constant 0 : index
    %66 = vector.load %arg2[%c6_65, %c0_66, %c0_67] : memref<9x384x192xbf16, #tpu.memory_space<vmem>>, vector<1x384x192xbf16>
    %67 = vector.shape_cast %66 : vector<1x384x192xbf16> to vector<384x192xbf16>
    %c8_68 = arith.constant 8 : index
    %c0_69 = arith.constant 0 : index
    %c0_70 = arith.constant 0 : index
    %68 = vector.load %arg1[%c8_68, %c0_69, %c0_70] : memref<16x16x384xbf16, #tpu.memory_space<vmem>>, vector<2x16x384xbf16>
    %69 = vector.shape_cast %68 : vector<2x16x384xbf16> to vector<32x384xbf16>
    %cst_71 = arith.constant dense<0.000000e+00> : vector<32x192xf32>
    %70 = tpu.matmul %69, %67, %cst_71 {dimension_numbers = #tpu.dot_dimension_numbers<[1], [0], [0], [1], [0, 0, 1, 1], [], []>} : vector<32x384xbf16>, vector<384x192xbf16>, vector<32x192xf32> -> vector<32x192xf32>
    %71 = arith.addf %61, %70 : vector<32x192xf32>
    %c12 = arith.constant 12 : index
    %c0_72 = arith.constant 0 : index
    %c0_73 = arith.constant 0 : index
    %72 = vector.load %arg1[%c12, %c0_72, %c0_73] : memref<16x16x384xbf16, #tpu.memory_space<vmem>>, vector<2x16x384xbf16>
    %73 = vector.shape_cast %72 : vector<2x16x384xbf16> to vector<32x384xbf16>
    %cst_74 = arith.constant dense<0.000000e+00> : vector<32x192xf32>
    %74 = tpu.matmul %73, %67, %cst_74 {dimension_numbers = #tpu.dot_dimension_numbers<[1], [0], [0], [1], [0, 0, 1, 1], [], []>} : vector<32x384xbf16>, vector<384x192xbf16>, vector<32x192xf32> -> vector<32x192xf32>
    %75 = arith.addf %65, %74 : vector<32x192xf32>
    %c7 = arith.constant 7 : index
    %c0_75 = arith.constant 0 : index
    %c0_76 = arith.constant 0 : index
    %76 = vector.load %arg2[%c7, %c0_75, %c0_76] : memref<9x384x192xbf16, #tpu.memory_space<vmem>>, vector<1x384x192xbf16>
    %77 = vector.shape_cast %76 : vector<1x384x192xbf16> to vector<384x192xbf16>
    %c9_77 = arith.constant 9 : index
    %c0_78 = arith.constant 0 : index
    %c0_79 = arith.constant 0 : index
    %78 = vector.load %arg1[%c9_77, %c0_78, %c0_79] : memref<16x16x384xbf16, #tpu.memory_space<vmem>>, vector<2x16x384xbf16>
    %79 = vector.shape_cast %78 : vector<2x16x384xbf16> to vector<32x384xbf16>
    %cst_80 = arith.constant dense<0.000000e+00> : vector<32x192xf32>
    %80 = tpu.matmul %79, %77, %cst_80 {dimension_numbers = #tpu.dot_dimension_numbers<[1], [0], [0], [1], [0, 0, 1, 1], [], []>} : vector<32x384xbf16>, vector<384x192xbf16>, vector<32x192xf32> -> vector<32x192xf32>
    %81 = arith.addf %71, %80 : vector<32x192xf32>
    %c13 = arith.constant 13 : index
    %c0_81 = arith.constant 0 : index
    %c0_82 = arith.constant 0 : index
    %82 = vector.load %arg1[%c13, %c0_81, %c0_82] : memref<16x16x384xbf16, #tpu.memory_space<vmem>>, vector<2x16x384xbf16>
    %83 = vector.shape_cast %82 : vector<2x16x384xbf16> to vector<32x384xbf16>
    %cst_83 = arith.constant dense<0.000000e+00> : vector<32x192xf32>
    %84 = tpu.matmul %83, %77, %cst_83 {dimension_numbers = #tpu.dot_dimension_numbers<[1], [0], [0], [1], [0, 0, 1, 1], [], []>} : vector<32x384xbf16>, vector<384x192xbf16>, vector<32x192xf32> -> vector<32x192xf32>
    %85 = arith.addf %75, %84 : vector<32x192xf32>
    %c8_84 = arith.constant 8 : index
    %c0_85 = arith.constant 0 : index
    %c0_86 = arith.constant 0 : index
    %86 = vector.load %arg2[%c8_84, %c0_85, %c0_86] : memref<9x384x192xbf16, #tpu.memory_space<vmem>>, vector<1x384x192xbf16>
    %87 = vector.shape_cast %86 : vector<1x384x192xbf16> to vector<384x192xbf16>
    %c10_87 = arith.constant 10 : index
    %c0_88 = arith.constant 0 : index
    %c0_89 = arith.constant 0 : index
    %88 = vector.load %arg1[%c10_87, %c0_88, %c0_89] : memref<16x16x384xbf16, #tpu.memory_space<vmem>>, vector<2x16x384xbf16>
    %89 = vector.shape_cast %88 : vector<2x16x384xbf16> to vector<32x384xbf16>
    %cst_90 = arith.constant dense<0.000000e+00> : vector<32x192xf32>
    %90 = tpu.matmul %89, %87, %cst_90 {dimension_numbers = #tpu.dot_dimension_numbers<[1], [0], [0], [1], [0, 0, 1, 1], [], []>} : vector<32x384xbf16>, vector<384x192xbf16>, vector<32x192xf32> -> vector<32x192xf32>
    %91 = arith.addf %81, %90 : vector<32x192xf32>
    %c14 = arith.constant 14 : index
    %c0_91 = arith.constant 0 : index
    %c0_92 = arith.constant 0 : index
    %92 = vector.load %arg1[%c14, %c0_91, %c0_92] : memref<16x16x384xbf16, #tpu.memory_space<vmem>>, vector<2x16x384xbf16>
    %93 = vector.shape_cast %92 : vector<2x16x384xbf16> to vector<32x384xbf16>
    %cst_93 = arith.constant dense<0.000000e+00> : vector<32x192xf32>
    %94 = tpu.matmul %93, %87, %cst_93 {dimension_numbers = #tpu.dot_dimension_numbers<[1], [0], [0], [1], [0, 0, 1, 1], [], []>} : vector<32x384xbf16>, vector<384x192xbf16>, vector<32x192xf32> -> vector<32x192xf32>
    %95 = arith.addf %85, %94 : vector<32x192xf32>
    %96 = vector.broadcast %0 : vector<1x192xf32> to vector<32x192xf32>
    %97 = arith.addf %91, %96 : vector<32x192xf32>
    %cst_94 = arith.constant 0.000000e+00 : f32
    %98 = vector.broadcast %cst_94 : f32 to vector<32x192xf32>
    %99 = arith.cmpf oge, %97, %98 : vector<32x192xf32>
    %cst_95 = arith.constant 0.00999999977 : f32
    %100 = vector.broadcast %cst_95 : f32 to vector<32x192xf32>
    %101 = arith.mulf %100, %97 : vector<32x192xf32>
    %102 = arith.select %99, %97, %101 : vector<32x192xi1>, vector<32x192xf32>
    %103 = arith.truncf %102 : vector<32x192xf32> to vector<32x192xbf16>
    %104 = vector.broadcast %0 : vector<1x192xf32> to vector<32x192xf32>
    %105 = arith.addf %95, %104 : vector<32x192xf32>
    %cst_96 = arith.constant 0.000000e+00 : f32
    %106 = vector.broadcast %cst_96 : f32 to vector<32x192xf32>
    %107 = arith.cmpf oge, %105, %106 : vector<32x192xf32>
    %cst_97 = arith.constant 0.00999999977 : f32
    %108 = vector.broadcast %cst_97 : f32 to vector<32x192xf32>
    %109 = arith.mulf %108, %105 : vector<32x192xf32>
    %110 = arith.select %107, %105, %109 : vector<32x192xi1>, vector<32x192xf32>
    %111 = arith.truncf %110 : vector<32x192xf32> to vector<32x192xbf16>
    %112 = vector.extract_strided_slice %103 {offsets = [0, 0], sizes = [16, 192], strides = [1, 1]} : vector<32x192xbf16> to vector<16x192xbf16>
    %113 = vector.extract_strided_slice %103 {offsets = [16, 0], sizes = [16, 192], strides = [1, 1]} : vector<32x192xbf16> to vector<16x192xbf16>
    %114 = vector.extract_strided_slice %111 {offsets = [0, 0], sizes = [16, 192], strides = [1, 1]} : vector<32x192xbf16> to vector<16x192xbf16>
    %115 = vector.extract_strided_slice %111 {offsets = [16, 0], sizes = [16, 192], strides = [1, 1]} : vector<32x192xbf16> to vector<16x192xbf16>
    %116 = tpu.concatenate %112, %113, %114, %115 in 1 : vector<16x192xbf16>, vector<16x192xbf16>, vector<16x192xbf16>, vector<16x192xbf16> -> vector<16x768xbf16>
    %c0_98 = arith.constant 0 : index
    %c0_99 = arith.constant 0 : index
    %117 = vector.load %arg4[%c0_98, %c0_99] : memref<768x64xbf16, #tpu.memory_space<vmem>>, vector<768x64xbf16>
    %cst_100 = arith.constant dense<0.000000e+00> : vector<16x64xf32>
    %118 = tpu.matmul %116, %117, %cst_100 {dimension_numbers = #tpu.dot_dimension_numbers<[1], [0], [0], [1], [0, 0, 1, 1], [], []>} : vector<16x768xbf16>, vector<768x64xbf16>, vector<16x64xf32> -> vector<16x64xf32>
    %119 = vector.broadcast %1 : vector<1x64xf32> to vector<16x64xf32>
    %120 = arith.addf %118, %119 : vector<16x64xf32>
    %cst_101 = arith.constant 0.000000e+00 : f32
    %121 = vector.broadcast %cst_101 : f32 to vector<16x64xf32>
    %122 = arith.cmpf oge, %120, %121 : vector<16x64xf32>
    %cst_102 = arith.constant 0.00999999977 : f32
    %123 = vector.broadcast %cst_102 : f32 to vector<16x64xf32>
    %124 = arith.mulf %123, %120 : vector<16x64xf32>
    %125 = arith.select %122, %120, %124 : vector<16x64xi1>, vector<16x64xf32>
    %126 = vector.broadcast %2 : vector<1x64xf32> to vector<16x64xf32>
    %127 = arith.mulf %125, %126 : vector<16x64xf32>
    %cst_103 = arith.constant dense<0.000000e+00> : vector<16xf32>
    %128 = vector.multi_reduction <add>, %127, %cst_103 [1] : vector<16x64xf32> to vector<16xf32>
    %129 = vector.shape_cast %128 : vector<16xf32> to vector<16x1xf32>
    %130 = vector.broadcast %3 : vector<1x1xf32> to vector<16x1xf32>
    %131 = arith.addf %129, %130 : vector<16x1xf32>
    %cst_104 = arith.constant 0.000000e+00 : f32
    %132 = vector.broadcast %cst_104 : f32 to vector<16x1xf32>
    %133 = arith.cmpf oge, %131, %132 : vector<16x1xf32>
    %cst_105 = arith.constant 0.00999999977 : f32
    %134 = vector.broadcast %cst_105 : f32 to vector<16x1xf32>
    %135 = arith.mulf %134, %131 : vector<16x1xf32>
    %136 = arith.select %133, %131, %135 : vector<16x1xi1>, vector<16x1xf32>
    %c0_106 = arith.constant 0 : index
    %c0_107 = arith.constant 0 : index
    %137 = vector.load %arg8[%c0_106, %c0_107] : memref<16x1xf32, #tpu.memory_space<vmem>>, vector<16x1xf32>
    tpu.vector_store %arg8[%c0_106, %c0_107], %136 {strides = array<i32>} : memref<16x1xf32, #tpu.memory_space<vmem>>, vector<16x1xf32>,
    return
  }
  func.func @transform_0(%arg0: i32) -> (i32, i32, i32) {
    %c0_i32 = arith.constant 0 : i32
    %c0_i32_0 = arith.constant 0 : i32
    %c0_i32_1 = arith.constant 0 : i32
    return %c0_i32, %arg0, %c0_i32_0 : i32, i32, i32
  }
  func.func @transform_1(%arg0: i32) -> (i32, i32, i32) {
    %c0_i32 = arith.constant 0 : i32
    %c0_i32_0 = arith.constant 0 : i32
    %c0_i32_1 = arith.constant 0 : i32
    %c0_i32_2 = arith.constant 0 : i32
    return %c0_i32, %c0_i32_0, %c0_i32_1 : i32, i32, i32
  }
  func.func @transform_2(%arg0: i32) -> (i32, i32) {
    %c0_i32 = arith.constant 0 : i32
    %c0_i32_0 = arith.constant 0 : i32
    %c0_i32_1 = arith.constant 0 : i32
    return %c0_i32, %c0_i32_0 : i32, i32
  }
  func.func @transform_3(%arg0: i32) -> (i32, i32) {
    %c0_i32 = arith.constant 0 : i32
    %c0_i32_0 = arith.constant 0 : i32
    %c0_i32_1 = arith.constant 0 : i32
    return %c0_i32, %c0_i32_0 : i32, i32
  }
  func.func @transform_4(%arg0: i32) -> (i32, i32) {
    %c0_i32 = arith.constant 0 : i32
    %c0_i32_0 = arith.constant 0 : i32
    %c0_i32_1 = arith.constant 0 : i32
    return %c0_i32, %c0_i32_0 : i32, i32
  }
  func.func @transform_5(%arg0: i32) -> (i32, i32) {
    %c0_i32 = arith.constant 0 : i32
    %c0_i32_0 = arith.constant 0 : i32
    %c0_i32_1 = arith.constant 0 : i32
    return %c0_i32, %c0_i32_0 : i32, i32
  }
  func.func @transform_6(%arg0: i32) -> (i32, i32) {
    %c0_i32 = arith.constant 0 : i32
    %c0_i32_0 = arith.constant 0 : i32
    %c0_i32_1 = arith.constant 0 : i32
    return %c0_i32, %c0_i32_0 : i32, i32
  }
  func.func @transform_7(%arg0: i32) -> (i32, i32) {
    %c0_i32 = arith.constant 0 : i32
    %c0_i32_0 = arith.constant 0 : i32
    return %arg0, %c0_i32 : i32, i32
  }
}

</mosaic_0001>

<llo_original>
// kernel: discriminator_forward.2
$region0: #{discriminator_forward.2}
  #allocation0 [shape = 'u32[]', space=smem, size = 0x4, offset = 0x4, fixed_abs, tag = 'smem constant byte address 0x4 - core index']
  #allocation1 [shape = 'u32[144,128]{1,0:T(1,128)}', space=vmem, size = 0x12000, scoped, tag = 'internal scratch']
  #allocation2 [shape = 'u32[2048]{0}', space=vmem, size = 0x2000, scoped, tag = 'scoped memory for discriminator_forward.2']
  #allocation3 [shape = 'u32[2048]{0}', space=vmem, size = 0x2000, scoped, tag = 'scoped memory for discriminator_forward.2']
  #allocation4 [shape = 'u32[2048]{0}', space=vmem, size = 0x2000, scoped, tag = 'scoped memory for discriminator_forward.2']
  #allocation5 [shape = 'u32[2048]{0}', space=vmem, size = 0x2000, scoped, tag = 'scoped memory for discriminator_forward.2']
  #allocation6 [shape = 'u32[2048]{0}', space=vmem, size = 0x2000, scoped, tag = 'scoped memory for discriminator_forward.2']
  #allocation7 [shape = 'f32[1,1]{1,0:T(1,128)S(1)}', space=vmem, size = 0x200, scoped, tag = 'scoped memory for discriminator_forward.2']
  %s0 = inlined_call_operand.vmem [shape: bf16[9,384,192], index: 0, kind: input, shape index: {}]
  %s1 = inlined_call_operand.vmem [shape: f32[1,192], index: 1, kind: input, shape index: {}]
  %s2 = inlined_call_operand.vmem [shape: bf16[768,64], index: 2, kind: input, shape index: {}]
  %s3 = inlined_call_operand.vmem [shape: f32[1,64], index: 3, kind: input, shape index: {}]
  %s4 = inlined_call_operand.vmem [shape: f32[1,64], index: 4, kind: input, shape index: {}]
  %s5 = inlined_call_operand.<no memory space> [shape: f32[1,1], index: 5, kind: input, shape index: {}]
  %s6 = inlined_call_operand.vmem [shape: bf16[16,2,384], index: 6, kind: input, shape index: {}]
  %s7 = inlined_call_operand.<no memory space> [shape: bf16[], index: 7, kind: input, shape index: {}]
  %s8 = inlined_call_operand.vmem [shape: f32[16,1], index: 8, kind: output, shape index: {}]
  %s9 = sld [smem:[#allocation0]]
  $region38: #{discriminator_forward.2} parent=0
    _
  %s11 = ssub.s32 1, %s9
  %s12 = scalar_select 0, %s11, %s9
  %v13 = vstv %s7
  %v14 = vunpack.i.l.bf16 %v13
  %v16 = vunpack.i.h.bf16 %v13
  %v18 = vstv %s5
  %19 = vst [vmem:[#allocation7] sm:$0x1] %v18
  $region1: #{discriminator_forward.2} parent=0
    #allocation8 [shape = 'u8[196608]{0}', space=vmem, size = 0x30000, dematerialized = true, scoped, tag = 'FusionAdapter Buffer %fusion.1 = bf16[16,16,384]{2,1,0:T(8,128)(2,1)} fusion(%param_6.1, %param_7), kind=kLoop, calls=%fused_computation.1.clone, metadata={op_name="jit(discriminator_forward)/jit(_pad)/pad" stack_frame_id=9}']
    // Predicated region
    $region2: #{discriminator_forward.2} parent=1 // pred_check
      _
    $region3: #{discriminator_forward.2} parent=1 // pred_check_branch
      %21 = sbr.rel (0) target = $region5
    $region4: #{discriminator_forward.2} parent=1 // pred_region
      _
    $region5: #{discriminator_forward.2} parent=1 // pred_fallthru
      _
    // Predicated region
    $region6: #{discriminator_forward.2} parent=1 // pred_check
      _
    $region7: #{discriminator_forward.2} parent=1 // pred_check_branch
      %23 = sbr.rel (0) target = $region9
    $region8: #{discriminator_forward.2} parent=1 // pred_region
      _
    $region9: #{discriminator_forward.2} parent=1 // pred_fallthru
      _
    // Predicated region
    $region10: #{discriminator_forward.2} parent=1 // pred_check
      _
    $region11: #{discriminator_forward.2} parent=1 // pred_check_branch
      %25 = sbr.rel (0) target = $region13
    $region12: #{discriminator_forward.2} parent=1 // pred_region
      _
    $region13: #{discriminator_forward.2} parent=1 // pred_fallthru
      _
    // Predicated region
    $region14: #{discriminator_forward.2} parent=1 // pred_check
      _
    $region15: #{discriminator_forward.2} parent=1 // pred_check_branch
      %27 = sbr.rel (0) target = $region17
    $region16: #{discriminator_forward.2} parent=1 // pred_region
      _
    $region17: #{discriminator_forward.2} parent=1 // pred_fallthru
      _
    // Predicated region
    $region18: #{discriminator_forward.2} parent=1 // pred_check
      _
    $region19: #{discriminator_forward.2} parent=1 // pred_check_branch
      %29 = sbr.rel (0) target = $region21
    $region20: #{discriminator_forward.2} parent=1 // pred_region
      _
    $region21: #{discriminator_forward.2} parent=1 // pred_fallthru
      _
    // Predicated region
    $region22: #{discriminator_forward.2} parent=1 // pred_check
      _
    $region23: #{discriminator_forward.2} parent=1 // pred_check_branch
      %31 = sbr.rel (0) target = $region25
    $region24: #{discriminator_forward.2} parent=1 // pred_region
      _
    $region25: #{discriminator_forward.2} parent=1 // pred_fallthru
      _
    // Predicated region
    $region26: #{discriminator_forward.2} parent=1 // pred_check
      _
    $region27: #{discriminator_forward.2} parent=1 // pred_check_branch
      %33 = sbr.rel (0) target = $region29
    $region28: #{discriminator_forward.2} parent=1 // pred_region
      _
    $region29: #{discriminator_forward.2} parent=1 // pred_fallthru
      _
    %s35 = sor.u32 3, 1
    %s36 = sand.u32 %s35, 1
    %v37 = vld [vmem:[%s6] sm:%s36]
    %v38 = vunpack.c.l.bf16 %v37
    %v39 = vunpack.c.h.bf16 %v37
    %v40 = vlaneseq
    %v41 = vshrl.u32 %v40, 7
    %vm43 = vcmp.lt.s32.totalorder %v41, 2
    %v44 = vsel %vm43, %v38, %v14
    %v45 = vpack.c.bf16 0.0, %v44
    %47 = vst [vmem:[#allocation8] sm:$0xf] %v45
    %s48 = scalar_lea.vmem %s6, 1
    %s50 = sor.u32 3, 1
    %s51 = sand.u32 %s50, 1
    %v52 = vld [vmem:[%s48] sm:%s51]
    %v53 = vunpack.c.l.bf16 %v52
    %v54 = vunpack.c.h.bf16 %v52
    %v55 = vlaneseq
    %v56 = vshrl.u32 %v55, 7
    %vm58 = vcmp.lt.s32.totalorder %v56, 2
    %v59 = vsel %vm58, %v53, %v14
    %s60 = scalar_lea.vmem [#allocation8], 4
    %v61 = vpack.c.bf16 0.0, %v59
    %63 = vst [vmem:[%s60] sm:$0xf] %v61
    %s64 = scalar_lea.vmem %s6, 2
    %s66 = sor.u32 3, 1
    %s67 = sand.u32 %s66, 1
    %v68 = vld [vmem:[%s64] sm:%s67]
    %v69 = vunpack.c.l.bf16 %v68
    %v70 = vunpack.c.h.bf16 %v68
    %v71 = vlaneseq
    %v72 = vshrl.u32 %v71, 7
    %vm74 = vcmp.lt.s32.totalorder %v72, 2
    %v75 = vsel %vm74, %v69, %v14
    %s76 = scalar_lea.vmem [#allocation8], 8
    %v77 = vpack.c.bf16 0.0, %v75
    %79 = vst [vmem:[%s76] sm:$0xf] %v77
    %s80 = scalar_lea.vmem [#allocation8], 12
    %v81 = vpack.c.bf16 0.0, %v14
    %83 = vst [vmem:[%s80] sm:$0xf] %v81
    %s84 = scalar_lea.vmem [#allocation8], 16
    %v85 = vpack.c.bf16 0.0, %v14
    %87 = vst [vmem:[%s84] sm:$0xf] %v85
    %s88 = scalar_lea.vmem [#allocation8], 20
    %v89 = vpack.c.bf16 0.0, %v14
    %91 = vst [vmem:[%s88] sm:$0xf] %v89
    %s92 = scalar_lea.vmem %s6, 3
    %s94 = sor.u32 3, 1
    %s95 = sand.u32 %s94, 1
    %v96 = vld [vmem:[%s92] sm:%s95]
    %v97 = vunpack.c.l.bf16 %v96
    %v98 = vunpack.c.h.bf16 %v96
    %v99 = vlaneseq
    %v100 = vshrl.u32 %v99, 7
    %vm102 = vcmp.lt.s32.totalorder %v100, 2
    %v103 = vsel %vm102, %v97, %v14
    %s104 = scalar_lea.vmem [#allocation8], 24
    %v105 = vpack.c.bf16 0.0, %v103
    %107 = vst [vmem:[%s104] sm:$0xf] %v105
    %s108 = scalar_lea.vmem %s6, 4
    %s110 = sor.u32 3, 1
    %s111 = sand.u32 %s110, 1
    %v112 = vld [vmem:[%s108] sm:%s111]
    %v113 = vunpack.c.l.bf16 %v112
    %v114 = vunpack.c.h.bf16 %v112
    %v115 = vlaneseq
    %v116 = vshrl.u32 %v115, 7
    %vm118 = vcmp.lt.s32.totalorder %v116, 2
    %v119 = vsel %vm118, %v113, %v14
    %s120 = scalar_lea.vmem [#allocation8], 28
    %v121 = vpack.c.bf16 0.0, %v119
    %123 = vst [vmem:[%s120] sm:$0xf] %v121
    %s124 = scalar_lea.vmem %s6, 5
    %s126 = sor.u32 3, 1
    %s127 = sand.u32 %s126, 1
    %v128 = vld [vmem:[%s124] sm:%s127]
    %v129 = vunpack.c.l.bf16 %v128
    %v130 = vunpack.c.h.bf16 %v128
    %v131 = vlaneseq
    %v132 = vshrl.u32 %v131, 7
    %vm134 = vcmp.lt.s32.totalorder %v132, 2
    %v135 = vsel %vm134, %v129, %v14
    %s136 = scalar_lea.vmem [#allocation8], 32
    %v137 = vpack.c.bf16 0.0, %v135
    %139 = vst [vmem:[%s136] sm:$0xf] %v137
    %s140 = scalar_lea.vmem [#allocation8], 36
    %v141 = vpack.c.bf16 0.0, %v14
    %143 = vst [vmem:[%s140] sm:$0xf] %v141
    %s144 = scalar_lea.vmem [#allocation8], 40
    %v145 = vpack.c.bf16 0.0, %v14
    %147 = vst [vmem:[%s144] sm:$0xf] %v145
    %s148 = scalar_lea.vmem [#allocation8], 44
    %v149 = vpack.c.bf16 0.0, %v14
    %151 = vst [vmem:[%s148] sm:$0xf] %v149
    %s152 = scalar_lea.vmem %s6, 6
    %s154 = sor.u32 3, 1
    %s155 = sand.u32 %s154, 1
    %v156 = vld [vmem:[%s152] sm:%s155]
    %v157 = vunpack.c.l.bf16 %v156
    %v158 = vunpack.c.h.bf16 %v156
    %v159 = vlaneseq
    %v160 = vshrl.u32 %v159, 7
    %vm162 = vcmp.lt.s32.totalorder %v160, 2
    %v163 = vsel %vm162, %v157, %v14
    %s164 = scalar_lea.vmem [#allocation8], 48
    %v165 = vpack.c.bf16 0.0, %v163
    %167 = vst [vmem:[%s164] sm:$0xf] %v165
    %s168 = scalar_lea.vmem %s6, 7
    %s170 = sor.u32 3, 1
    %s171 = sand.u32 %s170, 1
    %v172 = vld [vmem:[%s168] sm:%s171]
    %v173 = vunpack.c.l.bf16 %v172
    %v174 = vunpack.c.h.bf16 %v172
    %v175 = vlaneseq
    %v176 = vshrl.u32 %v175, 7
    %vm178 = vcmp.lt.s32.totalorder %v176, 2
    %v179 = vsel %vm178, %v173, %v14
    %s180 = scalar_lea.vmem [#allocation8], 52
    %v181 = vpack.c.bf16 0.0, %v179
    %183 = vst [vmem:[%s180] sm:$0xf] %v181
    %s184 = scalar_lea.vmem %s6, 8
    %s186 = sor.u32 3, 1
    %s187 = sand.u32 %s186, 1
    %v188 = vld [vmem:[%s184] sm:%s187]
    %v189 = vunpack.c.l.bf16 %v188
    %v190 = vunpack.c.h.bf16 %v188
    %v191 = vlaneseq
    %v192 = vshrl.u32 %v191, 7
    %vm194 = vcmp.lt.s32.totalorder %v192, 2
    %v195 = vsel %vm194, %v189, %v14
    %s196 = scalar_lea.vmem [#allocation8], 56
    %v197 = vpack.c.bf16 0.0, %v195
    %199 = vst [vmem:[%s196] sm:$0xf] %v197
    %s200 = scalar_lea.vmem [#allocation8], 60
    %v201 = vpack.c.bf16 0.0, %v14
    %203 = vst [vmem:[%s200] sm:$0xf] %v201
    %s204 = scalar_lea.vmem [#allocation8], 64
    %v205 = vpack.c.bf16 0.0, %v14
    %207 = vst [vmem:[%s204] sm:$0xf] %v205
    %s208 = scalar_lea.vmem [#allocation8], 68
    %v209 = vpack.c.bf16 0.0, %v14
    %211 = vst [vmem:[%s208] sm:$0xf] %v209
    %s212 = scalar_lea.vmem %s6, 9
    %s214 = sor.u32 3, 1
    %s215 = sand.u32 %s214, 1
    %v216 = vld [vmem:[%s212] sm:%s215]
    %v217 = vunpack.c.l.bf16 %v216
    %v218 = vunpack.c.h.bf16 %v216
    %v219 = vlaneseq
    %v220 = vshrl.u32 %v219, 7
    %vm222 = vcmp.lt.s32.totalorder %v220, 2
    %v223 = vsel %vm222, %v217, %v14
    %s224 = scalar_lea.vmem [#allocation8], 72
    %v225 = vpack.c.bf16 0.0, %v223
    %227 = vst [vmem:[%s224] sm:$0xf] %v225
    %s228 = scalar_lea.vmem %s6, 10
    %s230 = sor.u32 3, 1
    %s231 = sand.u32 %s230, 1
    %v232 = vld [vmem:[%s228] sm:%s231]
    %v233 = vunpack.c.l.bf16 %v232
    %v234 = vunpack.c.h.bf16 %v232
    %v235 = vlaneseq
    %v236 = vshrl.u32 %v235, 7
    %vm238 = vcmp.lt.s32.totalorder %v236, 2
    %v239 = vsel %vm238, %v233, %v14
    %s240 = scalar_lea.vmem [#allocation8], 76
    %v241 = vpack.c.bf16 0.0, %v239
    %243 = vst [vmem:[%s240] sm:$0xf] %v241
    %s244 = scalar_lea.vmem %s6, 11
    %s246 = sor.u32 3, 1
    %s247 = sand.u32 %s246, 1
    %v248 = vld [vmem:[%s244] sm:%s247]
    %v249 = vunpack.c.l.bf16 %v248
    %v250 = vunpack.c.h.bf16 %v248
    %v251 = vlaneseq
    %v252 = vshrl.u32 %v251, 7
    %vm254 = vcmp.lt.s32.totalorder %v252, 2
    %v255 = vsel %vm254, %v249, %v14
    %s256 = scalar_lea.vmem [#allocation8], 80
    %v257 = vpack.c.bf16 0.0, %v255
    %259 = vst [vmem:[%s256] sm:$0xf] %v257
    %s260 = scalar_lea.vmem [#allocation8], 84
    %v261 = vpack.c.bf16 0.0, %v14
    %263 = vst [vmem:[%s260] sm:$0xf] %v261
    %s264 = scalar_lea.vmem [#allocation8], 88
    %v265 = vpack.c.bf16 0.0, %v14
    %267 = vst [vmem:[%s264] sm:$0xf] %v265
    %s268 = scalar_lea.vmem [#allocation8], 92
    %v269 = vpack.c.bf16 0.0, %v14
    %271 = vst [vmem:[%s268] sm:$0xf] %v269
    %s272 = scalar_lea.vmem %s6, 12
    %s274 = sor.u32 3, 1
    %s275 = sand.u32 %s274, 1
    %v276 = vld [vmem:[%s272] sm:%s275]
    %v277 = vunpack.c.l.bf16 %v276
    %v278 = vunpack.c.h.bf16 %v276
    %v279 = vlaneseq
    %v280 = vshrl.u32 %v279, 7
    %vm282 = vcmp.lt.s32.totalorder %v280, 2
    %v283 = vsel %vm282, %v277, %v14
    %s284 = scalar_lea.vmem [#allocation8], 96
    %v285 = vpack.c.bf16 0.0, %v283
    %287 = vst [vmem:[%s284] sm:$0xf] %v285
    %s288 = scalar_lea.vmem %s6, 13
    %s290 = sor.u32 3, 1
    %s291 = sand.u32 %s290, 1
    %v292 = vld [vmem:[%s288] sm:%s291]
    %v293 = vunpack.c.l.bf16 %v292
    %v294 = vunpack.c.h.bf16 %v292
    %v295 = vlaneseq
    %v296 = vshrl.u32 %v295, 7
    %vm298 = vcmp.lt.s32.totalorder %v296, 2
    %v299 = vsel %vm298, %v293, %v14
    %s300 = scalar_lea.vmem [#allocation8], 100
    %v301 = vpack.c.bf16 0.0, %v299
    %303 = vst [vmem:[%s300] sm:$0xf] %v301
    %s304 = scalar_lea.vmem %s6, 14
    %s306 = sor.u32 3, 1
    %s307 = sand.u32 %s306, 1
    %v308 = vld [vmem:[%s304] sm:%s307]
    %v309 = vunpack.c.l.bf16 %v308
    %v310 = vunpack.c.h.bf16 %v308
    %v311 = vlaneseq
    %v312 = vshrl.u32 %v311, 7
    %vm314 = vcmp.lt.s32.totalorder %v312, 2
    %v315 = vsel %vm314, %v309, %v14
    %s316 = scalar_lea.vmem [#allocation8], 104
    %v317 = vpack.c.bf16 0.0, %v315
    %319 = vst [vmem:[%s316] sm:$0xf] %v317
    %s320 = scalar_lea.vmem [#allocation8], 108
    %v321 = vpack.c.bf16 0.0, %v14
    %323 = vst [vmem:[%s320] sm:$0xf] %v321
    %s324 = scalar_lea.vmem [#allocation8], 112
    %v325 = vpack.c.bf16 0.0, %v14
    %327 = vst [vmem:[%s324] sm:$0xf] %v325
    %s328 = scalar_lea.vmem [#allocation8], 116
    %v329 = vpack.c.bf16 0.0, %v14
    %331 = vst [vmem:[%s328] sm:$0xf] %v329
    %s332 = scalar_lea.vmem %s6, 15
    %s334 = sor.u32 3, 1
    %s335 = sand.u32 %s334, 1
    %v336 = vld [vmem:[%s332] sm:%s335]
    %v337 = vunpack.c.l.bf16 %v336
    %v338 = vunpack.c.h.bf16 %v336
    %v339 = vlaneseq
    %v340 = vshrl.u32 %v339, 7
    %vm342 = vcmp.lt.s32.totalorder %v340, 2
    %v343 = vsel %vm342, %v337, %v14
    %s344 = scalar_lea.vmem [#allocation8], 120
    %v345 = vpack.c.bf16 0.0, %v343
    %347 = vst [vmem:[%s344] sm:$0xf] %v345
    %s348 = scalar_lea.vmem %s6, 16
    %s350 = sor.u32 3, 1
    %s351 = sand.u32 %s350, 1
    %v352 = vld [vmem:[%s348] sm:%s351]
    %v353 = vunpack.c.l.bf16 %v352
    %v354 = vunpack.c.h.bf16 %v352
    %v355 = vlaneseq
    %v356 = vshrl.u32 %v355, 7
    %vm358 = vcmp.lt.s32.totalorder %v356, 2
    %v359 = vsel %vm358, %v353, %v14
    %s360 = scalar_lea.vmem [#allocation8], 124
    %v361 = vpack.c.bf16 0.0, %v359
    %363 = vst [vmem:[%s360] sm:$0xf] %v361
    %s364 = scalar_lea.vmem %s6, 17
    %s366 = sor.u32 3, 1
    %s367 = sand.u32 %s366, 1
    %v368 = vld [vmem:[%s364] sm:%s367]
    %v369 = vunpack.c.l.bf16 %v368
    %v370 = vunpack.c.h.bf16 %v368
    %v371 = vlaneseq
    %v372 = vshrl.u32 %v371, 7
    %vm374 = vcmp.lt.s32.totalorder %v372, 2
    %v375 = vsel %vm374, %v369, %v14
    %s376 = scalar_lea.vmem [#allocation8], 128
    %v377 = vpack.c.bf16 0.0, %v375
    %379 = vst [vmem:[%s376] sm:$0xf] %v377
    %s380 = scalar_lea.vmem [#allocation8], 132
    %v381 = vpack.c.bf16 0.0, %v14
    %383 = vst [vmem:[%s380] sm:$0xf] %v381
    %s384 = scalar_lea.vmem [#allocation8], 136
    %v385 = vpack.c.bf16 0.0, %v14
    %387 = vst [vmem:[%s384] sm:$0xf] %v385
    %s388 = scalar_lea.vmem [#allocation8], 140
    %v389 = vpack.c.bf16 0.0, %v14
    %391 = vst [vmem:[%s388] sm:$0xf] %v389
    %s392 = scalar_lea.vmem %s6, 18
    %s394 = sor.u32 3, 1
    %s395 = sand.u32 %s394, 1
    %v396 = vld [vmem:[%s392] sm:%s395]
    %v397 = vunpack.c.l.bf16 %v396
    %v398 = vunpack.c.h.bf16 %v396
    %v399 = vlaneseq
    %v400 = vshrl.u32 %v399, 7
    %vm402 = vcmp.lt.s32.totalorder %v400, 2
    %v403 = vsel %vm402, %v397, %v14
    %s404 = scalar_lea.vmem [#allocation8], 144
    %v405 = vpack.c.bf16 0.0, %v403
    %407 = vst [vmem:[%s404] sm:$0xf] %v405
    %s408 = scalar_lea.vmem %s6, 19
    %s410 = sor.u32 3, 1
    %s411 = sand.u32 %s410, 1
    %v412 = vld [vmem:[%s408] sm:%s411]
    %v413 = vunpack.c.l.bf16 %v412
    %v414 = vunpack.c.h.bf16 %v412
    %v415 = vlaneseq
    %v416 = vshrl.u32 %v415, 7
    %vm418 = vcmp.lt.s32.totalorder %v416, 2
    %v419 = vsel %vm418, %v413, %v14
    %s420 = scalar_lea.vmem [#allocation8], 148
    %v421 = vpack.c.bf16 0.0, %v419
    %423 = vst [vmem:[%s420] sm:$0xf] %v421
    %s424 = scalar_lea.vmem %s6, 20
    %s426 = sor.u32 3, 1
    %s427 = sand.u32 %s426, 1
    %v428 = vld [vmem:[%s424] sm:%s427]
    %v429 = vunpack.c.l.bf16 %v428
    %v430 = vunpack.c.h.bf16 %v428
    %v431 = vlaneseq
    %v432 = vshrl.u32 %v431, 7
    %vm434 = vcmp.lt.s32.totalorder %v432, 2
    %v435 = vsel %vm434, %v429, %v14
    %s436 = scalar_lea.vmem [#allocation8], 152
    %v437 = vpack.c.bf16 0.0, %v435
    %439 = vst [vmem:[%s436] sm:$0xf] %v437
    %s440 = scalar_lea.vmem [#allocation8], 156
    %v441 = vpack.c.bf16 0.0, %v14
    %443 = vst [vmem:[%s440] sm:$0xf] %v441
    %s444 = scalar_lea.vmem [#allocation8], 160
    %v445 = vpack.c.bf16 0.0, %v14
    %447 = vst [vmem:[%s444] sm:$0xf] %v445
    %s448 = scalar_lea.vmem [#allocation8], 164
    %v449 = vpack.c.bf16 0.0, %v14
    %451 = vst [vmem:[%s448] sm:$0xf] %v449
    %s452 = scalar_lea.vmem %s6, 21
    %s454 = sor.u32 3, 1
    %s455 = sand.u32 %s454, 1
    %v456 = vld [vmem:[%s452] sm:%s455]
    %v457 = vunpack.c.l.bf16 %v456
    %v458 = vunpack.c.h.bf16 %v456
    %v459 = vlaneseq
    %v460 = vshrl.u32 %v459, 7
    %vm462 = vcmp.lt.s32.totalorder %v460, 2
    %v463 = vsel %vm462, %v457, %v14
    %s464 = scalar_lea.vmem [#allocation8], 168
    %v465 = vpack.c.bf16 0.0, %v463
    %467 = vst [vmem:[%s464] sm:$0xf] %v465
    %s468 = scalar_lea.vmem %s6, 22
    %s470 = sor.u32 3, 1
    %s471 = sand.u32 %s470, 1
    %v472 = vld [vmem:[%s468] sm:%s471]
    %v473 = vunpack.c.l.bf16 %v472
    %v474 = vunpack.c.h.bf16 %v472
    %v475 = vlaneseq
    %v476 = vshrl.u32 %v475, 7
    %vm478 = vcmp.lt.s32.totalorder %v476, 2
    %v479 = vsel %vm478, %v473, %v14
    %s480 = scalar_lea.vmem [#allocation8], 172
    %v481 = vpack.c.bf16 0.0, %v479
    %483 = vst [vmem:[%s480] sm:$0xf] %v481
    %s484 = scalar_lea.vmem %s6, 23
    %s486 = sor.u32 3, 1
    %s487 = sand.u32 %s486, 1
    %v488 = vld [vmem:[%s484] sm:%s487]
    %v489 = vunpack.c.l.bf16 %v488
    %v490 = vunpack.c.h.bf16 %v488
    %v491 = vlaneseq
    %v492 = vshrl.u32 %v491, 7
    %vm494 = vcmp.lt.s32.totalorder %v492, 2
    %v495 = vsel %vm494, %v489, %v14
    %s496 = scalar_lea.vmem [#allocation8], 176
    %v497 = vpack.c.bf16 0.0, %v495
    %499 = vst [vmem:[%s496] sm:$0xf] %v497
    %s500 = scalar_lea.vmem [#allocation8], 180
    %v501 = vpack.c.bf16 0.0, %v14
    %503 = vst [vmem:[%s500] sm:$0xf] %v501
    %s504 = scalar_lea.vmem [#allocation8], 184
    %v505 = vpack.c.bf16 0.0, %v14
    %507 = vst [vmem:[%s504] sm:$0xf] %v505
    %s508 = scalar_lea.vmem [#allocation8], 188
    %v509 = vpack.c.bf16 0.0, %v14
    %511 = vst [vmem:[%s508] sm:$0xf] %v509
    %s512 = scalar_lea.vmem %s6, 24
    %s514 = sor.u32 3, 1
    %s515 = sand.u32 %s514, 1
    %v516 = vld [vmem:[%s512] sm:%s515]
    %v517 = vunpack.c.l.bf16 %v516
    %v518 = vunpack.c.h.bf16 %v516
    %v519 = vlaneseq
    %v520 = vshrl.u32 %v519, 7
    %vm522 = vcmp.lt.s32.totalorder %v520, 2
    %v523 = vsel %vm522, %v517, %v14
    %s524 = scalar_lea.vmem [#allocation8], 192
    %v525 = vpack.c.bf16 0.0, %v523
    %527 = vst [vmem:[%s524] sm:$0xf] %v525
    %s528 = scalar_lea.vmem %s6, 25
    %s530 = sor.u32 3, 1
    %s531 = sand.u32 %s530, 1
    %v532 = vld [vmem:[%s528] sm:%s531]
    %v533 = vunpack.c.l.bf16 %v532
    %v534 = vunpack.c.h.bf16 %v532
    %v535 = vlaneseq
    %v536 = vshrl.u32 %v535, 7
    %vm538 = vcmp.lt.s32.totalorder %v536, 2
    %v539 = vsel %vm538, %v533, %v14
    %s540 = scalar_lea.vmem [#allocation8], 196
    %v541 = vpack.c.bf16 0.0, %v539
    %543 = vst [vmem:[%s540] sm:$0xf] %v541
    %s544 = scalar_lea.vmem %s6, 26
    %s546 = sor.u32 3, 1
    %s547 = sand.u32 %s546, 1
    %v548 = vld [vmem:[%s544] sm:%s547]
    %v549 = vunpack.c.l.bf16 %v548
    %v550 = vunpack.c.h.bf16 %v548
    %v551 = vlaneseq
    %v552 = vshrl.u32 %v551, 7
    %vm554 = vcmp.lt.s32.totalorder %v552, 2
    %v555 = vsel %vm554, %v549, %v14
    %s556 = scalar_lea.vmem [#allocation8], 200
    %v557 = vpack.c.bf16 0.0, %v555
    %559 = vst [vmem:[%s556] sm:$0xf] %v557
    %s560 = scalar_lea.vmem [#allocation8], 204
    %v561 = vpack.c.bf16 0.0, %v14
    %563 = vst [vmem:[%s560] sm:$0xf] %v561
    %s564 = scalar_lea.vmem [#allocation8], 208
    %v565 = vpack.c.bf16 0.0, %v14
    %567 = vst [vmem:[%s564] sm:$0xf] %v565
    %s568 = scalar_lea.vmem [#allocation8], 212
    %v569 = vpack.c.bf16 0.0, %v14
    %571 = vst [vmem:[%s568] sm:$0xf] %v569
    %s572 = scalar_lea.vmem %s6, 27
    %s574 = sor.u32 3, 1
    %s575 = sand.u32 %s574, 1
    %v576 = vld [vmem:[%s572] sm:%s575]
    %v577 = vunpack.c.l.bf16 %v576
    %v578 = vunpack.c.h.bf16 %v576
    %v579 = vlaneseq
    %v580 = vshrl.u32 %v579, 7
    %vm582 = vcmp.lt.s32.totalorder %v580, 2
    %v583 = vsel %vm582, %v577, %v14
    %s584 = scalar_lea.vmem [#allocation8], 216
    %v585 = vpack.c.bf16 0.0, %v583
    %587 = vst [vmem:[%s584] sm:$0xf] %v585
    %s588 = scalar_lea.vmem %s6, 28
    %s590 = sor.u32 3, 1
    %s591 = sand.u32 %s590, 1
    %v592 = vld [vmem:[%s588] sm:%s591]
    %v593 = vunpack.c.l.bf16 %v592
    %v594 = vunpack.c.h.bf16 %v592
    %v595 = vlaneseq
    %v596 = vshrl.u32 %v595, 7
    %vm598 = vcmp.lt.s32.totalorder %v596, 2
    %v599 = vsel %vm598, %v593, %v14
    %s600 = scalar_lea.vmem [#allocation8], 220
    %v601 = vpack.c.bf16 0.0, %v599
    %603 = vst [vmem:[%s600] sm:$0xf] %v601
    %s604 = scalar_lea.vmem %s6, 29
    %s606 = sor.u32 3, 1
    %s607 = sand.u32 %s606, 1
    %v608 = vld [vmem:[%s604] sm:%s607]
    %v609 = vunpack.c.l.bf16 %v608
    %v610 = vunpack.c.h.bf16 %v608
    %v611 = vlaneseq
    %v612 = vshrl.u32 %v611, 7
    %vm614 = vcmp.lt.s32.totalorder %v612, 2
    %v615 = vsel %vm614, %v609, %v14
    %s616 = scalar_lea.vmem [#allocation8], 224
    %v617 = vpack.c.bf16 0.0, %v615
    %619 = vst [vmem:[%s616] sm:$0xf] %v617
    %s620 = scalar_lea.vmem [#allocation8], 228
    %v621 = vpack.c.bf16 0.0, %v14
    %623 = vst [vmem:[%s620] sm:$0xf] %v621
    %s624 = scalar_lea.vmem [#allocation8], 232
    %v625 = vpack.c.bf16 0.0, %v14
    %627 = vst [vmem:[%s624] sm:$0xf] %v625
    %s628 = scalar_lea.vmem [#allocation8], 236
    %v629 = vpack.c.bf16 0.0, %v14
    %631 = vst [vmem:[%s628] sm:$0xf] %v629
    %s632 = scalar_lea.vmem %s6, 30
    %s634 = sor.u32 3, 1
    %s635 = sand.u32 %s634, 1
    %v636 = vld [vmem:[%s632] sm:%s635]
    %v637 = vunpack.c.l.bf16 %v636
    %v638 = vunpack.c.h.bf16 %v636
    %v639 = vlaneseq
    %v640 = vshrl.u32 %v639, 7
    %vm642 = vcmp.lt.s32.totalorder %v640, 2
    %v643 = vsel %vm642, %v637, %v14
    %s644 = scalar_lea.vmem [#allocation8], 240
    %v645 = vpack.c.bf16 0.0, %v643
    %647 = vst [vmem:[%s644] sm:$0xf] %v645
    %s648 = scalar_lea.vmem %s6, 31
    %s650 = sor.u32 3, 1
    %s651 = sand.u32 %s650, 1
    %v652 = vld [vmem:[%s648] sm:%s651]
    %v653 = vunpack.c.l.bf16 %v652
    %v654 = vunpack.c.h.bf16 %v652
    %v655 = vlaneseq
    %v656 = vshrl.u32 %v655, 7
    %vm658 = vcmp.lt.s32.totalorder %v656, 2
    %v659 = vsel %vm658, %v653, %v14
    %s660 = scalar_lea.vmem [#allocation8], 244
    %v661 = vpack.c.bf16 0.0, %v659
    %663 = vst [vmem:[%s660] sm:$0xf] %v661
    %s664 = scalar_lea.vmem %s6, 32
    %s666 = sor.u32 3, 1
    %s667 = sand.u32 %s666, 1
    %v668 = vld [vmem:[%s664] sm:%s667]
    %v669 = vunpack.c.l.bf16 %v668
    %v670 = vunpack.c.h.bf16 %v668
    %v671 = vlaneseq
    %v672 = vshrl.u32 %v671, 7
    %vm674 = vcmp.lt.s32.totalorder %v672, 2
    %v675 = vsel %vm674, %v669, %v14
    %s676 = scalar_lea.vmem [#allocation8], 248
    %v677 = vpack.c.bf16 0.0, %v675
    %679 = vst [vmem:[%s676] sm:$0xf] %v677
    %s680 = scalar_lea.vmem [#allocation8], 252
    %v681 = vpack.c.bf16 0.0, %v14
    %683 = vst [vmem:[%s680] sm:$0xf] %v681
    %s684 = scalar_lea.vmem [#allocation8], 256
    %v685 = vpack.c.bf16 0.0, %v14
    %687 = vst [vmem:[%s684] sm:$0xf] %v685
    %s688 = scalar_lea.vmem [#allocation8], 260
    %v689 = vpack.c.bf16 0.0, %v14
    %691 = vst [vmem:[%s688] sm:$0xf] %v689
    %s692 = scalar_lea.vmem %s6, 33
    %s694 = sor.u32 3, 1
    %s695 = sand.u32 %s694, 1
    %v696 = vld [vmem:[%s692] sm:%s695]
    %v697 = vunpack.c.l.bf16 %v696
    %v698 = vunpack.c.h.bf16 %v696
    %v699 = vlaneseq
    %v700 = vshrl.u32 %v699, 7
    %vm702 = vcmp.lt.s32.totalorder %v700, 2
    %v703 = vsel %vm702, %v697, %v14
    %s704 = scalar_lea.vmem [#allocation8], 264
    %v705 = vpack.c.bf16 0.0, %v703
    %707 = vst [vmem:[%s704] sm:$0xf] %v705
    %s708 = scalar_lea.vmem %s6, 34
    %s710 = sor.u32 3, 1
    %s711 = sand.u32 %s710, 1
    %v712 = vld [vmem:[%s708] sm:%s711]
    %v713 = vunpack.c.l.bf16 %v712
    %v714 = vunpack.c.h.bf16 %v712
    %v715 = vlaneseq
    %v716 = vshrl.u32 %v715, 7
    %vm718 = vcmp.lt.s32.totalorder %v716, 2
    %v719 = vsel %vm718, %v713, %v14
    %s720 = scalar_lea.vmem [#allocation8], 268
    %v721 = vpack.c.bf16 0.0, %v719
    %723 = vst [vmem:[%s720] sm:$0xf] %v721
    %s724 = scalar_lea.vmem %s6, 35
    %s726 = sor.u32 3, 1
    %s727 = sand.u32 %s726, 1
    %v728 = vld [vmem:[%s724] sm:%s727]
    %v729 = vunpack.c.l.bf16 %v728
    %v730 = vunpack.c.h.bf16 %v728
    %v731 = vlaneseq
    %v732 = vshrl.u32 %v731, 7
    %vm734 = vcmp.lt.s32.totalorder %v732, 2
    %v735 = vsel %vm734, %v729, %v14
    %s736 = scalar_lea.vmem [#allocation8], 272
    %v737 = vpack.c.bf16 0.0, %v735
    %739 = vst [vmem:[%s736] sm:$0xf] %v737
    %s740 = scalar_lea.vmem [#allocation8], 276
    %v741 = vpack.c.bf16 0.0, %v14
    %743 = vst [vmem:[%s740] sm:$0xf] %v741
    %s744 = scalar_lea.vmem [#allocation8], 280
    %v745 = vpack.c.bf16 0.0, %v14
    %747 = vst [vmem:[%s744] sm:$0xf] %v745
    %s748 = scalar_lea.vmem [#allocation8], 284
    %v749 = vpack.c.bf16 0.0, %v14
    %751 = vst [vmem:[%s748] sm:$0xf] %v749
    %s752 = scalar_lea.vmem %s6, 36
    %s754 = sor.u32 3, 1
    %s755 = sand.u32 %s754, 1
    %v756 = vld [vmem:[%s752] sm:%s755]
    %v757 = vunpack.c.l.bf16 %v756
    %v758 = vunpack.c.h.bf16 %v756
    %v759 = vlaneseq
    %v760 = vshrl.u32 %v759, 7
    %vm762 = vcmp.lt.s32.totalorder %v760, 2
    %v763 = vsel %vm762, %v757, %v14
    %s764 = scalar_lea.vmem [#allocation8], 288
    %v765 = vpack.c.bf16 0.0, %v763
    %767 = vst [vmem:[%s764] sm:$0xf] %v765
    %s768 = scalar_lea.vmem %s6, 37
    %s770 = sor.u32 3, 1
    %s771 = sand.u32 %s770, 1
    %v772 = vld [vmem:[%s768] sm:%s771]
    %v773 = vunpack.c.l.bf16 %v772
    %v774 = vunpack.c.h.bf16 %v772
    %v775 = vlaneseq
    %v776 = vshrl.u32 %v775, 7
    %vm778 = vcmp.lt.s32.totalorder %v776, 2
    %v779 = vsel %vm778, %v773, %v14
    %s780 = scalar_lea.vmem [#allocation8], 292
    %v781 = vpack.c.bf16 0.0, %v779
    %783 = vst [vmem:[%s780] sm:$0xf] %v781
    %s784 = scalar_lea.vmem %s6, 38
    %s786 = sor.u32 3, 1
    %s787 = sand.u32 %s786, 1
    %v788 = vld [vmem:[%s784] sm:%s787]
    %v789 = vunpack.c.l.bf16 %v788
    %v790 = vunpack.c.h.bf16 %v788
    %v791 = vlaneseq
    %v792 = vshrl.u32 %v791, 7
    %vm794 = vcmp.lt.s32.totalorder %v792, 2
    %v795 = vsel %vm794, %v789, %v14
    %s796 = scalar_lea.vmem [#allocation8], 296
    %v797 = vpack.c.bf16 0.0, %v795
    %799 = vst [vmem:[%s796] sm:$0xf] %v797
    %s800 = scalar_lea.vmem [#allocation8], 300
    %v801 = vpack.c.bf16 0.0, %v14
    %803 = vst [vmem:[%s800] sm:$0xf] %v801
    %s804 = scalar_lea.vmem [#allocation8], 304
    %v805 = vpack.c.bf16 0.0, %v14
    %807 = vst [vmem:[%s804] sm:$0xf] %v805
    %s808 = scalar_lea.vmem [#allocation8], 308
    %v809 = vpack.c.bf16 0.0, %v14
    %811 = vst [vmem:[%s808] sm:$0xf] %v809
    %s812 = scalar_lea.vmem %s6, 39
    %s814 = sor.u32 3, 1
    %s815 = sand.u32 %s814, 1
    %v816 = vld [vmem:[%s812] sm:%s815]
    %v817 = vunpack.c.l.bf16 %v816
    %v818 = vunpack.c.h.bf16 %v816
    %v819 = vlaneseq
    %v820 = vshrl.u32 %v819, 7
    %vm822 = vcmp.lt.s32.totalorder %v820, 2
    %v823 = vsel %vm822, %v817, %v14
    %s824 = scalar_lea.vmem [#allocation8], 312
    %v825 = vpack.c.bf16 0.0, %v823
    %827 = vst [vmem:[%s824] sm:$0xf] %v825
    %s828 = scalar_lea.vmem %s6, 40
    %s830 = sor.u32 3, 1
    %s831 = sand.u32 %s830, 1
    %v832 = vld [vmem:[%s828] sm:%s831]
    %v833 = vunpack.c.l.bf16 %v832
    %v834 = vunpack.c.h.bf16 %v832
    %v835 = vlaneseq
    %v836 = vshrl.u32 %v835, 7
    %vm838 = vcmp.lt.s32.totalorder %v836, 2
    %v839 = vsel %vm838, %v833, %v14
    %s840 = scalar_lea.vmem [#allocation8], 316
    %v841 = vpack.c.bf16 0.0, %v839
    %843 = vst [vmem:[%s840] sm:$0xf] %v841
    %s844 = scalar_lea.vmem %s6, 41
    %s846 = sor.u32 3, 1
    %s847 = sand.u32 %s846, 1
    %v848 = vld [vmem:[%s844] sm:%s847]
    %v849 = vunpack.c.l.bf16 %v848
    %v850 = vunpack.c.h.bf16 %v848
    %v851 = vlaneseq
    %v852 = vshrl.u32 %v851, 7
    %vm854 = vcmp.lt.s32.totalorder %v852, 2
    %v855 = vsel %vm854, %v849, %v14
    %s856 = scalar_lea.vmem [#allocation8], 320
    %v857 = vpack.c.bf16 0.0, %v855
    %859 = vst [vmem:[%s856] sm:$0xf] %v857
    %s860 = scalar_lea.vmem [#allocation8], 324
    %v861 = vpack.c.bf16 0.0, %v14
    %863 = vst [vmem:[%s860] sm:$0xf] %v861
    %s864 = scalar_lea.vmem [#allocation8], 328
    %v865 = vpack.c.bf16 0.0, %v14
    %867 = vst [vmem:[%s864] sm:$0xf] %v865
    %s868 = scalar_lea.vmem [#allocation8], 332
    %v869 = vpack.c.bf16 0.0, %v14
    %871 = vst [vmem:[%s868] sm:$0xf] %v869
    %s872 = scalar_lea.vmem %s6, 42
    %s874 = sor.u32 3, 1
    %s875 = sand.u32 %s874, 1
    %v876 = vld [vmem:[%s872] sm:%s875]
    %v877 = vunpack.c.l.bf16 %v876
    %v878 = vunpack.c.h.bf16 %v876
    %v879 = vlaneseq
    %v880 = vshrl.u32 %v879, 7
    %vm882 = vcmp.lt.s32.totalorder %v880, 2
    %v883 = vsel %vm882, %v877, %v14
    %s884 = scalar_lea.vmem [#allocation8], 336
    %v885 = vpack.c.bf16 0.0, %v883
    %887 = vst [vmem:[%s884] sm:$0xf] %v885
    %s888 = scalar_lea.vmem %s6, 43
    %s890 = sor.u32 3, 1
    %s891 = sand.u32 %s890, 1
    %v892 = vld [vmem:[%s888] sm:%s891]
    %v893 = vunpack.c.l.bf16 %v892
    %v894 = vunpack.c.h.bf16 %v892
    %v895 = vlaneseq
    %v896 = vshrl.u32 %v895, 7
    %vm898 = vcmp.lt.s32.totalorder %v896, 2
    %v899 = vsel %vm898, %v893, %v14
    %s900 = scalar_lea.vmem [#allocation8], 340
    %v901 = vpack.c.bf16 0.0, %v899
    %903 = vst [vmem:[%s900] sm:$0xf] %v901
    %s904 = scalar_lea.vmem %s6, 44
    %s906 = sor.u32 3, 1
    %s907 = sand.u32 %s906, 1
    %v908 = vld [vmem:[%s904] sm:%s907]
    %v909 = vunpack.c.l.bf16 %v908
    %v910 = vunpack.c.h.bf16 %v908
    %v911 = vlaneseq
    %v912 = vshrl.u32 %v911, 7
    %vm914 = vcmp.lt.s32.totalorder %v912, 2
    %v915 = vsel %vm914, %v909, %v14
    %s916 = scalar_lea.vmem [#allocation8], 344
    %v917 = vpack.c.bf16 0.0, %v915
    %919 = vst [vmem:[%s916] sm:$0xf] %v917
    %s920 = scalar_lea.vmem [#allocation8], 348
    %v921 = vpack.c.bf16 0.0, %v14
    %923 = vst [vmem:[%s920] sm:$0xf] %v921
    %s924 = scalar_lea.vmem [#allocation8], 352
    %v925 = vpack.c.bf16 0.0, %v14
    %927 = vst [vmem:[%s924] sm:$0xf] %v925
    %s928 = scalar_lea.vmem [#allocation8], 356
    %v929 = vpack.c.bf16 0.0, %v14
    %931 = vst [vmem:[%s928] sm:$0xf] %v929
    %s932 = scalar_lea.vmem %s6, 45
    %s934 = sor.u32 3, 1
    %s935 = sand.u32 %s934, 1
    %v936 = vld [vmem:[%s932] sm:%s935]
    %v937 = vunpack.c.l.bf16 %v936
    %v938 = vunpack.c.h.bf16 %v936
    %v939 = vlaneseq
    %v940 = vshrl.u32 %v939, 7
    %vm942 = vcmp.lt.s32.totalorder %v940, 2
    %v943 = vsel %vm942, %v937, %v14
    %s944 = scalar_lea.vmem [#allocation8], 360
    %v945 = vpack.c.bf16 0.0, %v943
    %947 = vst [vmem:[%s944] sm:$0xf] %v945
    %s948 = scalar_lea.vmem %s6, 46
    %s950 = sor.u32 3, 1
    %s951 = sand.u32 %s950, 1
    %v952 = vld [vmem:[%s948] sm:%s951]
    %v953 = vunpack.c.l.bf16 %v952
    %v954 = vunpack.c.h.bf16 %v952
    %v955 = vlaneseq
    %v956 = vshrl.u32 %v955, 7
    %vm958 = vcmp.lt.s32.totalorder %v956, 2
    %v959 = vsel %vm958, %v953, %v14
    %s960 = scalar_lea.vmem [#allocation8], 364
    %v961 = vpack.c.bf16 0.0, %v959
    %963 = vst [vmem:[%s960] sm:$0xf] %v961
    %s964 = scalar_lea.vmem %s6, 47
    %s966 = sor.u32 3, 1
    %s967 = sand.u32 %s966, 1
    %v968 = vld [vmem:[%s964] sm:%s967]
    %v969 = vunpack.c.l.bf16 %v968
    %v970 = vunpack.c.h.bf16 %v968
    %v971 = vlaneseq
    %v972 = vshrl.u32 %v971, 7
    %vm974 = vcmp.lt.s32.totalorder %v972, 2
    %v975 = vsel %vm974, %v969, %v14
    %s976 = scalar_lea.vmem [#allocation8], 368
    %v977 = vpack.c.bf16 0.0, %v975
    %979 = vst [vmem:[%s976] sm:$0xf] %v977
    %s980 = scalar_lea.vmem [#allocation8], 372
    %v981 = vpack.c.bf16 0.0, %v14
    %983 = vst [vmem:[%s980] sm:$0xf] %v981
    %s984 = scalar_lea.vmem [#allocation8], 376
    %v985 = vpack.c.bf16 0.0, %v14
    %987 = vst [vmem:[%s984] sm:$0xf] %v985
    %s988 = scalar_lea.vmem [#allocation8], 380
    %v989 = vpack.c.bf16 0.0, %v14
    %991 = vst [vmem:[%s988] sm:$0xf] %v989
    %v993 = vld [vmem:[%s1] sm:$0x3]
    %v994 = vld [vmem:[%s3] sm:$0x1]
    %v995 = vld [vmem:[%s4] sm:$0x1]
    %v996 = vld [vmem:[#allocation7] sm:$0x1]
    %v997 = vld [vmem:[%s0] sm:$0xff]
    %v998 = vld [vmem:[%s0 + $0x8] sm:$0xff]
    %v999 = vld [vmem:[%s0 + $0x10] sm:$0xff]
    %v1000 = vld [vmem:[%s0 + $0x18] sm:$0xff]
    %v1001 = vld [vmem:[%s0 + $0x20] sm:$0xff]
    %v1002 = vld [vmem:[%s0 + $0x28] sm:$0xff]
    %v1003 = vld [vmem:[%s0 + $0x30] sm:$0xff]
    %v1004 = vld [vmem:[%s0 + $0x38] sm:$0xff]
    %v1005 = vld [vmem:[%s0 + $0x40] sm:$0xff]
    %v1006 = vld [vmem:[%s0 + $0x48] sm:$0xff]
    %v1007 = vld [vmem:[%s0 + $0x50] sm:$0xff]
    %v1008 = vld [vmem:[%s0 + $0x58] sm:$0xff]
    %v1009 = vld [vmem:[%s0 + $0x60] sm:$0xff]
    %v1010 = vld [vmem:[%s0 + $0x68] sm:$0xff]
    %v1011 = vld [vmem:[%s0 + $0x70] sm:$0xff]
    %v1012 = vld [vmem:[%s0 + $0x78] sm:$0xff]
    %v1013 = vld [vmem:[%s0 + $0x80] sm:$0xff]
    %v1014 = vld [vmem:[%s0 + $0x88] sm:$0xff]
    %v1015 = vld [vmem:[%s0 + $0x90] sm:$0xff]
    %v1016 = vld [vmem:[%s0 + $0x98] sm:$0xff]
    %v1017 = vld [vmem:[%s0 + $0xa0] sm:$0xff]
    %v1018 = vld [vmem:[%s0 + $0xa8] sm:$0xff]
    %v1019 = vld [vmem:[%s0 + $0xb0] sm:$0xff]
    %v1020 = vld [vmem:[%s0 + $0xb8] sm:$0xff]
    %v1021 = vld [vmem:[%s0 + $0xc0] sm:$0xff]
    %v1022 = vld [vmem:[%s0 + $0xc8] sm:$0xff]
    %v1023 = vld [vmem:[%s0 + $0xd0] sm:$0xff]
    %v1024 = vld [vmem:[%s0 + $0xd8] sm:$0xff]
    %v1025 = vld [vmem:[%s0 + $0xe0] sm:$0xff]
    %v1026 = vld [vmem:[%s0 + $0xe8] sm:$0xff]
    %v1027 = vld [vmem:[%s0 + $0xf0] sm:$0xff]
    %v1028 = vld [vmem:[%s0 + $0xf8] sm:$0xff]
    %v1029 = vld [vmem:[%s0 + $0x100] sm:$0xff]
    %v1030 = vld [vmem:[%s0 + $0x108] sm:$0xff]
    %v1031 = vld [vmem:[%s0 + $0x110] sm:$0xff]
    %v1032 = vld [vmem:[%s0 + $0x118] sm:$0xff]
    %v1033 = vld [vmem:[%s0 + $0x120] sm:$0xff]
    %v1034 = vld [vmem:[%s0 + $0x128] sm:$0xff]
    %v1035 = vld [vmem:[%s0 + $0x130] sm:$0xff]
    %v1036 = vld [vmem:[%s0 + $0x138] sm:$0xff]
    %v1037 = vld [vmem:[%s0 + $0x140] sm:$0xff]
    %v1038 = vld [vmem:[%s0 + $0x148] sm:$0xff]
    %v1039 = vld [vmem:[%s0 + $0x150] sm:$0xff]
    %v1040 = vld [vmem:[%s0 + $0x158] sm:$0xff]
    %v1041 = vld [vmem:[%s0 + $0x160] sm:$0xff]
    %v1042 = vld [vmem:[%s0 + $0x168] sm:$0xff]
    %v1043 = vld [vmem:[%s0 + $0x170] sm:$0xff]
    %v1044 = vld [vmem:[%s0 + $0x178] sm:$0xff]
    %v1045 = vld [vmem:[#allocation8] sm:$0xff]
    %v1046 = vld [vmem:[#allocation8 + $0x8] sm:$0xf]
    %v1047 = vld [vmem:[#allocation8 + $0xc] sm:$0xff]
    %v1048 = vld [vmem:[#allocation8 + $0x14] sm:$0xf]
    %v1049 = vld [vmem:[#allocation8 + $0x18] sm:$0xff]
    %v1050 = vld [vmem:[#allocation8 + $0x20] sm:$0xf]
    %v1051 = vld [vmem:[#allocation8 + $0x24] sm:$0xff]
    %v1052 = vld [vmem:[#allocation8 + $0x2c] sm:$0xf]
    %s1053 = scalar_lea.vmem [#allocation8], 96
    %v1054 = vld [vmem:[%s1053] sm:$0xff]
    %v1055 = vld [vmem:[%s1053 + $0x8] sm:$0xf]
    %v1056 = vld [vmem:[%s1053 + $0xc] sm:$0xff]
    %v1057 = vld [vmem:[%s1053 + $0x14] sm:$0xf]
    %v1058 = vld [vmem:[%s1053 + $0x18] sm:$0xff]
    %v1059 = vld [vmem:[%s1053 + $0x20] sm:$0xf]
    %v1060 = vld [vmem:[%s1053 + $0x24] sm:$0xff]
    %v1061 = vld [vmem:[%s1053 + $0x2c] sm:$0xf]
    %s1062 = scalar_lea.vmem %s0, 384
    %v1063 = vld [vmem:[%s1062] sm:$0xff]
    %v1064 = vld [vmem:[%s1062 + $0x8] sm:$0xff]
    %v1065 = vld [vmem:[%s1062 + $0x10] sm:$0xff]
    %v1066 = vld [vmem:[%s1062 + $0x18] sm:$0xff]
    %v1067 = vld [vmem:[%s1062 + $0x20] sm:$0xff]
    %v1068 = vld [vmem:[%s1062 + $0x28] sm:$0xff]
    %v1069 = vld [vmem:[%s1062 + $0x30] sm:$0xff]
    %v1070 = vld [vmem:[%s1062 + $0x38] sm:$0xff]
    %v1071 = vld [vmem:[%s1062 + $0x40] sm:$0xff]
    %v1072 = vld [vmem:[%s1062 + $0x48] sm:$0xff]
    %v1073 = vld [vmem:[%s1062 + $0x50] sm:$0xff]
    %v1074 = vld [vmem:[%s1062 + $0x58] sm:$0xff]
    %v1075 = vld [vmem:[%s1062 + $0x60] sm:$0xff]
    %v1076 = vld [vmem:[%s1062 + $0x68] sm:$0xff]
    %v1077 = vld [vmem:[%s1062 + $0x70] sm:$0xff]
    %v1078 = vld [vmem:[%s1062 + $0x78] sm:$0xff]
    %v1079 = vld [vmem:[%s1062 + $0x80] sm:$0xff]
    %v1080 = vld [vmem:[%s1062 + $0x88] sm:$0xff]
    %v1081 = vld [vmem:[%s1062 + $0x90] sm:$0xff]
    %v1082 = vld [vmem:[%s1062 + $0x98] sm:$0xff]
    %v1083 = vld [vmem:[%s1062 + $0xa0] sm:$0xff]
    %v1084 = vld [vmem:[%s1062 + $0xa8] sm:$0xff]
    %v1085 = vld [vmem:[%s1062 + $0xb0] sm:$0xff]
    %v1086 = vld [vmem:[%s1062 + $0xb8] sm:$0xff]
    %v1087 = vld [vmem:[%s1062 + $0xc0] sm:$0xff]
    %v1088 = vld [vmem:[%s1062 + $0xc8] sm:$0xff]
    %v1089 = vld [vmem:[%s1062 + $0xd0] sm:$0xff]
    %v1090 = vld [vmem:[%s1062 + $0xd8] sm:$0xff]
    %v1091 = vld [vmem:[%s1062 + $0xe0] sm:$0xff]
    %v1092 = vld [vmem:[%s1062 + $0xe8] sm:$0xff]
    %v1093 = vld [vmem:[%s1062 + $0xf0] sm:$0xff]
    %v1094 = vld [vmem:[%s1062 + $0xf8] sm:$0xff]
    %v1095 = vld [vmem:[%s1062 + $0x100] sm:$0xff]
    %v1096 = vld [vmem:[%s1062 + $0x108] sm:$0xff]
    %v1097 = vld [vmem:[%s1062 + $0x110] sm:$0xff]
    %v1098 = vld [vmem:[%s1062 + $0x118] sm:$0xff]
    %v1099 = vld [vmem:[%s1062 + $0x120] sm:$0xff]
    %v1100 = vld [vmem:[%s1062 + $0x128] sm:$0xff]
    %v1101 = vld [vmem:[%s1062 + $0x130] sm:$0xff]
    %v1102 = vld [vmem:[%s1062 + $0x138] sm:$0xff]
    %v1103 = vld [vmem:[%s1062 + $0x140] sm:$0xff]
    %v1104 = vld [vmem:[%s1062 + $0x148] sm:$0xff]
    %v1105 = vld [vmem:[%s1062 + $0x150] sm:$0xff]
    %v1106 = vld [vmem:[%s1062 + $0x158] sm:$0xff]
    %v1107 = vld [vmem:[%s1062 + $0x160] sm:$0xff]
    %v1108 = vld [vmem:[%s1062 + $0x168] sm:$0xff]
    %v1109 = vld [vmem:[%s1062 + $0x170] sm:$0xff]
    %v1110 = vld [vmem:[%s1062 + $0x178] sm:$0xff]
    %s1111 = scalar_lea.vmem [#allocation8], 24
    %v1112 = vld [vmem:[%s1111] sm:$0xff]
    %v1113 = vld [vmem:[%s1111 + $0x8] sm:$0xf]
    %v1114 = vld [vmem:[%s1111 + $0xc] sm:$0xff]
    %v1115 = vld [vmem:[%s1111 + $0x14] sm:$0xf]
    %v1116 = vld [vmem:[%s1111 + $0x18] sm:$0xff]
    %v1117 = vld [vmem:[%s1111 + $0x20] sm:$0xf]
    %v1118 = vld [vmem:[%s1111 + $0x24] sm:$0xff]
    %v1119 = vld [vmem:[%s1111 + $0x2c] sm:$0xf]
    %v1128 = vunpack.c.l.b16 %v1112
    %v1129 = vunpack.c.h.b16 %v1112
    %v1130 = vunpack.c.l.b16 %v1113
    %v1131 = vunpack.c.l.b16 %v1114
    %v1132 = vunpack.c.h.b16 %v1114
    %v1133 = vunpack.c.l.b16 %v1115
    %v1134 = vunpack.c.l.b16 %v1116
    %v1135 = vunpack.c.h.b16 %v1116
    %v1136 = vunpack.c.l.b16 %v1117
    %v1137 = vunpack.c.l.b16 %v1118
    %v1138 = vunpack.c.h.b16 %v1118
    %v1139 = vunpack.c.l.b16 %v1119
    %v1140 = vpack.c.b16 %v1131, %v1128
    %v1141 = vpack.c.b16 %v1132, %v1129
    %v1142 = vpack.c.b16 %v1133, %v1130
    %v1143 = vpack.c.b16 %v1137, %v1134
    %v1144 = vpack.c.b16 %v1138, %v1135
    %v1145 = vpack.c.b16 %v1139, %v1136
    %v1200 = vunpack.c.l.b16 %v1063
    %v1201 = vunpack.c.h.b16 %v1063
    %v1202 = vunpack.c.l.b16 %v1064
    %v1203 = vunpack.c.h.b16 %v1064
    %v1204 = vunpack.c.l.b16 %v1065
    %v1205 = vunpack.c.h.b16 %v1065
    %v1206 = vunpack.c.l.b16 %v1066
    %v1207 = vunpack.c.h.b16 %v1066
    %v1208 = vunpack.c.l.b16 %v1067
    %v1209 = vunpack.c.h.b16 %v1067
    %v1210 = vunpack.c.l.b16 %v1068
    %v1211 = vunpack.c.h.b16 %v1068
    %v1212 = vunpack.c.l.b16 %v1069
    %v1213 = vunpack.c.h.b16 %v1069
    %v1214 = vunpack.c.l.b16 %v1070
    %v1215 = vunpack.c.h.b16 %v1070
    %v1216 = vunpack.c.l.b16 %v1071
    %v1217 = vunpack.c.h.b16 %v1071
    %v1218 = vunpack.c.l.b16 %v1072
    %v1219 = vunpack.c.h.b16 %v1072
    %v1220 = vunpack.c.l.b16 %v1073
    %v1221 = vunpack.c.h.b16 %v1073
    %v1222 = vunpack.c.l.b16 %v1074
    %v1223 = vunpack.c.h.b16 %v1074
    %v1224 = vunpack.c.l.b16 %v1075
    %v1225 = vunpack.c.h.b16 %v1075
    %v1226 = vunpack.c.l.b16 %v1076
    %v1227 = vunpack.c.h.b16 %v1076
    %v1228 = vunpack.c.l.b16 %v1077
    %v1229 = vunpack.c.h.b16 %v1077
    %v1230 = vunpack.c.l.b16 %v1078
    %v1231 = vunpack.c.h.b16 %v1078
    %v1232 = vunpack.c.l.b16 %v1079
    %v1233 = vunpack.c.h.b16 %v1079
    %v1234 = vunpack.c.l.b16 %v1080
    %v1235 = vunpack.c.h.b16 %v1080
    %v1236 = vunpack.c.l.b16 %v1081
    %v1237 = vunpack.c.h.b16 %v1081
    %v1238 = vunpack.c.l.b16 %v1082
    %v1239 = vunpack.c.h.b16 %v1082
    %v1240 = vunpack.c.l.b16 %v1083
    %v1241 = vunpack.c.h.b16 %v1083
    %v1242 = vunpack.c.l.b16 %v1084
    %v1243 = vunpack.c.h.b16 %v1084
    %v1244 = vunpack.c.l.b16 %v1085
    %v1245 = vunpack.c.h.b16 %v1085
    %v1246 = vunpack.c.l.b16 %v1086
    %v1247 = vunpack.c.h.b16 %v1086
    %v1248 = vunpack.c.l.b16 %v1087
    %v1249 = vunpack.c.h.b16 %v1087
    %v1250 = vunpack.c.l.b16 %v1088
    %v1251 = vunpack.c.h.b16 %v1088
    %v1252 = vunpack.c.l.b16 %v1089
    %v1253 = vunpack.c.h.b16 %v1089
    %v1254 = vunpack.c.l.b16 %v1090
    %v1255 = vunpack.c.h.b16 %v1090
    %v1256 = vunpack.c.l.b16 %v1091
    %v1257 = vunpack.c.h.b16 %v1091
    %v1258 = vunpack.c.l.b16 %v1092
    %v1259 = vunpack.c.h.b16 %v1092
    %v1260 = vunpack.c.l.b16 %v1093
    %v1261 = vunpack.c.h.b16 %v1093
    %v1262 = vunpack.c.l.b16 %v1094
    %v1263 = vunpack.c.h.b16 %v1094
    %v1264 = vunpack.c.l.b16 %v1095
    %v1265 = vunpack.c.h.b16 %v1095
    %v1266 = vunpack.c.l.b16 %v1096
    %v1267 = vunpack.c.h.b16 %v1096
    %v1268 = vunpack.c.l.b16 %v1097
    %v1269 = vunpack.c.h.b16 %v1097
    %v1270 = vunpack.c.l.b16 %v1098
    %v1271 = vunpack.c.h.b16 %v1098
    %v1272 = vunpack.c.l.b16 %v1099
    %v1273 = vunpack.c.h.b16 %v1099
    %v1274 = vunpack.c.l.b16 %v1100
    %v1275 = vunpack.c.h.b16 %v1100
    %v1276 = vunpack.c.l.b16 %v1101
    %v1277 = vunpack.c.h.b16 %v1101
    %v1278 = vunpack.c.l.b16 %v1102
    %v1279 = vunpack.c.h.b16 %v1102
    %v1280 = vunpack.c.l.b16 %v1103
    %v1281 = vunpack.c.h.b16 %v1103
    %v1282 = vunpack.c.l.b16 %v1104
    %v1283 = vunpack.c.h.b16 %v1104
    %v1284 = vunpack.c.l.b16 %v1105
    %v1285 = vunpack.c.h.b16 %v1105
    %v1286 = vunpack.c.l.b16 %v1106
    %v1287 = vunpack.c.h.b16 %v1106
    %v1288 = vunpack.c.l.b16 %v1107
    %v1289 = vunpack.c.h.b16 %v1107
    %v1290 = vunpack.c.l.b16 %v1108
    %v1291 = vunpack.c.h.b16 %v1108
    %v1292 = vunpack.c.l.b16 %v1109
    %v1293 = vunpack.c.h.b16 %v1109
    %v1294 = vunpack.c.l.b16 %v1110
    %v1295 = vunpack.c.h.b16 %v1110
    %v1296 = vpack.c.b16 %v1202, %v1200
    %v1297 = vpack.c.b16 %v1203, %v1201
    %v1298 = vpack.c.b16 %v1206, %v1204
    %v1299 = vpack.c.b16 %v1207, %v1205
    %v1300 = vpack.c.b16 %v1210, %v1208
    %v1301 = vpack.c.b16 %v1211, %v1209
    %v1302 = vpack.c.b16 %v1214, %v1212
    %v1303 = vpack.c.b16 %v1215, %v1213
    %v1304 = vpack.c.b16 %v1218, %v1216
    %v1305 = vpack.c.b16 %v1219, %v1217
    %v1306 = vpack.c.b16 %v1222, %v1220
    %v1307 = vpack.c.b16 %v1223, %v1221
    %v1308 = vpack.c.b16 %v1226, %v1224
    %v1309 = vpack.c.b16 %v1227, %v1225
    %v1310 = vpack.c.b16 %v1230, %v1228
    %v1311 = vpack.c.b16 %v1231, %v1229
    %v1312 = vpack.c.b16 %v1234, %v1232
    %v1313 = vpack.c.b16 %v1235, %v1233
    %v1314 = vpack.c.b16 %v1238, %v1236
    %v1315 = vpack.c.b16 %v1239, %v1237
    %v1316 = vpack.c.b16 %v1242, %v1240
    %v1317 = vpack.c.b16 %v1243, %v1241
    %v1318 = vpack.c.b16 %v1246, %v1244
    %v1319 = vpack.c.b16 %v1247, %v1245
    %v1320 = vpack.c.b16 %v1250, %v1248
    %v1321 = vpack.c.b16 %v1251, %v1249
    %v1322 = vpack.c.b16 %v1254, %v1252
    %v1323 = vpack.c.b16 %v1255, %v1253
    %v1324 = vpack.c.b16 %v1258, %v1256
    %v1325 = vpack.c.b16 %v1259, %v1257
    %v1326 = vpack.c.b16 %v1262, %v1260
    %v1327 = vpack.c.b16 %v1263, %v1261
    %v1328 = vpack.c.b16 %v1266, %v1264
    %v1329 = vpack.c.b16 %v1267, %v1265
    %v1330 = vpack.c.b16 %v1270, %v1268
    %v1331 = vpack.c.b16 %v1271, %v1269
    %v1332 = vpack.c.b16 %v1274, %v1272
    %v1333 = vpack.c.b16 %v1275, %v1273
    %v1334 = vpack.c.b16 %v1278, %v1276
    %v1335 = vpack.c.b16 %v1279, %v1277
    %v1336 = vpack.c.b16 %v1282, %v1280
    %v1337 = vpack.c.b16 %v1283, %v1281
    %v1338 = vpack.c.b16 %v1286, %v1284
    %v1339 = vpack.c.b16 %v1287, %v1285
    %v1340 = vpack.c.b16 %v1290, %v1288
    %v1341 = vpack.c.b16 %v1291, %v1289
    %v1342 = vpack.c.b16 %v1294, %v1292
    %v1343 = vpack.c.b16 %v1295, %v1293
    %1392 = vmatprep.subr.bf16.mxu0 %v1297
    %1393 = vmatpush1.bf16.msra.mxu0 %v1296
    %1394 = vmatprep.subr.bf16.mxu0 %v1299
    %1395 = vmatpush1.bf16.msra.mxu0 %v1298
    %1396 = vmatprep.subr.bf16.mxu0 %v1301
    %1397 = vmatpush1.bf16.msra.mxu0 %v1300
    %1398 = vmatprep.subr.bf16.mxu0 %v1303
    %1399 = vmatpush1.bf16.msra.mxu0 %v1302
    %1400 = vmatprep.subr.bf16.mxu0 %v1305
    %1401 = vmatpush1.bf16.msra.mxu0 %v1304
    %1402 = vmatprep.subr.bf16.mxu0 %v1307
    %1403 = vmatpush1.bf16.msra.mxu0 %v1306
    %1404 = vmatprep.subr.bf16.mxu0 %v1309
    %1405 = vmatpush1.bf16.msra.mxu0 %v1308
    %1406 = vmatprep.subr.bf16.mxu0 %v1311
    %1407 = vmatpush1.bf16.msra.mxu0 %v1310
    %1408 = vmatprep.subr.bf16.mxu0 %v1313
    %1409 = vmatpush1.bf16.msra.mxu0 %v1312
    %1410 = vmatprep.subr.bf16.mxu0 %v1315
    %1411 = vmatpush1.bf16.msra.mxu0 %v1314
    %1412 = vmatprep.subr.bf16.mxu0 %v1317
    %1413 = vmatpush1.bf16.msra.mxu0 %v1316
    %1414 = vmatprep.subr.bf16.mxu0 %v1319
    %1415 = vmatpush1.bf16.msra.mxu0 %v1318
    %1416 = vmatprep.subr.bf16.mxu0 %v1321
    %1417 = vmatpush1.bf16.msra.mxu0 %v1320
    %1418 = vmatprep.subr.bf16.mxu0 %v1323
    %1419 = vmatpush1.bf16.msra.mxu0 %v1322
    %1420 = vmatprep.subr.bf16.mxu0 %v1325
    %1421 = vmatpush1.bf16.msra.mxu0 %v1324
    %1422 = vmatprep.subr.bf16.mxu0 %v1327
    %1423 = vmatpush1.bf16.msra.mxu0 %v1326
    %1424 = vmatprep.mubr.bf16.mxu0 %v1141
    %1425 = vmatmul.mubr.bf16.gmra.mrb[0].mxu0 %v1140
    %v1426 = vpop.f32.mrb[0].mxu0
    %v1427 = vadd.f32 0.0, %v1426
    %v1428 = vpop.f32.mrb[0].mxu0
    %v1429 = vadd.f32 0.0, %v1428
    %v1430 = vpop.f32.mrb[0].mxu0
    %v1431 = vadd.f32 0.0, %v1430
    %v1432 = vpop.f32.mrb[0].mxu0
    %v1433 = vadd.f32 0.0, %v1432
    %1434 = vmatprep.mubr.bf16.mxu0 %v1144
    %1435 = vmatmul.mubr.bf16.gmra.mrb[0].mxu0 %v1143
    %v1436 = vpop.f32.mrb[0].mxu0
    %v1437 = vadd.f32 0.0, %v1436
    %v1438 = vpop.f32.mrb[0].mxu0
    %v1439 = vadd.f32 0.0, %v1438
    %v1440 = vpop.f32.mrb[0].mxu0
    %v1441 = vadd.f32 0.0, %v1440
    %v1442 = vpop.f32.mrb[0].mxu0
    %v1443 = vadd.f32 0.0, %v1442
    %1444 = vdwg.mxu0
    %1445 = vmatprep.subr.bf16.mxu0 %v1329
    %1446 = vmatpush1.bf16.msra.mxu0 %v1328
    %1447 = vmatprep.subr.bf16.mxu0 %v1331
    %1448 = vmatpush1.bf16.msra.mxu0 %v1330
    %1449 = vmatprep.subr.bf16.mxu0 %v1333
    %1450 = vmatpush1.bf16.msra.mxu0 %v1332
    %1451 = vmatprep.subr.bf16.mxu0 %v1335
    %1452 = vmatpush1.bf16.msra.mxu0 %v1334
    %1453 = vmatprep.subr.bf16.mxu0 %v1337
    %1454 = vmatpush1.bf16.msra.mxu0 %v1336
    %1455 = vmatprep.subr.bf16.mxu0 %v1339
    %1456 = vmatpush1.bf16.msra.mxu0 %v1338
    %1457 = vmatprep.subr.bf16.mxu0 %v1341
    %1458 = vmatpush1.bf16.msra.mxu0 %v1340
    %1459 = vmatprep.subr.bf16.mxu0 %v1343
    %1460 = vmatpush1.bf16.msra.mxu0 %v1342
    %1461 = vmatprep.subr.bf16.mxu0 0
    %1462 = vmatpush1.bf16.msra.mxu0 0
    %1463 = vmatprep.subr.bf16.mxu0 0
    %1464 = vmatpush1.bf16.msra.mxu0 0
    %1465 = vmatprep.subr.bf16.mxu0 0
    %1466 = vmatpush1.bf16.msra.mxu0 0
    %1467 = vmatprep.subr.bf16.mxu0 0
    %1468 = vmatpush1.bf16.msra.mxu0 0
    %1469 = vmatprep.subr.bf16.mxu0 0
    %1470 = vmatpush1.bf16.msra.mxu0 0
    %1471 = vmatprep.subr.bf16.mxu0 0
    %1472 = vmatpush1.bf16.msra.mxu0 0
    %1473 = vmatprep.subr.bf16.mxu0 0
    %1474 = vmatpush1.bf16.msra.mxu0 0
    %1475 = vmatprep.subr.bf16.mxu0 0
    %1476 = vmatpush1.bf16.msra.mxu0 0
    %1477 = vmatprep.mubr.bf16.mxu0 0
    %1478 = vmatmul.mubr.bf16.gmra.mrb[0].mxu0 %v1142
    %v1479 = vpop.f32.mrb[0].mxu0
    %v1480 = vadd.f32 %v1427, %v1479
    %v1481 = vpop.f32.mrb[0].mxu0
    %v1482 = vadd.f32 %v1429, %v1481
    %v1483 = vpop.f32.mrb[0].mxu0
    %v1484 = vadd.f32 %v1431, %v1483
    %v1485 = vpop.f32.mrb[0].mxu0
    %v1486 = vadd.f32 %v1433, %v1485
    %1487 = vmatprep.mubr.bf16.mxu0 0
    %1488 = vmatmul.mubr.bf16.gmra.mrb[0].mxu0 %v1145
    %v1489 = vpop.f32.mrb[0].mxu0
    %v1490 = vadd.f32 %v1437, %v1489
    %v1491 = vpop.f32.mrb[0].mxu0
    %v1492 = vadd.f32 %v1439, %v1491
    %v1493 = vpop.f32.mrb[0].mxu0
    %v1494 = vadd.f32 %v1441, %v1493
    %v1495 = vpop.f32.mrb[0].mxu0
    %v1496 = vadd.f32 %v1443, %v1495
    %1497 = vdwg.mxu0
    %v1506 = vunpack.c.l.b16 %v1045
    %v1507 = vunpack.c.h.b16 %v1045
    %v1508 = vunpack.c.l.b16 %v1046
    %v1509 = vunpack.c.l.b16 %v1047
    %v1510 = vunpack.c.h.b16 %v1047
    %v1511 = vunpack.c.l.b16 %v1048
    %v1512 = vunpack.c.l.b16 %v1049
    %v1513 = vunpack.c.h.b16 %v1049
    %v1514 = vunpack.c.l.b16 %v1050
    %v1515 = vunpack.c.l.b16 %v1051
    %v1516 = vunpack.c.h.b16 %v1051
    %v1517 = vunpack.c.l.b16 %v1052
    %v1518 = vpack.c.b16 %v1509, %v1506
    %v1519 = vpack.c.b16 %v1510, %v1507
    %v1520 = vpack.c.b16 %v1511, %v1508
    %v1521 = vpack.c.b16 %v1515, %v1512
    %v1522 = vpack.c.b16 %v1516, %v1513
    %v1523 = vpack.c.b16 %v1517, %v1514
    %v1578 = vunpack.c.l.b16 %v997
    %v1579 = vunpack.c.h.b16 %v997
    %v1580 = vunpack.c.l.b16 %v998
    %v1581 = vunpack.c.h.b16 %v998
    %v1582 = vunpack.c.l.b16 %v999
    %v1583 = vunpack.c.h.b16 %v999
    %v1584 = vunpack.c.l.b16 %v1000
    %v1585 = vunpack.c.h.b16 %v1000
    %v1586 = vunpack.c.l.b16 %v1001
    %v1587 = vunpack.c.h.b16 %v1001
    %v1588 = vunpack.c.l.b16 %v1002
    %v1589 = vunpack.c.h.b16 %v1002
    %v1590 = vunpack.c.l.b16 %v1003
    %v1591 = vunpack.c.h.b16 %v1003
    %v1592 = vunpack.c.l.b16 %v1004
    %v1593 = vunpack.c.h.b16 %v1004
    %v1594 = vunpack.c.l.b16 %v1005
    %v1595 = vunpack.c.h.b16 %v1005
    %v1596 = vunpack.c.l.b16 %v1006
    %v1597 = vunpack.c.h.b16 %v1006
    %v1598 = vunpack.c.l.b16 %v1007
    %v1599 = vunpack.c.h.b16 %v1007
    %v1600 = vunpack.c.l.b16 %v1008
    %v1601 = vunpack.c.h.b16 %v1008
    %v1602 = vunpack.c.l.b16 %v1009
    %v1603 = vunpack.c.h.b16 %v1009
    %v1604 = vunpack.c.l.b16 %v1010
    %v1605 = vunpack.c.h.b16 %v1010
    %v1606 = vunpack.c.l.b16 %v1011
    %v1607 = vunpack.c.h.b16 %v1011
    %v1608 = vunpack.c.l.b16 %v1012
    %v1609 = vunpack.c.h.b16 %v1012
    %v1610 = vunpack.c.l.b16 %v1013
    %v1611 = vunpack.c.h.b16 %v1013
    %v1612 = vunpack.c.l.b16 %v1014
    %v1613 = vunpack.c.h.b16 %v1014
    %v1614 = vunpack.c.l.b16 %v1015
    %v1615 = vunpack.c.h.b16 %v1015
    %v1616 = vunpack.c.l.b16 %v1016
    %v1617 = vunpack.c.h.b16 %v1016
    %v1618 = vunpack.c.l.b16 %v1017
    %v1619 = vunpack.c.h.b16 %v1017
    %v1620 = vunpack.c.l.b16 %v1018
    %v1621 = vunpack.c.h.b16 %v1018
    %v1622 = vunpack.c.l.b16 %v1019
    %v1623 = vunpack.c.h.b16 %v1019
    %v1624 = vunpack.c.l.b16 %v1020
    %v1625 = vunpack.c.h.b16 %v1020
    %v1626 = vunpack.c.l.b16 %v1021
    %v1627 = vunpack.c.h.b16 %v1021
    %v1628 = vunpack.c.l.b16 %v1022
    %v1629 = vunpack.c.h.b16 %v1022
    %v1630 = vunpack.c.l.b16 %v1023
    %v1631 = vunpack.c.h.b16 %v1023
    %v1632 = vunpack.c.l.b16 %v1024
    %v1633 = vunpack.c.h.b16 %v1024
    %v1634 = vunpack.c.l.b16 %v1025
    %v1635 = vunpack.c.h.b16 %v1025
    %v1636 = vunpack.c.l.b16 %v1026
    %v1637 = vunpack.c.h.b16 %v1026
    %v1638 = vunpack.c.l.b16 %v1027
    %v1639 = vunpack.c.h.b16 %v1027
    %v1640 = vunpack.c.l.b16 %v1028
    %v1641 = vunpack.c.h.b16 %v1028
    %v1642 = vunpack.c.l.b16 %v1029
    %v1643 = vunpack.c.h.b16 %v1029
    %v1644 = vunpack.c.l.b16 %v1030
    %v1645 = vunpack.c.h.b16 %v1030
    %v1646 = vunpack.c.l.b16 %v1031
    %v1647 = vunpack.c.h.b16 %v1031
    %v1648 = vunpack.c.l.b16 %v1032
    %v1649 = vunpack.c.h.b16 %v1032
    %v1650 = vunpack.c.l.b16 %v1033
    %v1651 = vunpack.c.h.b16 %v1033
    %v1652 = vunpack.c.l.b16 %v1034
    %v1653 = vunpack.c.h.b16 %v1034
    %v1654 = vunpack.c.l.b16 %v1035
    %v1655 = vunpack.c.h.b16 %v1035
    %v1656 = vunpack.c.l.b16 %v1036
    %v1657 = vunpack.c.h.b16 %v1036
    %v1658 = vunpack.c.l.b16 %v1037
    %v1659 = vunpack.c.h.b16 %v1037
    %v1660 = vunpack.c.l.b16 %v1038
    %v1661 = vunpack.c.h.b16 %v1038
    %v1662 = vunpack.c.l.b16 %v1039
    %v1663 = vunpack.c.h.b16 %v1039
    %v1664 = vunpack.c.l.b16 %v1040
    %v1665 = vunpack.c.h.b16 %v1040
    %v1666 = vunpack.c.l.b16 %v1041
    %v1667 = vunpack.c.h.b16 %v1041
    %v1668 = vunpack.c.l.b16 %v1042
    %v1669 = vunpack.c.h.b16 %v1042
    %v1670 = vunpack.c.l.b16 %v1043
    %v1671 = vunpack.c.h.b16 %v1043
    %v1672 = vunpack.c.l.b16 %v1044
    %v1673 = vunpack.c.h.b16 %v1044
    %v1674 = vpack.c.b16 %v1580, %v1578
    %v1675 = vpack.c.b16 %v1581, %v1579
    %v1676 = vpack.c.b16 %v1584, %v1582
    %v1677 = vpack.c.b16 %v1585, %v1583
    %v1678 = vpack.c.b16 %v1588, %v1586
    %v1679 = vpack.c.b16 %v1589, %v1587
    %v1680 = vpack.c.b16 %v1592, %v1590
    %v1681 = vpack.c.b16 %v1593, %v1591
    %v1682 = vpack.c.b16 %v1596, %v1594
    %v1683 = vpack.c.b16 %v1597, %v1595
    %v1684 = vpack.c.b16 %v1600, %v1598
    %v1685 = vpack.c.b16 %v1601, %v1599
    %v1686 = vpack.c.b16 %v1604, %v1602
    %v1687 = vpack.c.b16 %v1605, %v1603
    %v1688 = vpack.c.b16 %v1608, %v1606
    %v1689 = vpack.c.b16 %v1609, %v1607
    %v1690 = vpack.c.b16 %v1612, %v1610
    %v1691 = vpack.c.b16 %v1613, %v1611
    %v1692 = vpack.c.b16 %v1616, %v1614
    %v1693 = vpack.c.b16 %v1617, %v1615
    %v1694 = vpack.c.b16 %v1620, %v1618
    %v1695 = vpack.c.b16 %v1621, %v1619
    %v1696 = vpack.c.b16 %v1624, %v1622
    %v1697 = vpack.c.b16 %v1625, %v1623
    %v1698 = vpack.c.b16 %v1628, %v1626
    %v1699 = vpack.c.b16 %v1629, %v1627
    %v1700 = vpack.c.b16 %v1632, %v1630
    %v1701 = vpack.c.b16 %v1633, %v1631
    %v1702 = vpack.c.b16 %v1636, %v1634
    %v1703 = vpack.c.b16 %v1637, %v1635
    %v1704 = vpack.c.b16 %v1640, %v1638
    %v1705 = vpack.c.b16 %v1641, %v1639
    %v1706 = vpack.c.b16 %v1644, %v1642
    %v1707 = vpack.c.b16 %v1645, %v1643
    %v1708 = vpack.c.b16 %v1648, %v1646
    %v1709 = vpack.c.b16 %v1649, %v1647
    %v1710 = vpack.c.b16 %v1652, %v1650
    %v1711 = vpack.c.b16 %v1653, %v1651
    %v1712 = vpack.c.b16 %v1656, %v1654
    %v1713 = vpack.c.b16 %v1657, %v1655
    %v1714 = vpack.c.b16 %v1660, %v1658
    %v1715 = vpack.c.b16 %v1661, %v1659
    %v1716 = vpack.c.b16 %v1664, %v1662
    %v1717 = vpack.c.b16 %v1665, %v1663
    %v1718 = vpack.c.b16 %v1668, %v1666
    %v1719 = vpack.c.b16 %v1669, %v1667
    %v1720 = vpack.c.b16 %v1672, %v1670
    %v1721 = vpack.c.b16 %v1673, %v1671
    %1770 = vmatprep.subr.bf16.mxu0 %v1675
    %1771 = vmatpush1.bf16.msra.mxu0 %v1674
    %1772 = vmatprep.subr.bf16.mxu0 %v1677
    %1773 = vmatpush1.bf16.msra.mxu0 %v1676
    %1774 = vmatprep.subr.bf16.mxu0 %v1679
    %1775 = vmatpush1.bf16.msra.mxu0 %v1678
    %1776 = vmatprep.subr.bf16.mxu0 %v1681
    %1777 = vmatpush1.bf16.msra.mxu0 %v1680
    %1778 = vmatprep.subr.bf16.mxu0 %v1683
    %1779 = vmatpush1.bf16.msra.mxu0 %v1682
    %1780 = vmatprep.subr.bf16.mxu0 %v1685
    %1781 = vmatpush1.bf16.msra.mxu0 %v1684
    %1782 = vmatprep.subr.bf16.mxu0 %v1687
    %1783 = vmatpush1.bf16.msra.mxu0 %v1686
    %1784 = vmatprep.subr.bf16.mxu0 %v1689
    %1785 = vmatpush1.bf16.msra.mxu0 %v1688
    %1786 = vmatprep.subr.bf16.mxu0 %v1691
    %1787 = vmatpush1.bf16.msra.mxu0 %v1690
    %1788 = vmatprep.subr.bf16.mxu0 %v1693
    %1789 = vmatpush1.bf16.msra.mxu0 %v1692
    %1790 = vmatprep.subr.bf16.mxu0 %v1695
    %1791 = vmatpush1.bf16.msra.mxu0 %v1694
    %1792 = vmatprep.subr.bf16.mxu0 %v1697
    %1793 = vmatpush1.bf16.msra.mxu0 %v1696
    %1794 = vmatprep.subr.bf16.mxu0 %v1699
    %1795 = vmatpush1.bf16.msra.mxu0 %v1698
    %1796 = vmatprep.subr.bf16.mxu0 %v1701
    %1797 = vmatpush1.bf16.msra.mxu0 %v1700
    %1798 = vmatprep.subr.bf16.mxu0 %v1703
    %1799 = vmatpush1.bf16.msra.mxu0 %v1702
    %1800 = vmatprep.subr.bf16.mxu0 %v1705
    %1801 = vmatpush1.bf16.msra.mxu0 %v1704
    %1802 = vmatprep.mubr.bf16.mxu0 %v1519
    %1803 = vmatmul.mubr.bf16.gmra.mrb[0].mxu0 %v1518
    %v1804 = vpop.f32.mrb[0].mxu0
    %v1805 = vadd.f32 %v1480, %v1804
    %v1806 = vpop.f32.mrb[0].mxu0
    %v1807 = vadd.f32 %v1482, %v1806
    %v1808 = vpop.f32.mrb[0].mxu0
    %v1809 = vadd.f32 %v1484, %v1808
    %v1810 = vpop.f32.mrb[0].mxu0
    %v1811 = vadd.f32 %v1486, %v1810
    %1812 = vmatprep.mubr.bf16.mxu0 %v1522
    %1813 = vmatmul.mubr.bf16.gmra.mrb[0].mxu0 %v1521
    %v1814 = vpop.f32.mrb[0].mxu0
    %v1815 = vadd.f32 %v1490, %v1814
    %v1816 = vpop.f32.mrb[0].mxu0
    %v1817 = vadd.f32 %v1492, %v1816
    %v1818 = vpop.f32.mrb[0].mxu0
    %v1819 = vadd.f32 %v1494, %v1818
    %v1820 = vpop.f32.mrb[0].mxu0
    %v1821 = vadd.f32 %v1496, %v1820
    %1822 = vdwg.mxu0
    %1823 = vmatprep.subr.bf16.mxu0 %v1707
    %1824 = vmatpush1.bf16.msra.mxu0 %v1706
    %1825 = vmatprep.subr.bf16.mxu0 %v1709
    %1826 = vmatpush1.bf16.msra.mxu0 %v1708
    %1827 = vmatprep.subr.bf16.mxu0 %v1711
    %1828 = vmatpush1.bf16.msra.mxu0 %v1710
    %1829 = vmatprep.subr.bf16.mxu0 %v1713
    %1830 = vmatpush1.bf16.msra.mxu0 %v1712
    %1831 = vmatprep.subr.bf16.mxu0 %v1715
    %1832 = vmatpush1.bf16.msra.mxu0 %v1714
    %1833 = vmatprep.subr.bf16.mxu0 %v1717
    %1834 = vmatpush1.bf16.msra.mxu0 %v1716
    %1835 = vmatprep.subr.bf16.mxu0 %v1719
    %1836 = vmatpush1.bf16.msra.mxu0 %v1718
    %1837 = vmatprep.subr.bf16.mxu0 %v1721
    %1838 = vmatpush1.bf16.msra.mxu0 %v1720
    %1839 = vmatprep.subr.bf16.mxu0 0
    %1840 = vmatpush1.bf16.msra.mxu0 0
    %1841 = vmatprep.subr.bf16.mxu0 0
    %1842 = vmatpush1.bf16.msra.mxu0 0
    %1843 = vmatprep.subr.bf16.mxu0 0
    %1844 = vmatpush1.bf16.msra.mxu0 0
    %1845 = vmatprep.subr.bf16.mxu0 0
    %1846 = vmatpush1.bf16.msra.mxu0 0
    %1847 = vmatprep.subr.bf16.mxu0 0
    %1848 = vmatpush1.bf16.msra.mxu0 0
    %1849 = vmatprep.subr.bf16.mxu0 0
    %1850 = vmatpush1.bf16.msra.mxu0 0
    %1851 = vmatprep.subr.bf16.mxu0 0
    %1852 = vmatpush1.bf16.msra.mxu0 0
    %1853 = vmatprep.subr.bf16.mxu0 0
    %1854 = vmatpush1.bf16.msra.mxu0 0
    %1855 = vmatprep.mubr.bf16.mxu0 0
    %1856 = vmatmul.mubr.bf16.gmra.mrb[0].mxu0 %v1520
    %v1857 = vpop.f32.mrb[0].mxu0
    %v1858 = vadd.f32 %v1805, %v1857
    %v1859 = vpop.f32.mrb[0].mxu0
    %v1860 = vadd.f32 %v1807, %v1859
    %v1861 = vpop.f32.mrb[0].mxu0
    %v1862 = vadd.f32 %v1809, %v1861
    %v1863 = vpop.f32.mrb[0].mxu0
    %v1864 = vadd.f32 %v1811, %v1863
    %1865 = vmatprep.mubr.bf16.mxu0 0
    %1866 = vmatmul.mubr.bf16.gmra.mrb[0].mxu0 %v1523
    %v1867 = vpop.f32.mrb[0].mxu0
    %v1868 = vadd.f32 %v1815, %v1867
    %v1869 = vpop.f32.mrb[0].mxu0
    %v1870 = vadd.f32 %v1817, %v1869
    %v1871 = vpop.f32.mrb[0].mxu0
    %v1872 = vadd.f32 %v1819, %v1871
    %v1873 = vpop.f32.mrb[0].mxu0
    %v1874 = vadd.f32 %v1821, %v1873
    %1875 = vdwg.mxu0
    %s1876 = scalar_lea.vmem [#allocation8], 120
    %v1877 = vld [vmem:[%s1876] sm:$0xff]
    %v1878 = vld [vmem:[%s1876 + $0x8] sm:$0xf]
    %v1879 = vld [vmem:[%s1876 + $0xc] sm:$0xff]
    %v1880 = vld [vmem:[%s1876 + $0x14] sm:$0xf]
    %v1881 = vld [vmem:[%s1876 + $0x18] sm:$0xff]
    %v1882 = vld [vmem:[%s1876 + $0x20] sm:$0xf]
    %v1883 = vld [vmem:[%s1876 + $0x24] sm:$0xff]
    %v1884 = vld [vmem:[%s1876 + $0x2c] sm:$0xf]
    %v1893 = vunpack.c.l.b16 %v1877
    %v1894 = vunpack.c.h.b16 %v1877
    %v1895 = vunpack.c.l.b16 %v1878
    %v1896 = vunpack.c.l.b16 %v1879
    %v1897 = vunpack.c.h.b16 %v1879
    %v1898 = vunpack.c.l.b16 %v1880
    %v1899 = vunpack.c.l.b16 %v1881
    %v1900 = vunpack.c.h.b16 %v1881
    %v1901 = vunpack.c.l.b16 %v1882
    %v1902 = vunpack.c.l.b16 %v1883
    %v1903 = vunpack.c.h.b16 %v1883
    %v1904 = vunpack.c.l.b16 %v1884
    %v1905 = vpack.c.b16 %v1896, %v1893
    %v1906 = vpack.c.b16 %v1897, %v1894
    %v1907 = vpack.c.b16 %v1898, %v1895
    %v1908 = vpack.c.b16 %v1902, %v1899
    %v1909 = vpack.c.b16 %v1903, %v1900
    %v1910 = vpack.c.b16 %v1904, %v1901
    %1917 = vmatprep.subr.bf16.mxu0 %v1297
    %1918 = vmatpush1.bf16.msra.mxu0 %v1296
    %1919 = vmatprep.subr.bf16.mxu0 %v1299
    %1920 = vmatpush1.bf16.msra.mxu0 %v1298
    %1921 = vmatprep.subr.bf16.mxu0 %v1301
    %1922 = vmatpush1.bf16.msra.mxu0 %v1300
    %1923 = vmatprep.subr.bf16.mxu0 %v1303
    %1924 = vmatpush1.bf16.msra.mxu0 %v1302
    %1925 = vmatprep.subr.bf16.mxu0 %v1305
    %1926 = vmatpush1.bf16.msra.mxu0 %v1304
    %1927 = vmatprep.subr.bf16.mxu0 %v1307
    %1928 = vmatpush1.bf16.msra.mxu0 %v1306
    %1929 = vmatprep.subr.bf16.mxu0 %v1309
    %1930 = vmatpush1.bf16.msra.mxu0 %v1308
    %1931 = vmatprep.subr.bf16.mxu0 %v1311
    %1932 = vmatpush1.bf16.msra.mxu0 %v1310
    %1933 = vmatprep.subr.bf16.mxu0 %v1313
    %1934 = vmatpush1.bf16.msra.mxu0 %v1312
    %1935 = vmatprep.subr.bf16.mxu0 %v1315
    %1936 = vmatpush1.bf16.msra.mxu0 %v1314
    %1937 = vmatprep.subr.bf16.mxu0 %v1317
    %1938 = vmatpush1.bf16.msra.mxu0 %v1316
    %1939 = vmatprep.subr.bf16.mxu0 %v1319
    %1940 = vmatpush1.bf16.msra.mxu0 %v1318
    %1941 = vmatprep.subr.bf16.mxu0 %v1321
    %1942 = vmatpush1.bf16.msra.mxu0 %v1320
    %1943 = vmatprep.subr.bf16.mxu0 %v1323
    %1944 = vmatpush1.bf16.msra.mxu0 %v1322
    %1945 = vmatprep.subr.bf16.mxu0 %v1325
    %1946 = vmatpush1.bf16.msra.mxu0 %v1324
    %1947 = vmatprep.subr.bf16.mxu0 %v1327
    %1948 = vmatpush1.bf16.msra.mxu0 %v1326
    %1949 = vmatprep.mubr.bf16.mxu0 %v1906
    %1950 = vmatmul.mubr.bf16.gmra.mrb[0].mxu0 %v1905
    %v1951 = vpop.f32.mrb[0].mxu0
    %v1952 = vadd.f32 0.0, %v1951
    %v1953 = vpop.f32.mrb[0].mxu0
    %v1954 = vadd.f32 0.0, %v1953
    %v1955 = vpop.f32.mrb[0].mxu0
    %v1956 = vadd.f32 0.0, %v1955
    %v1957 = vpop.f32.mrb[0].mxu0
    %v1958 = vadd.f32 0.0, %v1957
    %1959 = vmatprep.mubr.bf16.mxu0 %v1909
    %1960 = vmatmul.mubr.bf16.gmra.mrb[0].mxu0 %v1908
    %v1961 = vpop.f32.mrb[0].mxu0
    %v1962 = vadd.f32 0.0, %v1961
    %v1963 = vpop.f32.mrb[0].mxu0
    %v1964 = vadd.f32 0.0, %v1963
    %v1965 = vpop.f32.mrb[0].mxu0
    %v1966 = vadd.f32 0.0, %v1965
    %v1967 = vpop.f32.mrb[0].mxu0
    %v1968 = vadd.f32 0.0, %v1967
    %1969 = vdwg.mxu0
    %1970 = vmatprep.subr.bf16.mxu0 %v1329
    %1971 = vmatpush1.bf16.msra.mxu0 %v1328
    %1972 = vmatprep.subr.bf16.mxu0 %v1331
    %1973 = vmatpush1.bf16.msra.mxu0 %v1330
    %1974 = vmatprep.subr.bf16.mxu0 %v1333
    %1975 = vmatpush1.bf16.msra.mxu0 %v1332
    %1976 = vmatprep.subr.bf16.mxu0 %v1335
    %1977 = vmatpush1.bf16.msra.mxu0 %v1334
    %1978 = vmatprep.subr.bf16.mxu0 %v1337
    %1979 = vmatpush1.bf16.msra.mxu0 %v1336
    %1980 = vmatprep.subr.bf16.mxu0 %v1339
    %1981 = vmatpush1.bf16.msra.mxu0 %v1338
    %1982 = vmatprep.subr.bf16.mxu0 %v1341
    %1983 = vmatpush1.bf16.msra.mxu0 %v1340
    %1984 = vmatprep.subr.bf16.mxu0 %v1343
    %1985 = vmatpush1.bf16.msra.mxu0 %v1342
    %1986 = vmatprep.subr.bf16.mxu0 0
    %1987 = vmatpush1.bf16.msra.mxu0 0
    %1988 = vmatprep.subr.bf16.mxu0 0
    %1989 = vmatpush1.bf16.msra.mxu0 0
    %1990 = vmatprep.subr.bf16.mxu0 0
    %1991 = vmatpush1.bf16.msra.mxu0 0
    %1992 = vmatprep.subr.bf16.mxu0 0
    %1993 = vmatpush1.bf16.msra.mxu0 0
    %1994 = vmatprep.subr.bf16.mxu0 0
    %1995 = vmatpush1.bf16.msra.mxu0 0
    %1996 = vmatprep.subr.bf16.mxu0 0
    %1997 = vmatpush1.bf16.msra.mxu0 0
    %1998 = vmatprep.subr.bf16.mxu0 0
    %1999 = vmatpush1.bf16.msra.mxu0 0
    %2000 = vmatprep.subr.bf16.mxu0 0
    %2001 = vmatpush1.bf16.msra.mxu0 0
    %2002 = vmatprep.mubr.bf16.mxu0 0
    %2003 = vmatmul.mubr.bf16.gmra.mrb[0].mxu0 %v1907
    %v2004 = vpop.f32.mrb[0].mxu0
    %v2005 = vadd.f32 %v1952, %v2004
    %v2006 = vpop.f32.mrb[0].mxu0
    %v2007 = vadd.f32 %v1954, %v2006
    %v2008 = vpop.f32.mrb[0].mxu0
    %v2009 = vadd.f32 %v1956, %v2008
    %v2010 = vpop.f32.mrb[0].mxu0
    %v2011 = vadd.f32 %v1958, %v2010
    %2012 = vmatprep.mubr.bf16.mxu0 0
    %2013 = vmatmul.mubr.bf16.gmra.mrb[0].mxu0 %v1910
    %v2014 = vpop.f32.mrb[0].mxu0
    %v2015 = vadd.f32 %v1962, %v2014
    %v2016 = vpop.f32.mrb[0].mxu0
    %v2017 = vadd.f32 %v1964, %v2016
    %v2018 = vpop.f32.mrb[0].mxu0
    %v2019 = vadd.f32 %v1966, %v2018
    %v2020 = vpop.f32.mrb[0].mxu0
    %v2021 = vadd.f32 %v1968, %v2020
    %2022 = vdwg.mxu0
    %v2031 = vunpack.c.l.b16 %v1054
    %v2032 = vunpack.c.h.b16 %v1054
    %v2033 = vunpack.c.l.b16 %v1055
    %v2034 = vunpack.c.l.b16 %v1056
    %v2035 = vunpack.c.h.b16 %v1056
    %v2036 = vunpack.c.l.b16 %v1057
    %v2037 = vunpack.c.l.b16 %v1058
    %v2038 = vunpack.c.h.b16 %v1058
    %v2039 = vunpack.c.l.b16 %v1059
    %v2040 = vunpack.c.l.b16 %v1060
    %v2041 = vunpack.c.h.b16 %v1060
    %v2042 = vunpack.c.l.b16 %v1061
    %v2043 = vpack.c.b16 %v2034, %v2031
    %v2044 = vpack.c.b16 %v2035, %v2032
    %v2045 = vpack.c.b16 %v2036, %v2033
    %v2046 = vpack.c.b16 %v2040, %v2037
    %v2047 = vpack.c.b16 %v2041, %v2038
    %v2048 = vpack.c.b16 %v2042, %v2039
    %2055 = vmatprep.subr.bf16.mxu0 %v1675
    %2056 = vmatpush1.bf16.msra.mxu0 %v1674
    %2057 = vmatprep.subr.bf16.mxu0 %v1677
    %2058 = vmatpush1.bf16.msra.mxu0 %v1676
    %2059 = vmatprep.subr.bf16.mxu0 %v1679
    %2060 = vmatpush1.bf16.msra.mxu0 %v1678
    %2061 = vmatprep.subr.bf16.mxu0 %v1681
    %2062 = vmatpush1.bf16.msra.mxu0 %v1680
    %2063 = vmatprep.subr.bf16.mxu0 %v1683
    %2064 = vmatpush1.bf16.msra.mxu0 %v1682
    %2065 = vmatprep.subr.bf16.mxu0 %v1685
    %2066 = vmatpush1.bf16.msra.mxu0 %v1684
    %2067 = vmatprep.subr.bf16.mxu0 %v1687
    %2068 = vmatpush1.bf16.msra.mxu0 %v1686
    %2069 = vmatprep.subr.bf16.mxu0 %v1689
    %2070 = vmatpush1.bf16.msra.mxu0 %v1688
    %2071 = vmatprep.subr.bf16.mxu0 %v1691
    %2072 = vmatpush1.bf16.msra.mxu0 %v1690
    %2073 = vmatprep.subr.bf16.mxu0 %v1693
    %2074 = vmatpush1.bf16.msra.mxu0 %v1692
    %2075 = vmatprep.subr.bf16.mxu0 %v1695
    %2076 = vmatpush1.bf16.msra.mxu0 %v1694
    %2077 = vmatprep.subr.bf16.mxu0 %v1697
    %2078 = vmatpush1.bf16.msra.mxu0 %v1696
    %2079 = vmatprep.subr.bf16.mxu0 %v1699
    %2080 = vmatpush1.bf16.msra.mxu0 %v1698
    %2081 = vmatprep.subr.bf16.mxu0 %v1701
    %2082 = vmatpush1.bf16.msra.mxu0 %v1700
    %2083 = vmatprep.subr.bf16.mxu0 %v1703
    %2084 = vmatpush1.bf16.msra.mxu0 %v1702
    %2085 = vmatprep.subr.bf16.mxu0 %v1705
    %2086 = vmatpush1.bf16.msra.mxu0 %v1704
    %2087 = vmatprep.mubr.bf16.mxu0 %v2044
    %2088 = vmatmul.mubr.bf16.gmra.mrb[0].mxu0 %v2043
    %v2089 = vpop.f32.mrb[0].mxu0
    %v2090 = vadd.f32 %v2005, %v2089
    %v2091 = vpop.f32.mrb[0].mxu0
    %v2092 = vadd.f32 %v2007, %v2091
    %v2093 = vpop.f32.mrb[0].mxu0
    %v2094 = vadd.f32 %v2009, %v2093
    %v2095 = vpop.f32.mrb[0].mxu0
    %v2096 = vadd.f32 %v2011, %v2095
    %2097 = vmatprep.mubr.bf16.mxu0 %v2047
    %2098 = vmatmul.mubr.bf16.gmra.mrb[0].mxu0 %v2046
    %v2099 = vpop.f32.mrb[0].mxu0
    %v2100 = vadd.f32 %v2015, %v2099
    %v2101 = vpop.f32.mrb[0].mxu0
    %v2102 = vadd.f32 %v2017, %v2101
    %v2103 = vpop.f32.mrb[0].mxu0
    %v2104 = vadd.f32 %v2019, %v2103
    %v2105 = vpop.f32.mrb[0].mxu0
    %v2106 = vadd.f32 %v2021, %v2105
    %2107 = vdwg.mxu0
    %2108 = vmatprep.subr.bf16.mxu0 %v1707
    %2109 = vmatpush1.bf16.msra.mxu0 %v1706
    %2110 = vmatprep.subr.bf16.mxu0 %v1709
    %2111 = vmatpush1.bf16.msra.mxu0 %v1708
    %2112 = vmatprep.subr.bf16.mxu0 %v1711
    %2113 = vmatpush1.bf16.msra.mxu0 %v1710
    %2114 = vmatprep.subr.bf16.mxu0 %v1713
    %2115 = vmatpush1.bf16.msra.mxu0 %v1712
    %2116 = vmatprep.subr.bf16.mxu0 %v1715
    %2117 = vmatpush1.bf16.msra.mxu0 %v1714
    %2118 = vmatprep.subr.bf16.mxu0 %v1717
    %2119 = vmatpush1.bf16.msra.mxu0 %v1716
    %2120 = vmatprep.subr.bf16.mxu0 %v1719
    %2121 = vmatpush1.bf16.msra.mxu0 %v1718
    %2122 = vmatprep.subr.bf16.mxu0 %v1721
    %2123 = vmatpush1.bf16.msra.mxu0 %v1720
    %2124 = vmatprep.subr.bf16.mxu0 0
    %2125 = vmatpush1.bf16.msra.mxu0 0
    %2126 = vmatprep.subr.bf16.mxu0 0
    %2127 = vmatpush1.bf16.msra.mxu0 0
    %2128 = vmatprep.subr.bf16.mxu0 0
    %2129 = vmatpush1.bf16.msra.mxu0 0
    %2130 = vmatprep.subr.bf16.mxu0 0
    %2131 = vmatpush1.bf16.msra.mxu0 0
    %2132 = vmatprep.subr.bf16.mxu0 0
    %2133 = vmatpush1.bf16.msra.mxu0 0
    %2134 = vmatprep.subr.bf16.mxu0 0
    %2135 = vmatpush1.bf16.msra.mxu0 0
    %2136 = vmatprep.subr.bf16.mxu0 0
    %2137 = vmatpush1.bf16.msra.mxu0 0
    %2138 = vmatprep.subr.bf16.mxu0 0
    %2139 = vmatpush1.bf16.msra.mxu0 0
    %2140 = vmatprep.mubr.bf16.mxu0 0
    %2141 = vmatmul.mubr.bf16.gmra.mrb[0].mxu0 %v2045
    %v2142 = vpop.f32.mrb[0].mxu0
    %v2143 = vadd.f32 %v2090, %v2142
    %v2144 = vpop.f32.mrb[0].mxu0
    %v2145 = vadd.f32 %v2092, %v2144
    %v2146 = vpop.f32.mrb[0].mxu0
    %v2147 = vadd.f32 %v2094, %v2146
    %v2148 = vpop.f32.mrb[0].mxu0
    %v2149 = vadd.f32 %v2096, %v2148
    %2150 = vmatprep.mubr.bf16.mxu0 0
    %2151 = vmatmul.mubr.bf16.gmra.mrb[0].mxu0 %v2048
    %v2152 = vpop.f32.mrb[0].mxu0
    %v2153 = vadd.f32 %v2100, %v2152
    %v2154 = vpop.f32.mrb[0].mxu0
    %v2155 = vadd.f32 %v2102, %v2154
    %v2156 = vpop.f32.mrb[0].mxu0
    %v2157 = vadd.f32 %v2104, %v2156
    %v2158 = vpop.f32.mrb[0].mxu0
    %v2159 = vadd.f32 %v2106, %v2158
    %2160 = vdwg.mxu0
    %s2161 = scalar_lea.vmem %s0, 768
    %v2162 = vld [vmem:[%s2161] sm:$0xff]
    %v2163 = vld [vmem:[%s2161 + $0x8] sm:$0xff]
    %v2164 = vld [vmem:[%s2161 + $0x10] sm:$0xff]
    %v2165 = vld [vmem:[%s2161 + $0x18] sm:$0xff]
    %v2166 = vld [vmem:[%s2161 + $0x20] sm:$0xff]
    %v2167 = vld [vmem:[%s2161 + $0x28] sm:$0xff]
    %v2168 = vld [vmem:[%s2161 + $0x30] sm:$0xff]
    %v2169 = vld [vmem:[%s2161 + $0x38] sm:$0xff]
    %v2170 = vld [vmem:[%s2161 + $0x40] sm:$0xff]
    %v2171 = vld [vmem:[%s2161 + $0x48] sm:$0xff]
    %v2172 = vld [vmem:[%s2161 + $0x50] sm:$0xff]
    %v2173 = vld [vmem:[%s2161 + $0x58] sm:$0xff]
    %v2174 = vld [vmem:[%s2161 + $0x60] sm:$0xff]
    %v2175 = vld [vmem:[%s2161 + $0x68] sm:$0xff]
    %v2176 = vld [vmem:[%s2161 + $0x70] sm:$0xff]
    %v2177 = vld [vmem:[%s2161 + $0x78] sm:$0xff]
    %v2178 = vld [vmem:[%s2161 + $0x80] sm:$0xff]
    %v2179 = vld [vmem:[%s2161 + $0x88] sm:$0xff]
    %v2180 = vld [vmem:[%s2161 + $0x90] sm:$0xff]
    %v2181 = vld [vmem:[%s2161 + $0x98] sm:$0xff]
    %v2182 = vld [vmem:[%s2161 + $0xa0] sm:$0xff]
    %v2183 = vld [vmem:[%s2161 + $0xa8] sm:$0xff]
    %v2184 = vld [vmem:[%s2161 + $0xb0] sm:$0xff]
    %v2185 = vld [vmem:[%s2161 + $0xb8] sm:$0xff]
    %v2186 = vld [vmem:[%s2161 + $0xc0] sm:$0xff]
    %v2187 = vld [vmem:[%s2161 + $0xc8] sm:$0xff]
    %v2188 = vld [vmem:[%s2161 + $0xd0] sm:$0xff]
    %v2189 = vld [vmem:[%s2161 + $0xd8] sm:$0xff]
    %v2190 = vld [vmem:[%s2161 + $0xe0] sm:$0xff]
    %v2191 = vld [vmem:[%s2161 + $0xe8] sm:$0xff]
    %v2192 = vld [vmem:[%s2161 + $0xf0] sm:$0xff]
    %v2193 = vld [vmem:[%s2161 + $0xf8] sm:$0xff]
    %v2194 = vld [vmem:[%s2161 + $0x100] sm:$0xff]
    %v2195 = vld [vmem:[%s2161 + $0x108] sm:$0xff]
    %v2196 = vld [vmem:[%s2161 + $0x110] sm:$0xff]
    %v2197 = vld [vmem:[%s2161 + $0x118] sm:$0xff]
    %v2198 = vld [vmem:[%s2161 + $0x120] sm:$0xff]
    %v2199 = vld [vmem:[%s2161 + $0x128] sm:$0xff]
    %v2200 = vld [vmem:[%s2161 + $0x130] sm:$0xff]
    %v2201 = vld [vmem:[%s2161 + $0x138] sm:$0xff]
    %v2202 = vld [vmem:[%s2161 + $0x140] sm:$0xff]
    %v2203 = vld [vmem:[%s2161 + $0x148] sm:$0xff]
    %v2204 = vld [vmem:[%s2161 + $0x150] sm:$0xff]
    %v2205 = vld [vmem:[%s2161 + $0x158] sm:$0xff]
    %v2206 = vld [vmem:[%s2161 + $0x160] sm:$0xff]
    %v2207 = vld [vmem:[%s2161 + $0x168] sm:$0xff]
    %v2208 = vld [vmem:[%s2161 + $0x170] sm:$0xff]
    %v2209 = vld [vmem:[%s2161 + $0x178] sm:$0xff]
    %s2210 = scalar_lea.vmem [#allocation8], 48
    %v2211 = vld [vmem:[%s2210] sm:$0xff]
    %v2212 = vld [vmem:[%s2210 + $0x8] sm:$0xf]
    %v2213 = vld [vmem:[%s2210 + $0xc] sm:$0xff]
    %v2214 = vld [vmem:[%s2210 + $0x14] sm:$0xf]
    %v2215 = vld [vmem:[%s2210 + $0x18] sm:$0xff]
    %v2216 = vld [vmem:[%s2210 + $0x20] sm:$0xf]
    %v2217 = vld [vmem:[%s2210 + $0x24] sm:$0xff]
    %v2218 = vld [vmem:[%s2210 + $0x2c] sm:$0xf]
    %v2227 = vunpack.c.l.b16 %v2211
    %v2228 = vunpack.c.h.b16 %v2211
    %v2229 = vunpack.c.l.b16 %v2212
    %v2230 = vunpack.c.l.b16 %v2213
    %v2231 = vunpack.c.h.b16 %v2213
    %v2232 = vunpack.c.l.b16 %v2214
    %v2233 = vunpack.c.l.b16 %v2215
    %v2234 = vunpack.c.h.b16 %v2215
    %v2235 = vunpack.c.l.b16 %v2216
    %v2236 = vunpack.c.l.b16 %v2217
    %v2237 = vunpack.c.h.b16 %v2217
    %v2238 = vunpack.c.l.b16 %v2218
    %v2239 = vpack.c.b16 %v2230, %v2227
    %v2240 = vpack.c.b16 %v2231, %v2228
    %v2241 = vpack.c.b16 %v2232, %v2229
    %v2242 = vpack.c.b16 %v2236, %v2233
    %v2243 = vpack.c.b16 %v2237, %v2234
    %v2244 = vpack.c.b16 %v2238, %v2235
    %v2299 = vunpack.c.l.b16 %v2162
    %v2300 = vunpack.c.h.b16 %v2162
    %v2301 = vunpack.c.l.b16 %v2163
    %v2302 = vunpack.c.h.b16 %v2163
    %v2303 = vunpack.c.l.b16 %v2164
    %v2304 = vunpack.c.h.b16 %v2164
    %v2305 = vunpack.c.l.b16 %v2165
    %v2306 = vunpack.c.h.b16 %v2165
    %v2307 = vunpack.c.l.b16 %v2166
    %v2308 = vunpack.c.h.b16 %v2166
    %v2309 = vunpack.c.l.b16 %v2167
    %v2310 = vunpack.c.h.b16 %v2167
    %v2311 = vunpack.c.l.b16 %v2168
    %v2312 = vunpack.c.h.b16 %v2168
    %v2313 = vunpack.c.l.b16 %v2169
    %v2314 = vunpack.c.h.b16 %v2169
    %v2315 = vunpack.c.l.b16 %v2170
    %v2316 = vunpack.c.h.b16 %v2170
    %v2317 = vunpack.c.l.b16 %v2171
    %v2318 = vunpack.c.h.b16 %v2171
    %v2319 = vunpack.c.l.b16 %v2172
    %v2320 = vunpack.c.h.b16 %v2172
    %v2321 = vunpack.c.l.b16 %v2173
    %v2322 = vunpack.c.h.b16 %v2173
    %v2323 = vunpack.c.l.b16 %v2174
    %v2324 = vunpack.c.h.b16 %v2174
    %v2325 = vunpack.c.l.b16 %v2175
    %v2326 = vunpack.c.h.b16 %v2175
    %v2327 = vunpack.c.l.b16 %v2176
    %v2328 = vunpack.c.h.b16 %v2176
    %v2329 = vunpack.c.l.b16 %v2177
    %v2330 = vunpack.c.h.b16 %v2177
    %v2331 = vunpack.c.l.b16 %v2178
    %v2332 = vunpack.c.h.b16 %v2178
    %v2333 = vunpack.c.l.b16 %v2179
    %v2334 = vunpack.c.h.b16 %v2179
    %v2335 = vunpack.c.l.b16 %v2180
    %v2336 = vunpack.c.h.b16 %v2180
    %v2337 = vunpack.c.l.b16 %v2181
    %v2338 = vunpack.c.h.b16 %v2181
    %v2339 = vunpack.c.l.b16 %v2182
    %v2340 = vunpack.c.h.b16 %v2182
    %v2341 = vunpack.c.l.b16 %v2183
    %v2342 = vunpack.c.h.b16 %v2183
    %v2343 = vunpack.c.l.b16 %v2184
    %v2344 = vunpack.c.h.b16 %v2184
    %v2345 = vunpack.c.l.b16 %v2185
    %v2346 = vunpack.c.h.b16 %v2185
    %v2347 = vunpack.c.l.b16 %v2186
    %v2348 = vunpack.c.h.b16 %v2186
    %v2349 = vunpack.c.l.b16 %v2187
    %v2350 = vunpack.c.h.b16 %v2187
    %v2351 = vunpack.c.l.b16 %v2188
    %v2352 = vunpack.c.h.b16 %v2188
    %v2353 = vunpack.c.l.b16 %v2189
    %v2354 = vunpack.c.h.b16 %v2189
    %v2355 = vunpack.c.l.b16 %v2190
    %v2356 = vunpack.c.h.b16 %v2190
    %v2357 = vunpack.c.l.b16 %v2191
    %v2358 = vunpack.c.h.b16 %v2191
    %v2359 = vunpack.c.l.b16 %v2192
    %v2360 = vunpack.c.h.b16 %v2192
    %v2361 = vunpack.c.l.b16 %v2193
    %v2362 = vunpack.c.h.b16 %v2193
    %v2363 = vunpack.c.l.b16 %v2194
    %v2364 = vunpack.c.h.b16 %v2194
    %v2365 = vunpack.c.l.b16 %v2195
    %v2366 = vunpack.c.h.b16 %v2195
    %v2367 = vunpack.c.l.b16 %v2196
    %v2368 = vunpack.c.h.b16 %v2196
    %v2369 = vunpack.c.l.b16 %v2197
    %v2370 = vunpack.c.h.b16 %v2197
    %v2371 = vunpack.c.l.b16 %v2198
    %v2372 = vunpack.c.h.b16 %v2198
    %v2373 = vunpack.c.l.b16 %v2199
    %v2374 = vunpack.c.h.b16 %v2199
    %v2375 = vunpack.c.l.b16 %v2200
    %v2376 = vunpack.c.h.b16 %v2200
    %v2377 = vunpack.c.l.b16 %v2201
    %v2378 = vunpack.c.h.b16 %v2201
    %v2379 = vunpack.c.l.b16 %v2202
    %v2380 = vunpack.c.h.b16 %v2202
    %v2381 = vunpack.c.l.b16 %v2203
    %v2382 = vunpack.c.h.b16 %v2203
    %v2383 = vunpack.c.l.b16 %v2204
    %v2384 = vunpack.c.h.b16 %v2204
    %v2385 = vunpack.c.l.b16 %v2205
    %v2386 = vunpack.c.h.b16 %v2205
    %v2387 = vunpack.c.l.b16 %v2206
    %v2388 = vunpack.c.h.b16 %v2206
    %v2389 = vunpack.c.l.b16 %v2207
    %v2390 = vunpack.c.h.b16 %v2207
    %v2391 = vunpack.c.l.b16 %v2208
    %v2392 = vunpack.c.h.b16 %v2208
    %v2393 = vunpack.c.l.b16 %v2209
    %v2394 = vunpack.c.h.b16 %v2209
    %v2395 = vpack.c.b16 %v2301, %v2299
    %v2396 = vpack.c.b16 %v2302, %v2300
    %v2397 = vpack.c.b16 %v2305, %v2303
    %v2398 = vpack.c.b16 %v2306, %v2304
    %v2399 = vpack.c.b16 %v2309, %v2307
    %v2400 = vpack.c.b16 %v2310, %v2308
    %v2401 = vpack.c.b16 %v2313, %v2311
    %v2402 = vpack.c.b16 %v2314, %v2312
    %v2403 = vpack.c.b16 %v2317, %v2315
    %v2404 = vpack.c.b16 %v2318, %v2316
    %v2405 = vpack.c.b16 %v2321, %v2319
    %v2406 = vpack.c.b16 %v2322, %v2320
    %v2407 = vpack.c.b16 %v2325, %v2323
    %v2408 = vpack.c.b16 %v2326, %v2324
    %v2409 = vpack.c.b16 %v2329, %v2327
    %v2410 = vpack.c.b16 %v2330, %v2328
    %v2411 = vpack.c.b16 %v2333, %v2331
    %v2412 = vpack.c.b16 %v2334, %v2332
    %v2413 = vpack.c.b16 %v2337, %v2335
    %v2414 = vpack.c.b16 %v2338, %v2336
    %v2415 = vpack.c.b16 %v2341, %v2339
    %v2416 = vpack.c.b16 %v2342, %v2340
    %v2417 = vpack.c.b16 %v2345, %v2343
    %v2418 = vpack.c.b16 %v2346, %v2344
    %v2419 = vpack.c.b16 %v2349, %v2347
    %v2420 = vpack.c.b16 %v2350, %v2348
    %v2421 = vpack.c.b16 %v2353, %v2351
    %v2422 = vpack.c.b16 %v2354, %v2352
    %v2423 = vpack.c.b16 %v2357, %v2355
    %v2424 = vpack.c.b16 %v2358, %v2356
    %v2425 = vpack.c.b16 %v2361, %v2359
    %v2426 = vpack.c.b16 %v2362, %v2360
    %v2427 = vpack.c.b16 %v2365, %v2363
    %v2428 = vpack.c.b16 %v2366, %v2364
    %v2429 = vpack.c.b16 %v2369, %v2367
    %v2430 = vpack.c.b16 %v2370, %v2368
    %v2431 = vpack.c.b16 %v2373, %v2371
    %v2432 = vpack.c.b16 %v2374, %v2372
    %v2433 = vpack.c.b16 %v2377, %v2375
    %v2434 = vpack.c.b16 %v2378, %v2376
    %v2435 = vpack.c.b16 %v2381, %v2379
    %v2436 = vpack.c.b16 %v2382, %v2380
    %v2437 = vpack.c.b16 %v2385, %v2383
    %v2438 = vpack.c.b16 %v2386, %v2384
    %v2439 = vpack.c.b16 %v2389, %v2387
    %v2440 = vpack.c.b16 %v2390, %v2388
    %v2441 = vpack.c.b16 %v2393, %v2391
    %v2442 = vpack.c.b16 %v2394, %v2392
    %2491 = vmatprep.subr.bf16.mxu0 %v2396
    %2492 = vmatpush1.bf16.msra.mxu0 %v2395
    %2493 = vmatprep.subr.bf16.mxu0 %v2398
    %2494 = vmatpush1.bf16.msra.mxu0 %v2397
    %2495 = vmatprep.subr.bf16.mxu0 %v2400
    %2496 = vmatpush1.bf16.msra.mxu0 %v2399
    %2497 = vmatprep.subr.bf16.mxu0 %v2402
    %2498 = vmatpush1.bf16.msra.mxu0 %v2401
    %2499 = vmatprep.subr.bf16.mxu0 %v2404
    %2500 = vmatpush1.bf16.msra.mxu0 %v2403
    %2501 = vmatprep.subr.bf16.mxu0 %v2406
    %2502 = vmatpush1.bf16.msra.mxu0 %v2405
    %2503 = vmatprep.subr.bf16.mxu0 %v2408
    %2504 = vmatpush1.bf16.msra.mxu0 %v2407
    %2505 = vmatprep.subr.bf16.mxu0 %v2410
    %2506 = vmatpush1.bf16.msra.mxu0 %v2409
    %2507 = vmatprep.subr.bf16.mxu0 %v2412
    %2508 = vmatpush1.bf16.msra.mxu0 %v2411
    %2509 = vmatprep.subr.bf16.mxu0 %v2414
    %2510 = vmatpush1.bf16.msra.mxu0 %v2413
    %2511 = vmatprep.subr.bf16.mxu0 %v2416
    %2512 = vmatpush1.bf16.msra.mxu0 %v2415
    %2513 = vmatprep.subr.bf16.mxu0 %v2418
    %2514 = vmatpush1.bf16.msra.mxu0 %v2417
    %2515 = vmatprep.subr.bf16.mxu0 %v2420
    %2516 = vmatpush1.bf16.msra.mxu0 %v2419
    %2517 = vmatprep.subr.bf16.mxu0 %v2422
    %2518 = vmatpush1.bf16.msra.mxu0 %v2421
    %2519 = vmatprep.subr.bf16.mxu0 %v2424
    %2520 = vmatpush1.bf16.msra.mxu0 %v2423
    %2521 = vmatprep.subr.bf16.mxu0 %v2426
    %2522 = vmatpush1.bf16.msra.mxu0 %v2425
    %2523 = vmatprep.mubr.bf16.mxu0 %v2240
    %2524 = vmatmul.mubr.bf16.gmra.mrb[0].mxu0 %v2239
    %v2525 = vpop.f32.mrb[0].mxu0
    %v2526 = vadd.f32 0.0, %v2525
    %v2527 = vpop.f32.mrb[0].mxu0
    %v2528 = vadd.f32 0.0, %v2527
    %v2529 = vpop.f32.mrb[0].mxu0
    %v2530 = vadd.f32 0.0, %v2529
    %v2531 = vpop.f32.mrb[0].mxu0
    %v2532 = vadd.f32 0.0, %v2531
    %2533 = vmatprep.mubr.bf16.mxu0 %v2243
    %2534 = vmatmul.mubr.bf16.gmra.mrb[0].mxu0 %v2242
    %v2535 = vpop.f32.mrb[0].mxu0
    %v2536 = vadd.f32 0.0, %v2535
    %v2537 = vpop.f32.mrb[0].mxu0
    %v2538 = vadd.f32 0.0, %v2537
    %v2539 = vpop.f32.mrb[0].mxu0
    %v2540 = vadd.f32 0.0, %v2539
    %v2541 = vpop.f32.mrb[0].mxu0
    %v2542 = vadd.f32 0.0, %v2541
    %2543 = vdwg.mxu0
    %2544 = vmatprep.subr.bf16.mxu0 %v2428
    %2545 = vmatpush1.bf16.msra.mxu0 %v2427
    %2546 = vmatprep.subr.bf16.mxu0 %v2430
    %2547 = vmatpush1.bf16.msra.mxu0 %v2429
    %2548 = vmatprep.subr.bf16.mxu0 %v2432
    %2549 = vmatpush1.bf16.msra.mxu0 %v2431
    %2550 = vmatprep.subr.bf16.mxu0 %v2434
    %2551 = vmatpush1.bf16.msra.mxu0 %v2433
    %2552 = vmatprep.subr.bf16.mxu0 %v2436
    %2553 = vmatpush1.bf16.msra.mxu0 %v2435
    %2554 = vmatprep.subr.bf16.mxu0 %v2438
    %2555 = vmatpush1.bf16.msra.mxu0 %v2437
    %2556 = vmatprep.subr.bf16.mxu0 %v2440
    %2557 = vmatpush1.bf16.msra.mxu0 %v2439
    %2558 = vmatprep.subr.bf16.mxu0 %v2442
    %2559 = vmatpush1.bf16.msra.mxu0 %v2441
    %2560 = vmatprep.subr.bf16.mxu0 0
    %2561 = vmatpush1.bf16.msra.mxu0 0
    %2562 = vmatprep.subr.bf16.mxu0 0
    %2563 = vmatpush1.bf16.msra.mxu0 0
    %2564 = vmatprep.subr.bf16.mxu0 0
    %2565 = vmatpush1.bf16.msra.mxu0 0
    %2566 = vmatprep.subr.bf16.mxu0 0
    %2567 = vmatpush1.bf16.msra.mxu0 0
    %2568 = vmatprep.subr.bf16.mxu0 0
    %2569 = vmatpush1.bf16.msra.mxu0 0
    %2570 = vmatprep.subr.bf16.mxu0 0
    %2571 = vmatpush1.bf16.msra.mxu0 0
    %2572 = vmatprep.subr.bf16.mxu0 0
    %2573 = vmatpush1.bf16.msra.mxu0 0
    %2574 = vmatprep.subr.bf16.mxu0 0
    %2575 = vmatpush1.bf16.msra.mxu0 0
    %2576 = vmatprep.mubr.bf16.mxu0 0
    %2577 = vmatmul.mubr.bf16.gmra.mrb[0].mxu0 %v2241
    %v2578 = vpop.f32.mrb[0].mxu0
    %v2579 = vadd.f32 %v2526, %v2578
    %v2580 = vpop.f32.mrb[0].mxu0
    %v2581 = vadd.f32 %v2528, %v2580
    %v2582 = vpop.f32.mrb[0].mxu0
    %v2583 = vadd.f32 %v2530, %v2582
    %v2584 = vpop.f32.mrb[0].mxu0
    %v2585 = vadd.f32 %v2532, %v2584
    %2586 = vmatprep.mubr.bf16.mxu0 0
    %2587 = vmatmul.mubr.bf16.gmra.mrb[0].mxu0 %v2244
    %v2588 = vpop.f32.mrb[0].mxu0
    %v2589 = vadd.f32 %v2536, %v2588
    %v2590 = vpop.f32.mrb[0].mxu0
    %v2591 = vadd.f32 %v2538, %v2590
    %v2592 = vpop.f32.mrb[0].mxu0
    %v2593 = vadd.f32 %v2540, %v2592
    %v2594 = vpop.f32.mrb[0].mxu0
    %v2595 = vadd.f32 %v2542, %v2594
    %2596 = vdwg.mxu0
    %v2597 = vadd.f32 %v1858, %v2579
    %v2598 = vadd.f32 %v1860, %v2581
    %v2599 = vadd.f32 %v1862, %v2583
    %v2600 = vadd.f32 %v1864, %v2585
    %v2601 = vadd.f32 %v1868, %v2589
    %v2602 = vadd.f32 %v1870, %v2591
    %v2603 = vadd.f32 %v1872, %v2593
    %v2604 = vadd.f32 %v1874, %v2595
    %s2605 = scalar_lea.vmem [#allocation8], 144
    %v2606 = vld [vmem:[%s2605] sm:$0xff]
    %v2607 = vld [vmem:[%s2605 + $0x8] sm:$0xf]
    %v2608 = vld [vmem:[%s2605 + $0xc] sm:$0xff]
    %v2609 = vld [vmem:[%s2605 + $0x14] sm:$0xf]
    %v2610 = vld [vmem:[%s2605 + $0x18] sm:$0xff]
    %v2611 = vld [vmem:[%s2605 + $0x20] sm:$0xf]
    %v2612 = vld [vmem:[%s2605 + $0x24] sm:$0xff]
    %v2613 = vld [vmem:[%s2605 + $0x2c] sm:$0xf]
    %v2622 = vunpack.c.l.b16 %v2606
    %v2623 = vunpack.c.h.b16 %v2606
    %v2624 = vunpack.c.l.b16 %v2607
    %v2625 = vunpack.c.l.b16 %v2608
    %v2626 = vunpack.c.h.b16 %v2608
    %v2627 = vunpack.c.l.b16 %v2609
    %v2628 = vunpack.c.l.b16 %v2610
    %v2629 = vunpack.c.h.b16 %v2610
    %v2630 = vunpack.c.l.b16 %v2611
    %v2631 = vunpack.c.l.b16 %v2612
    %v2632 = vunpack.c.h.b16 %v2612
    %v2633 = vunpack.c.l.b16 %v2613
    %v2634 = vpack.c.b16 %v2625, %v2622
    %v2635 = vpack.c.b16 %v2626, %v2623
    %v2636 = vpack.c.b16 %v2627, %v2624
    %v2637 = vpack.c.b16 %v2631, %v2628
    %v2638 = vpack.c.b16 %v2632, %v2629
    %v2639 = vpack.c.b16 %v2633, %v2630
    %2646 = vmatprep.subr.bf16.mxu0 %v2396
    %2647 = vmatpush1.bf16.msra.mxu0 %v2395
    %2648 = vmatprep.subr.bf16.mxu0 %v2398
    %2649 = vmatpush1.bf16.msra.mxu0 %v2397
    %2650 = vmatprep.subr.bf16.mxu0 %v2400
    %2651 = vmatpush1.bf16.msra.mxu0 %v2399
    %2652 = vmatprep.subr.bf16.mxu0 %v2402
    %2653 = vmatpush1.bf16.msra.mxu0 %v2401
    %2654 = vmatprep.subr.bf16.mxu0 %v2404
    %2655 = vmatpush1.bf16.msra.mxu0 %v2403
    %2656 = vmatprep.subr.bf16.mxu0 %v2406
    %2657 = vmatpush1.bf16.msra.mxu0 %v2405
    %2658 = vmatprep.subr.bf16.mxu0 %v2408
    %2659 = vmatpush1.bf16.msra.mxu0 %v2407
    %2660 = vmatprep.subr.bf16.mxu0 %v2410
    %2661 = vmatpush1.bf16.msra.mxu0 %v2409
    %2662 = vmatprep.subr.bf16.mxu0 %v2412
    %2663 = vmatpush1.bf16.msra.mxu0 %v2411
    %2664 = vmatprep.subr.bf16.mxu0 %v2414
    %2665 = vmatpush1.bf16.msra.mxu0 %v2413
    %2666 = vmatprep.subr.bf16.mxu0 %v2416
    %2667 = vmatpush1.bf16.msra.mxu0 %v2415
    %2668 = vmatprep.subr.bf16.mxu0 %v2418
    %2669 = vmatpush1.bf16.msra.mxu0 %v2417
    %2670 = vmatprep.subr.bf16.mxu0 %v2420
    %2671 = vmatpush1.bf16.msra.mxu0 %v2419
    %2672 = vmatprep.subr.bf16.mxu0 %v2422
    %2673 = vmatpush1.bf16.msra.mxu0 %v2421
    %2674 = vmatprep.subr.bf16.mxu0 %v2424
    %2675 = vmatpush1.bf16.msra.mxu0 %v2423
    %2676 = vmatprep.subr.bf16.mxu0 %v2426
    %2677 = vmatpush1.bf16.msra.mxu0 %v2425
    %2678 = vmatprep.mubr.bf16.mxu0 %v2635
    %2679 = vmatmul.mubr.bf16.gmra.mrb[0].mxu0 %v2634
    %v2680 = vpop.f32.mrb[0].mxu0
    %v2681 = vadd.f32 0.0, %v2680
    %v2682 = vpop.f32.mrb[0].mxu0
    %v2683 = vadd.f32 0.0, %v2682
    %v2684 = vpop.f32.mrb[0].mxu0
    %v2685 = vadd.f32 0.0, %v2684
    %v2686 = vpop.f32.mrb[0].mxu0
    %v2687 = vadd.f32 0.0, %v2686
    %2688 = vmatprep.mubr.bf16.mxu0 %v2638
    %2689 = vmatmul.mubr.bf16.gmra.mrb[0].mxu0 %v2637
    %v2690 = vpop.f32.mrb[0].mxu0
    %v2691 = vadd.f32 0.0, %v2690
    %v2692 = vpop.f32.mrb[0].mxu0
    %v2693 = vadd.f32 0.0, %v2692
    %v2694 = vpop.f32.mrb[0].mxu0
    %v2695 = vadd.f32 0.0, %v2694
    %v2696 = vpop.f32.mrb[0].mxu0
    %v2697 = vadd.f32 0.0, %v2696
    %2698 = vdwg.mxu0
    %2699 = vmatprep.subr.bf16.mxu0 %v2428
    %2700 = vmatpush1.bf16.msra.mxu0 %v2427
    %2701 = vmatprep.subr.bf16.mxu0 %v2430
    %2702 = vmatpush1.bf16.msra.mxu0 %v2429
    %2703 = vmatprep.subr.bf16.mxu0 %v2432
    %2704 = vmatpush1.bf16.msra.mxu0 %v2431
    %2705 = vmatprep.subr.bf16.mxu0 %v2434
    %2706 = vmatpush1.bf16.msra.mxu0 %v2433
    %2707 = vmatprep.subr.bf16.mxu0 %v2436
    %2708 = vmatpush1.bf16.msra.mxu0 %v2435
    %2709 = vmatprep.subr.bf16.mxu0 %v2438
    %2710 = vmatpush1.bf16.msra.mxu0 %v2437
    %2711 = vmatprep.subr.bf16.mxu0 %v2440
    %2712 = vmatpush1.bf16.msra.mxu0 %v2439
    %2713 = vmatprep.subr.bf16.mxu0 %v2442
    %2714 = vmatpush1.bf16.msra.mxu0 %v2441
    %2715 = vmatprep.subr.bf16.mxu0 0
    %2716 = vmatpush1.bf16.msra.mxu0 0
    %2717 = vmatprep.subr.bf16.mxu0 0
    %2718 = vmatpush1.bf16.msra.mxu0 0
    %2719 = vmatprep.subr.bf16.mxu0 0
    %2720 = vmatpush1.bf16.msra.mxu0 0
    %2721 = vmatprep.subr.bf16.mxu0 0
    %2722 = vmatpush1.bf16.msra.mxu0 0
    %2723 = vmatprep.subr.bf16.mxu0 0
    %2724 = vmatpush1.bf16.msra.mxu0 0
    %2725 = vmatprep.subr.bf16.mxu0 0
    %2726 = vmatpush1.bf16.msra.mxu0 0
    %2727 = vmatprep.subr.bf16.mxu0 0
    %2728 = vmatpush1.bf16.msra.mxu0 0
    %2729 = vmatprep.subr.bf16.mxu0 0
    %2730 = vmatpush1.bf16.msra.mxu0 0
    %2731 = vmatprep.mubr.bf16.mxu0 0
    %2732 = vmatmul.mubr.bf16.gmra.mrb[0].mxu0 %v2636
    %v2733 = vpop.f32.mrb[0].mxu0
    %v2734 = vadd.f32 %v2681, %v2733
    %v2735 = vpop.f32.mrb[0].mxu0
    %v2736 = vadd.f32 %v2683, %v2735
    %v2737 = vpop.f32.mrb[0].mxu0
    %v2738 = vadd.f32 %v2685, %v2737
    %v2739 = vpop.f32.mrb[0].mxu0
    %v2740 = vadd.f32 %v2687, %v2739
    %2741 = vmatprep.mubr.bf16.mxu0 0
    %2742 = vmatmul.mubr.bf16.gmra.mrb[0].mxu0 %v2639
    %v2743 = vpop.f32.mrb[0].mxu0
    %v2744 = vadd.f32 %v2691, %v2743
    %v2745 = vpop.f32.mrb[0].mxu0
    %v2746 = vadd.f32 %v2693, %v2745
    %v2747 = vpop.f32.mrb[0].mxu0
    %v2748 = vadd.f32 %v2695, %v2747
    %v2749 = vpop.f32.mrb[0].mxu0
    %v2750 = vadd.f32 %v2697, %v2749
    %2751 = vdwg.mxu0
    %v2752 = vadd.f32 %v2143, %v2734
    %v2753 = vadd.f32 %v2145, %v2736
    %v2754 = vadd.f32 %v2147, %v2738
    %v2755 = vadd.f32 %v2149, %v2740
    %v2756 = vadd.f32 %v2153, %v2744
    %v2757 = vadd.f32 %v2155, %v2746
    %v2758 = vadd.f32 %v2157, %v2748
    %v2759 = vadd.f32 %v2159, %v2750
    %s2760 = scalar_lea.vmem %s0, 1152
    %v2761 = vld [vmem:[%s2760] sm:$0xff]
    %v2762 = vld [vmem:[%s2760 + $0x8] sm:$0xff]
    %v2763 = vld [vmem:[%s2760 + $0x10] sm:$0xff]
    %v2764 = vld [vmem:[%s2760 + $0x18] sm:$0xff]
    %v2765 = vld [vmem:[%s2760 + $0x20] sm:$0xff]
    %v2766 = vld [vmem:[%s2760 + $0x28] sm:$0xff]
    %v2767 = vld [vmem:[%s2760 + $0x30] sm:$0xff]
    %v2768 = vld [vmem:[%s2760 + $0x38] sm:$0xff]
    %v2769 = vld [vmem:[%s2760 + $0x40] sm:$0xff]
    %v2770 = vld [vmem:[%s2760 + $0x48] sm:$0xff]
    %v2771 = vld [vmem:[%s2760 + $0x50] sm:$0xff]
    %v2772 = vld [vmem:[%s2760 + $0x58] sm:$0xff]
    %v2773 = vld [vmem:[%s2760 + $0x60] sm:$0xff]
    %v2774 = vld [vmem:[%s2760 + $0x68] sm:$0xff]
    %v2775 = vld [vmem:[%s2760 + $0x70] sm:$0xff]
    %v2776 = vld [vmem:[%s2760 + $0x78] sm:$0xff]
    %v2777 = vld [vmem:[%s2760 + $0x80] sm:$0xff]
    %v2778 = vld [vmem:[%s2760 + $0x88] sm:$0xff]
    %v2779 = vld [vmem:[%s2760 + $0x90] sm:$0xff]
    %v2780 = vld [vmem:[%s2760 + $0x98] sm:$0xff]
    %v2781 = vld [vmem:[%s2760 + $0xa0] sm:$0xff]
    %v2782 = vld [vmem:[%s2760 + $0xa8] sm:$0xff]
    %v2783 = vld [vmem:[%s2760 + $0xb0] sm:$0xff]
    %v2784 = vld [vmem:[%s2760 + $0xb8] sm:$0xff]
    %v2785 = vld [vmem:[%s2760 + $0xc0] sm:$0xff]
    %v2786 = vld [vmem:[%s2760 + $0xc8] sm:$0xff]
    %v2787 = vld [vmem:[%s2760 + $0xd0] sm:$0xff]
    %v2788 = vld [vmem:[%s2760 + $0xd8] sm:$0xff]
    %v2789 = vld [vmem:[%s2760 + $0xe0] sm:$0xff]
    %v2790 = vld [vmem:[%s2760 + $0xe8] sm:$0xff]
    %v2791 = vld [vmem:[%s2760 + $0xf0] sm:$0xff]
    %v2792 = vld [vmem:[%s2760 + $0xf8] sm:$0xff]
    %v2793 = vld [vmem:[%s2760 + $0x100] sm:$0xff]
    %v2794 = vld [vmem:[%s2760 + $0x108] sm:$0xff]
    %v2795 = vld [vmem:[%s2760 + $0x110] sm:$0xff]
    %v2796 = vld [vmem:[%s2760 + $0x118] sm:$0xff]
    %v2797 = vld [vmem:[%s2760 + $0x120] sm:$0xff]
    %v2798 = vld [vmem:[%s2760 + $0x128] sm:$0xff]
    %v2799 = vld [vmem:[%s2760 + $0x130] sm:$0xff]
    %v2800 = vld [vmem:[%s2760 + $0x138] sm:$0xff]
    %v2801 = vld [vmem:[%s2760 + $0x140] sm:$0xff]
    %v2802 = vld [vmem:[%s2760 + $0x148] sm:$0xff]
    %v2803 = vld [vmem:[%s2760 + $0x150] sm:$0xff]
    %v2804 = vld [vmem:[%s2760 + $0x158] sm:$0xff]
    %v2805 = vld [vmem:[%s2760 + $0x160] sm:$0xff]
    %v2806 = vld [vmem:[%s2760 + $0x168] sm:$0xff]
    %v2807 = vld [vmem:[%s2760 + $0x170] sm:$0xff]
    %v2808 = vld [vmem:[%s2760 + $0x178] sm:$0xff]
    %v2857 = vunpack.c.l.b16 %v2761
    %v2858 = vunpack.c.h.b16 %v2761
    %v2859 = vunpack.c.l.b16 %v2762
    %v2860 = vunpack.c.h.b16 %v2762
    %v2861 = vunpack.c.l.b16 %v2763
    %v2862 = vunpack.c.h.b16 %v2763
    %v2863 = vunpack.c.l.b16 %v2764
    %v2864 = vunpack.c.h.b16 %v2764
    %v2865 = vunpack.c.l.b16 %v2765
    %v2866 = vunpack.c.h.b16 %v2765
    %v2867 = vunpack.c.l.b16 %v2766
    %v2868 = vunpack.c.h.b16 %v2766
    %v2869 = vunpack.c.l.b16 %v2767
    %v2870 = vunpack.c.h.b16 %v2767
    %v2871 = vunpack.c.l.b16 %v2768
    %v2872 = vunpack.c.h.b16 %v2768
    %v2873 = vunpack.c.l.b16 %v2769
    %v2874 = vunpack.c.h.b16 %v2769
    %v2875 = vunpack.c.l.b16 %v2770
    %v2876 = vunpack.c.h.b16 %v2770
    %v2877 = vunpack.c.l.b16 %v2771
    %v2878 = vunpack.c.h.b16 %v2771
    %v2879 = vunpack.c.l.b16 %v2772
    %v2880 = vunpack.c.h.b16 %v2772
    %v2881 = vunpack.c.l.b16 %v2773
    %v2882 = vunpack.c.h.b16 %v2773
    %v2883 = vunpack.c.l.b16 %v2774
    %v2884 = vunpack.c.h.b16 %v2774
    %v2885 = vunpack.c.l.b16 %v2775
    %v2886 = vunpack.c.h.b16 %v2775
    %v2887 = vunpack.c.l.b16 %v2776
    %v2888 = vunpack.c.h.b16 %v2776
    %v2889 = vunpack.c.l.b16 %v2777
    %v2890 = vunpack.c.h.b16 %v2777
    %v2891 = vunpack.c.l.b16 %v2778
    %v2892 = vunpack.c.h.b16 %v2778
    %v2893 = vunpack.c.l.b16 %v2779
    %v2894 = vunpack.c.h.b16 %v2779
    %v2895 = vunpack.c.l.b16 %v2780
    %v2896 = vunpack.c.h.b16 %v2780
    %v2897 = vunpack.c.l.b16 %v2781
    %v2898 = vunpack.c.h.b16 %v2781
    %v2899 = vunpack.c.l.b16 %v2782
    %v2900 = vunpack.c.h.b16 %v2782
    %v2901 = vunpack.c.l.b16 %v2783
    %v2902 = vunpack.c.h.b16 %v2783
    %v2903 = vunpack.c.l.b16 %v2784
    %v2904 = vunpack.c.h.b16 %v2784
    %v2905 = vunpack.c.l.b16 %v2785
    %v2906 = vunpack.c.h.b16 %v2785
    %v2907 = vunpack.c.l.b16 %v2786
    %v2908 = vunpack.c.h.b16 %v2786
    %v2909 = vunpack.c.l.b16 %v2787
    %v2910 = vunpack.c.h.b16 %v2787
    %v2911 = vunpack.c.l.b16 %v2788
    %v2912 = vunpack.c.h.b16 %v2788
    %v2913 = vunpack.c.l.b16 %v2789
    %v2914 = vunpack.c.h.b16 %v2789
    %v2915 = vunpack.c.l.b16 %v2790
    %v2916 = vunpack.c.h.b16 %v2790
    %v2917 = vunpack.c.l.b16 %v2791
    %v2918 = vunpack.c.h.b16 %v2791
    %v2919 = vunpack.c.l.b16 %v2792
    %v2920 = vunpack.c.h.b16 %v2792
    %v2921 = vunpack.c.l.b16 %v2793
    %v2922 = vunpack.c.h.b16 %v2793
    %v2923 = vunpack.c.l.b16 %v2794
    %v2924 = vunpack.c.h.b16 %v2794
    %v2925 = vunpack.c.l.b16 %v2795
    %v2926 = vunpack.c.h.b16 %v2795
    %v2927 = vunpack.c.l.b16 %v2796
    %v2928 = vunpack.c.h.b16 %v2796
    %v2929 = vunpack.c.l.b16 %v2797
    %v2930 = vunpack.c.h.b16 %v2797
    %v2931 = vunpack.c.l.b16 %v2798
    %v2932 = vunpack.c.h.b16 %v2798
    %v2933 = vunpack.c.l.b16 %v2799
    %v2934 = vunpack.c.h.b16 %v2799
    %v2935 = vunpack.c.l.b16 %v2800
    %v2936 = vunpack.c.h.b16 %v2800
    %v2937 = vunpack.c.l.b16 %v2801
    %v2938 = vunpack.c.h.b16 %v2801
    %v2939 = vunpack.c.l.b16 %v2802
    %v2940 = vunpack.c.h.b16 %v2802
    %v2941 = vunpack.c.l.b16 %v2803
    %v2942 = vunpack.c.h.b16 %v2803
    %v2943 = vunpack.c.l.b16 %v2804
    %v2944 = vunpack.c.h.b16 %v2804
    %v2945 = vunpack.c.l.b16 %v2805
    %v2946 = vunpack.c.h.b16 %v2805
    %v2947 = vunpack.c.l.b16 %v2806
    %v2948 = vunpack.c.h.b16 %v2806
    %v2949 = vunpack.c.l.b16 %v2807
    %v2950 = vunpack.c.h.b16 %v2807
    %v2951 = vunpack.c.l.b16 %v2808
    %v2952 = vunpack.c.h.b16 %v2808
    %v2953 = vpack.c.b16 %v2859, %v2857
    %v2954 = vpack.c.b16 %v2860, %v2858
    %v2955 = vpack.c.b16 %v2863, %v2861
    %v2956 = vpack.c.b16 %v2864, %v2862
    %v2957 = vpack.c.b16 %v2867, %v2865
    %v2958 = vpack.c.b16 %v2868, %v2866
    %v2959 = vpack.c.b16 %v2871, %v2869
    %v2960 = vpack.c.b16 %v2872, %v2870
    %v2961 = vpack.c.b16 %v2875, %v2873
    %v2962 = vpack.c.b16 %v2876, %v2874
    %v2963 = vpack.c.b16 %v2879, %v2877
    %v2964 = vpack.c.b16 %v2880, %v2878
    %v2965 = vpack.c.b16 %v2883, %v2881
    %v2966 = vpack.c.b16 %v2884, %v2882
    %v2967 = vpack.c.b16 %v2887, %v2885
    %v2968 = vpack.c.b16 %v2888, %v2886
    %v2969 = vpack.c.b16 %v2891, %v2889
    %v2970 = vpack.c.b16 %v2892, %v2890
    %v2971 = vpack.c.b16 %v2895, %v2893
    %v2972 = vpack.c.b16 %v2896, %v2894
    %v2973 = vpack.c.b16 %v2899, %v2897
    %v2974 = vpack.c.b16 %v2900, %v2898
    %v2975 = vpack.c.b16 %v2903, %v2901
    %v2976 = vpack.c.b16 %v2904, %v2902
    %v2977 = vpack.c.b16 %v2907, %v2905
    %v2978 = vpack.c.b16 %v2908, %v2906
    %v2979 = vpack.c.b16 %v2911, %v2909
    %v2980 = vpack.c.b16 %v2912, %v2910
    %v2981 = vpack.c.b16 %v2915, %v2913
    %v2982 = vpack.c.b16 %v2916, %v2914
    %v2983 = vpack.c.b16 %v2919, %v2917
    %v2984 = vpack.c.b16 %v2920, %v2918
    %v2985 = vpack.c.b16 %v2923, %v2921
    %v2986 = vpack.c.b16 %v2924, %v2922
    %v2987 = vpack.c.b16 %v2927, %v2925
    %v2988 = vpack.c.b16 %v2928, %v2926
    %v2989 = vpack.c.b16 %v2931, %v2929
    %v2990 = vpack.c.b16 %v2932, %v2930
    %v2991 = vpack.c.b16 %v2935, %v2933
    %v2992 = vpack.c.b16 %v2936, %v2934
    %v2993 = vpack.c.b16 %v2939, %v2937
    %v2994 = vpack.c.b16 %v2940, %v2938
    %v2995 = vpack.c.b16 %v2943, %v2941
    %v2996 = vpack.c.b16 %v2944, %v2942
    %v2997 = vpack.c.b16 %v2947, %v2945
    %v2998 = vpack.c.b16 %v2948, %v2946
    %v2999 = vpack.c.b16 %v2951, %v2949
    %v3000 = vpack.c.b16 %v2952, %v2950
    %3049 = vmatprep.subr.bf16.mxu0 %v2954
    %3050 = vmatpush1.bf16.msra.mxu0 %v2953
    %3051 = vmatprep.subr.bf16.mxu0 %v2956
    %3052 = vmatpush1.bf16.msra.mxu0 %v2955
    %3053 = vmatprep.subr.bf16.mxu0 %v2958
    %3054 = vmatpush1.bf16.msra.mxu0 %v2957
    %3055 = vmatprep.subr.bf16.mxu0 %v2960
    %3056 = vmatpush1.bf16.msra.mxu0 %v2959
    %3057 = vmatprep.subr.bf16.mxu0 %v2962
    %3058 = vmatpush1.bf16.msra.mxu0 %v2961
    %3059 = vmatprep.subr.bf16.mxu0 %v2964
    %3060 = vmatpush1.bf16.msra.mxu0 %v2963
    %3061 = vmatprep.subr.bf16.mxu0 %v2966
    %3062 = vmatpush1.bf16.msra.mxu0 %v2965
    %3063 = vmatprep.subr.bf16.mxu0 %v2968
    %3064 = vmatpush1.bf16.msra.mxu0 %v2967
    %3065 = vmatprep.subr.bf16.mxu0 %v2970
    %3066 = vmatpush1.bf16.msra.mxu0 %v2969
    %3067 = vmatprep.subr.bf16.mxu0 %v2972
    %3068 = vmatpush1.bf16.msra.mxu0 %v2971
    %3069 = vmatprep.subr.bf16.mxu0 %v2974
    %3070 = vmatpush1.bf16.msra.mxu0 %v2973
    %3071 = vmatprep.subr.bf16.mxu0 %v2976
    %3072 = vmatpush1.bf16.msra.mxu0 %v2975
    %3073 = vmatprep.subr.bf16.mxu0 %v2978
    %3074 = vmatpush1.bf16.msra.mxu0 %v2977
    %3075 = vmatprep.subr.bf16.mxu0 %v2980
    %3076 = vmatpush1.bf16.msra.mxu0 %v2979
    %3077 = vmatprep.subr.bf16.mxu0 %v2982
    %3078 = vmatpush1.bf16.msra.mxu0 %v2981
    %3079 = vmatprep.subr.bf16.mxu0 %v2984
    %3080 = vmatpush1.bf16.msra.mxu0 %v2983
    %3081 = vmatprep.mubr.bf16.mxu0 %v2044
    %3082 = vmatmul.mubr.bf16.gmra.mrb[0].mxu0 %v2043
    %v3083 = vpop.f32.mrb[0].mxu0
    %v3084 = vadd.f32 0.0, %v3083
    %v3085 = vpop.f32.mrb[0].mxu0
    %v3086 = vadd.f32 0.0, %v3085
    %v3087 = vpop.f32.mrb[0].mxu0
    %v3088 = vadd.f32 0.0, %v3087
    %v3089 = vpop.f32.mrb[0].mxu0
    %v3090 = vadd.f32 0.0, %v3089
    %3091 = vmatprep.mubr.bf16.mxu0 %v2047
    %3092 = vmatmul.mubr.bf16.gmra.mrb[0].mxu0 %v2046
    %v3093 = vpop.f32.mrb[0].mxu0
    %v3094 = vadd.f32 0.0, %v3093
    %v3095 = vpop.f32.mrb[0].mxu0
    %v3096 = vadd.f32 0.0, %v3095
    %v3097 = vpop.f32.mrb[0].mxu0
    %v3098 = vadd.f32 0.0, %v3097
    %v3099 = vpop.f32.mrb[0].mxu0
    %v3100 = vadd.f32 0.0, %v3099
    %3101 = vdwg.mxu0
    %3102 = vmatprep.subr.bf16.mxu0 %v2986
    %3103 = vmatpush1.bf16.msra.mxu0 %v2985
    %3104 = vmatprep.subr.bf16.mxu0 %v2988
    %3105 = vmatpush1.bf16.msra.mxu0 %v2987
    %3106 = vmatprep.subr.bf16.mxu0 %v2990
    %3107 = vmatpush1.bf16.msra.mxu0 %v2989
    %3108 = vmatprep.subr.bf16.mxu0 %v2992
    %3109 = vmatpush1.bf16.msra.mxu0 %v2991
    %3110 = vmatprep.subr.bf16.mxu0 %v2994
    %3111 = vmatpush1.bf16.msra.mxu0 %v2993
    %3112 = vmatprep.subr.bf16.mxu0 %v2996
    %3113 = vmatpush1.bf16.msra.mxu0 %v2995
    %3114 = vmatprep.subr.bf16.mxu0 %v2998
    %3115 = vmatpush1.bf16.msra.mxu0 %v2997
    %3116 = vmatprep.subr.bf16.mxu0 %v3000
    %3117 = vmatpush1.bf16.msra.mxu0 %v2999
    %3118 = vmatprep.subr.bf16.mxu0 0
    %3119 = vmatpush1.bf16.msra.mxu0 0
    %3120 = vmatprep.subr.bf16.mxu0 0
    %3121 = vmatpush1.bf16.msra.mxu0 0
    %3122 = vmatprep.subr.bf16.mxu0 0
    %3123 = vmatpush1.bf16.msra.mxu0 0
    %3124 = vmatprep.subr.bf16.mxu0 0
    %3125 = vmatpush1.bf16.msra.mxu0 0
    %3126 = vmatprep.subr.bf16.mxu0 0
    %3127 = vmatpush1.bf16.msra.mxu0 0
    %3128 = vmatprep.subr.bf16.mxu0 0
    %3129 = vmatpush1.bf16.msra.mxu0 0
    %3130 = vmatprep.subr.bf16.mxu0 0
    %3131 = vmatpush1.bf16.msra.mxu0 0
    %3132 = vmatprep.subr.bf16.mxu0 0
    %3133 = vmatpush1.bf16.msra.mxu0 0
    %3134 = vmatprep.mubr.bf16.mxu0 0
    %3135 = vmatmul.mubr.bf16.gmra.mrb[0].mxu0 %v2045
    %v3136 = vpop.f32.mrb[0].mxu0
    %v3137 = vadd.f32 %v3084, %v3136
    %v3138 = vpop.f32.mrb[0].mxu0
    %v3139 = vadd.f32 %v3086, %v3138
    %v3140 = vpop.f32.mrb[0].mxu0
    %v3141 = vadd.f32 %v3088, %v3140
    %v3142 = vpop.f32.mrb[0].mxu0
    %v3143 = vadd.f32 %v3090, %v3142
    %3144 = vmatprep.mubr.bf16.mxu0 0
    %3145 = vmatmul.mubr.bf16.gmra.mrb[0].mxu0 %v2048
    %v3146 = vpop.f32.mrb[0].mxu0
    %v3147 = vadd.f32 %v3094, %v3146
    %v3148 = vpop.f32.mrb[0].mxu0
    %v3149 = vadd.f32 %v3096, %v3148
    %v3150 = vpop.f32.mrb[0].mxu0
    %v3151 = vadd.f32 %v3098, %v3150
    %v3152 = vpop.f32.mrb[0].mxu0
    %v3153 = vadd.f32 %v3100, %v3152
    %3154 = vdwg.mxu0
    %v3155 = vadd.f32 %v2597, %v3137
    %v3156 = vadd.f32 %v2598, %v3139
    %v3157 = vadd.f32 %v2599, %v3141
    %v3158 = vadd.f32 %v2600, %v3143
    %v3159 = vadd.f32 %v2601, %v3147
    %v3160 = vadd.f32 %v2602, %v3149
    %v3161 = vadd.f32 %v2603, %v3151
    %v3162 = vadd.f32 %v2604, %v3153
    %s3163 = scalar_lea.vmem [#allocation8], 192
    %v3164 = vld [vmem:[%s3163] sm:$0xff]
    %v3165 = vld [vmem:[%s3163 + $0x8] sm:$0xf]
    %v3166 = vld [vmem:[%s3163 + $0xc] sm:$0xff]
    %v3167 = vld [vmem:[%s3163 + $0x14] sm:$0xf]
    %v3168 = vld [vmem:[%s3163 + $0x18] sm:$0xff]
    %v3169 = vld [vmem:[%s3163 + $0x20] sm:$0xf]
    %v3170 = vld [vmem:[%s3163 + $0x24] sm:$0xff]
    %v3171 = vld [vmem:[%s3163 + $0x2c] sm:$0xf]
    %v3180 = vunpack.c.l.b16 %v3164
    %v3181 = vunpack.c.h.b16 %v3164
    %v3182 = vunpack.c.l.b16 %v3165
    %v3183 = vunpack.c.l.b16 %v3166
    %v3184 = vunpack.c.h.b16 %v3166
    %v3185 = vunpack.c.l.b16 %v3167
    %v3186 = vunpack.c.l.b16 %v3168
    %v3187 = vunpack.c.h.b16 %v3168
    %v3188 = vunpack.c.l.b16 %v3169
    %v3189 = vunpack.c.l.b16 %v3170
    %v3190 = vunpack.c.h.b16 %v3170
    %v3191 = vunpack.c.l.b16 %v3171
    %v3192 = vpack.c.b16 %v3183, %v3180
    %v3193 = vpack.c.b16 %v3184, %v3181
    %v3194 = vpack.c.b16 %v3185, %v3182
    %v3195 = vpack.c.b16 %v3189, %v3186
    %v3196 = vpack.c.b16 %v3190, %v3187
    %v3197 = vpack.c.b16 %v3191, %v3188
    %3204 = vmatprep.subr.bf16.mxu0 %v2954
    %3205 = vmatpush1.bf16.msra.mxu0 %v2953
    %3206 = vmatprep.subr.bf16.mxu0 %v2956
    %3207 = vmatpush1.bf16.msra.mxu0 %v2955
    %3208 = vmatprep.subr.bf16.mxu0 %v2958
    %3209 = vmatpush1.bf16.msra.mxu0 %v2957
    %3210 = vmatprep.subr.bf16.mxu0 %v2960
    %3211 = vmatpush1.bf16.msra.mxu0 %v2959
    %3212 = vmatprep.subr.bf16.mxu0 %v2962
    %3213 = vmatpush1.bf16.msra.mxu0 %v2961
    %3214 = vmatprep.subr.bf16.mxu0 %v2964
    %3215 = vmatpush1.bf16.msra.mxu0 %v2963
    %3216 = vmatprep.subr.bf16.mxu0 %v2966
    %3217 = vmatpush1.bf16.msra.mxu0 %v2965
    %3218 = vmatprep.subr.bf16.mxu0 %v2968
    %3219 = vmatpush1.bf16.msra.mxu0 %v2967
    %3220 = vmatprep.subr.bf16.mxu0 %v2970
    %3221 = vmatpush1.bf16.msra.mxu0 %v2969
    %3222 = vmatprep.subr.bf16.mxu0 %v2972
    %3223 = vmatpush1.bf16.msra.mxu0 %v2971
    %3224 = vmatprep.subr.bf16.mxu0 %v2974
    %3225 = vmatpush1.bf16.msra.mxu0 %v2973
    %3226 = vmatprep.subr.bf16.mxu0 %v2976
    %3227 = vmatpush1.bf16.msra.mxu0 %v2975
    %3228 = vmatprep.subr.bf16.mxu0 %v2978
    %3229 = vmatpush1.bf16.msra.mxu0 %v2977
    %3230 = vmatprep.subr.bf16.mxu0 %v2980
    %3231 = vmatpush1.bf16.msra.mxu0 %v2979
    %3232 = vmatprep.subr.bf16.mxu0 %v2982
    %3233 = vmatpush1.bf16.msra.mxu0 %v2981
    %3234 = vmatprep.subr.bf16.mxu0 %v2984
    %3235 = vmatpush1.bf16.msra.mxu0 %v2983
    %3236 = vmatprep.mubr.bf16.mxu0 %v3193
    %3237 = vmatmul.mubr.bf16.gmra.mrb[0].mxu0 %v3192
    %v3238 = vpop.f32.mrb[0].mxu0
    %v3239 = vadd.f32 0.0, %v3238
    %v3240 = vpop.f32.mrb[0].mxu0
    %v3241 = vadd.f32 0.0, %v3240
    %v3242 = vpop.f32.mrb[0].mxu0
    %v3243 = vadd.f32 0.0, %v3242
    %v3244 = vpop.f32.mrb[0].mxu0
    %v3245 = vadd.f32 0.0, %v3244
    %3246 = vmatprep.mubr.bf16.mxu0 %v3196
    %3247 = vmatmul.mubr.bf16.gmra.mrb[0].mxu0 %v3195
    %v3248 = vpop.f32.mrb[0].mxu0
    %v3249 = vadd.f32 0.0, %v3248
    %v3250 = vpop.f32.mrb[0].mxu0
    %v3251 = vadd.f32 0.0, %v3250
    %v3252 = vpop.f32.mrb[0].mxu0
    %v3253 = vadd.f32 0.0, %v3252
    %v3254 = vpop.f32.mrb[0].mxu0
    %v3255 = vadd.f32 0.0, %v3254
    %3256 = vdwg.mxu0
    %3257 = vmatprep.subr.bf16.mxu0 %v2986
    %3258 = vmatpush1.bf16.msra.mxu0 %v2985
    %3259 = vmatprep.subr.bf16.mxu0 %v2988
    %3260 = vmatpush1.bf16.msra.mxu0 %v2987
    %3261 = vmatprep.subr.bf16.mxu0 %v2990
    %3262 = vmatpush1.bf16.msra.mxu0 %v2989
    %3263 = vmatprep.subr.bf16.mxu0 %v2992
    %3264 = vmatpush1.bf16.msra.mxu0 %v2991
    %3265 = vmatprep.subr.bf16.mxu0 %v2994
    %3266 = vmatpush1.bf16.msra.mxu0 %v2993
    %3267 = vmatprep.subr.bf16.mxu0 %v2996
    %3268 = vmatpush1.bf16.msra.mxu0 %v2995
    %3269 = vmatprep.subr.bf16.mxu0 %v2998
    %3270 = vmatpush1.bf16.msra.mxu0 %v2997
    %3271 = vmatprep.subr.bf16.mxu0 %v3000
    %3272 = vmatpush1.bf16.msra.mxu0 %v2999
    %3273 = vmatprep.subr.bf16.mxu0 0
    %3274 = vmatpush1.bf16.msra.mxu0 0
    %3275 = vmatprep.subr.bf16.mxu0 0
    %3276 = vmatpush1.bf16.msra.mxu0 0
    %3277 = vmatprep.subr.bf16.mxu0 0
    %3278 = vmatpush1.bf16.msra.mxu0 0
    %3279 = vmatprep.subr.bf16.mxu0 0
    %3280 = vmatpush1.bf16.msra.mxu0 0
    %3281 = vmatprep.subr.bf16.mxu0 0
    %3282 = vmatpush1.bf16.msra.mxu0 0
    %3283 = vmatprep.subr.bf16.mxu0 0
    %3284 = vmatpush1.bf16.msra.mxu0 0
    %3285 = vmatprep.subr.bf16.mxu0 0
    %3286 = vmatpush1.bf16.msra.mxu0 0
    %3287 = vmatprep.subr.bf16.mxu0 0
    %3288 = vmatpush1.bf16.msra.mxu0 0
    %3289 = vmatprep.mubr.bf16.mxu0 0
    %3290 = vmatmul.mubr.bf16.gmra.mrb[0].mxu0 %v3194
    %v3291 = vpop.f32.mrb[0].mxu0
    %v3292 = vadd.f32 %v3239, %v3291
    %v3293 = vpop.f32.mrb[0].mxu0
    %v3294 = vadd.f32 %v3241, %v3293
    %v3295 = vpop.f32.mrb[0].mxu0
    %v3296 = vadd.f32 %v3243, %v3295
    %v3297 = vpop.f32.mrb[0].mxu0
    %v3298 = vadd.f32 %v3245, %v3297
    %3299 = vmatprep.mubr.bf16.mxu0 0
    %3300 = vmatmul.mubr.bf16.gmra.mrb[0].mxu0 %v3197
    %v3301 = vpop.f32.mrb[0].mxu0
    %v3302 = vadd.f32 %v3249, %v3301
    %v3303 = vpop.f32.mrb[0].mxu0
    %v3304 = vadd.f32 %v3251, %v3303
    %v3305 = vpop.f32.mrb[0].mxu0
    %v3306 = vadd.f32 %v3253, %v3305
    %v3307 = vpop.f32.mrb[0].mxu0
    %v3308 = vadd.f32 %v3255, %v3307
    %3309 = vdwg.mxu0
    %v3310 = vadd.f32 %v2752, %v3292
    %v3311 = vadd.f32 %v2753, %v3294
    %v3312 = vadd.f32 %v2754, %v3296
    %v3313 = vadd.f32 %v2755, %v3298
    %v3314 = vadd.f32 %v2756, %v3302
    %v3315 = vadd.f32 %v2757, %v3304
    %v3316 = vadd.f32 %v2758, %v3306
    %v3317 = vadd.f32 %v2759, %v3308
    %s3318 = scalar_lea.vmem %s0, 1536
    %v3319 = vld [vmem:[%s3318] sm:$0xff]
    %v3320 = vld [vmem:[%s3318 + $0x8] sm:$0xff]
    %v3321 = vld [vmem:[%s3318 + $0x10] sm:$0xff]
    %v3322 = vld [vmem:[%s3318 + $0x18] sm:$0xff]
    %v3323 = vld [vmem:[%s3318 + $0x20] sm:$0xff]
    %v3324 = vld [vmem:[%s3318 + $0x28] sm:$0xff]
    %v3325 = vld [vmem:[%s3318 + $0x30] sm:$0xff]
    %v3326 = vld [vmem:[%s3318 + $0x38] sm:$0xff]
    %v3327 = vld [vmem:[%s3318 + $0x40] sm:$0xff]
    %v3328 = vld [vmem:[%s3318 + $0x48] sm:$0xff]
    %v3329 = vld [vmem:[%s3318 + $0x50] sm:$0xff]
    %v3330 = vld [vmem:[%s3318 + $0x58] sm:$0xff]
    %v3331 = vld [vmem:[%s3318 + $0x60] sm:$0xff]
    %v3332 = vld [vmem:[%s3318 + $0x68] sm:$0xff]
    %v3333 = vld [vmem:[%s3318 + $0x70] sm:$0xff]
    %v3334 = vld [vmem:[%s3318 + $0x78] sm:$0xff]
    %v3335 = vld [vmem:[%s3318 + $0x80] sm:$0xff]
    %v3336 = vld [vmem:[%s3318 + $0x88] sm:$0xff]
    %v3337 = vld [vmem:[%s3318 + $0x90] sm:$0xff]
    %v3338 = vld [vmem:[%s3318 + $0x98] sm:$0xff]
    %v3339 = vld [vmem:[%s3318 + $0xa0] sm:$0xff]
    %v3340 = vld [vmem:[%s3318 + $0xa8] sm:$0xff]
    %v3341 = vld [vmem:[%s3318 + $0xb0] sm:$0xff]
    %v3342 = vld [vmem:[%s3318 + $0xb8] sm:$0xff]
    %v3343 = vld [vmem:[%s3318 + $0xc0] sm:$0xff]
    %v3344 = vld [vmem:[%s3318 + $0xc8] sm:$0xff]
    %v3345 = vld [vmem:[%s3318 + $0xd0] sm:$0xff]
    %v3346 = vld [vmem:[%s3318 + $0xd8] sm:$0xff]
    %v3347 = vld [vmem:[%s3318 + $0xe0] sm:$0xff]
    %v3348 = vld [vmem:[%s3318 + $0xe8] sm:$0xff]
    %v3349 = vld [vmem:[%s3318 + $0xf0] sm:$0xff]
    %v3350 = vld [vmem:[%s3318 + $0xf8] sm:$0xff]
    %v3351 = vld [vmem:[%s3318 + $0x100] sm:$0xff]
    %v3352 = vld [vmem:[%s3318 + $0x108] sm:$0xff]
    %v3353 = vld [vmem:[%s3318 + $0x110] sm:$0xff]
    %v3354 = vld [vmem:[%s3318 + $0x118] sm:$0xff]
    %v3355 = vld [vmem:[%s3318 + $0x120] sm:$0xff]
    %v3356 = vld [vmem:[%s3318 + $0x128] sm:$0xff]
    %v3357 = vld [vmem:[%s3318 + $0x130] sm:$0xff]
    %v3358 = vld [vmem:[%s3318 + $0x138] sm:$0xff]
    %v3359 = vld [vmem:[%s3318 + $0x140] sm:$0xff]
    %v3360 = vld [vmem:[%s3318 + $0x148] sm:$0xff]
    %v3361 = vld [vmem:[%s3318 + $0x150] sm:$0xff]
    %v3362 = vld [vmem:[%s3318 + $0x158] sm:$0xff]
    %v3363 = vld [vmem:[%s3318 + $0x160] sm:$0xff]
    %v3364 = vld [vmem:[%s3318 + $0x168] sm:$0xff]
    %v3365 = vld [vmem:[%s3318 + $0x170] sm:$0xff]
    %v3366 = vld [vmem:[%s3318 + $0x178] sm:$0xff]
    %v3415 = vunpack.c.l.b16 %v3319
    %v3416 = vunpack.c.h.b16 %v3319
    %v3417 = vunpack.c.l.b16 %v3320
    %v3418 = vunpack.c.h.b16 %v3320
    %v3419 = vunpack.c.l.b16 %v3321
    %v3420 = vunpack.c.h.b16 %v3321
    %v3421 = vunpack.c.l.b16 %v3322
    %v3422 = vunpack.c.h.b16 %v3322
    %v3423 = vunpack.c.l.b16 %v3323
    %v3424 = vunpack.c.h.b16 %v3323
    %v3425 = vunpack.c.l.b16 %v3324
    %v3426 = vunpack.c.h.b16 %v3324
    %v3427 = vunpack.c.l.b16 %v3325
    %v3428 = vunpack.c.h.b16 %v3325
    %v3429 = vunpack.c.l.b16 %v3326
    %v3430 = vunpack.c.h.b16 %v3326
    %v3431 = vunpack.c.l.b16 %v3327
    %v3432 = vunpack.c.h.b16 %v3327
    %v3433 = vunpack.c.l.b16 %v3328
    %v3434 = vunpack.c.h.b16 %v3328
    %v3435 = vunpack.c.l.b16 %v3329
    %v3436 = vunpack.c.h.b16 %v3329
    %v3437 = vunpack.c.l.b16 %v3330
    %v3438 = vunpack.c.h.b16 %v3330
    %v3439 = vunpack.c.l.b16 %v3331
    %v3440 = vunpack.c.h.b16 %v3331
    %v3441 = vunpack.c.l.b16 %v3332
    %v3442 = vunpack.c.h.b16 %v3332
    %v3443 = vunpack.c.l.b16 %v3333
    %v3444 = vunpack.c.h.b16 %v3333
    %v3445 = vunpack.c.l.b16 %v3334
    %v3446 = vunpack.c.h.b16 %v3334
    %v3447 = vunpack.c.l.b16 %v3335
    %v3448 = vunpack.c.h.b16 %v3335
    %v3449 = vunpack.c.l.b16 %v3336
    %v3450 = vunpack.c.h.b16 %v3336
    %v3451 = vunpack.c.l.b16 %v3337
    %v3452 = vunpack.c.h.b16 %v3337
    %v3453 = vunpack.c.l.b16 %v3338
    %v3454 = vunpack.c.h.b16 %v3338
    %v3455 = vunpack.c.l.b16 %v3339
    %v3456 = vunpack.c.h.b16 %v3339
    %v3457 = vunpack.c.l.b16 %v3340
    %v3458 = vunpack.c.h.b16 %v3340
    %v3459 = vunpack.c.l.b16 %v3341
    %v3460 = vunpack.c.h.b16 %v3341
    %v3461 = vunpack.c.l.b16 %v3342
    %v3462 = vunpack.c.h.b16 %v3342
    %v3463 = vunpack.c.l.b16 %v3343
    %v3464 = vunpack.c.h.b16 %v3343
    %v3465 = vunpack.c.l.b16 %v3344
    %v3466 = vunpack.c.h.b16 %v3344
    %v3467 = vunpack.c.l.b16 %v3345
    %v3468 = vunpack.c.h.b16 %v3345
    %v3469 = vunpack.c.l.b16 %v3346
    %v3470 = vunpack.c.h.b16 %v3346
    %v3471 = vunpack.c.l.b16 %v3347
    %v3472 = vunpack.c.h.b16 %v3347
    %v3473 = vunpack.c.l.b16 %v3348
    %v3474 = vunpack.c.h.b16 %v3348
    %v3475 = vunpack.c.l.b16 %v3349
    %v3476 = vunpack.c.h.b16 %v3349
    %v3477 = vunpack.c.l.b16 %v3350
    %v3478 = vunpack.c.h.b16 %v3350
    %v3479 = vunpack.c.l.b16 %v3351
    %v3480 = vunpack.c.h.b16 %v3351
    %v3481 = vunpack.c.l.b16 %v3352
    %v3482 = vunpack.c.h.b16 %v3352
    %v3483 = vunpack.c.l.b16 %v3353
    %v3484 = vunpack.c.h.b16 %v3353
    %v3485 = vunpack.c.l.b16 %v3354
    %v3486 = vunpack.c.h.b16 %v3354
    %v3487 = vunpack.c.l.b16 %v3355
    %v3488 = vunpack.c.h.b16 %v3355
    %v3489 = vunpack.c.l.b16 %v3356
    %v3490 = vunpack.c.h.b16 %v3356
    %v3491 = vunpack.c.l.b16 %v3357
    %v3492 = vunpack.c.h.b16 %v3357
    %v3493 = vunpack.c.l.b16 %v3358
    %v3494 = vunpack.c.h.b16 %v3358
    %v3495 = vunpack.c.l.b16 %v3359
    %v3496 = vunpack.c.h.b16 %v3359
    %v3497 = vunpack.c.l.b16 %v3360
    %v3498 = vunpack.c.h.b16 %v3360
    %v3499 = vunpack.c.l.b16 %v3361
    %v3500 = vunpack.c.h.b16 %v3361
    %v3501 = vunpack.c.l.b16 %v3362
    %v3502 = vunpack.c.h.b16 %v3362
    %v3503 = vunpack.c.l.b16 %v3363
    %v3504 = vunpack.c.h.b16 %v3363
    %v3505 = vunpack.c.l.b16 %v3364
    %v3506 = vunpack.c.h.b16 %v3364
    %v3507 = vunpack.c.l.b16 %v3365
    %v3508 = vunpack.c.h.b16 %v3365
    %v3509 = vunpack.c.l.b16 %v3366
    %v3510 = vunpack.c.h.b16 %v3366
    %v3511 = vpack.c.b16 %v3417, %v3415
    %v3512 = vpack.c.b16 %v3418, %v3416
    %v3513 = vpack.c.b16 %v3421, %v3419
    %v3514 = vpack.c.b16 %v3422, %v3420
    %v3515 = vpack.c.b16 %v3425, %v3423
    %v3516 = vpack.c.b16 %v3426, %v3424
    %v3517 = vpack.c.b16 %v3429, %v3427
    %v3518 = vpack.c.b16 %v3430, %v3428
    %v3519 = vpack.c.b16 %v3433, %v3431
    %v3520 = vpack.c.b16 %v3434, %v3432
    %v3521 = vpack.c.b16 %v3437, %v3435
    %v3522 = vpack.c.b16 %v3438, %v3436
    %v3523 = vpack.c.b16 %v3441, %v3439
    %v3524 = vpack.c.b16 %v3442, %v3440
    %v3525 = vpack.c.b16 %v3445, %v3443
    %v3526 = vpack.c.b16 %v3446, %v3444
    %v3527 = vpack.c.b16 %v3449, %v3447
    %v3528 = vpack.c.b16 %v3450, %v3448
    %v3529 = vpack.c.b16 %v3453, %v3451
    %v3530 = vpack.c.b16 %v3454, %v3452
    %v3531 = vpack.c.b16 %v3457, %v3455
    %v3532 = vpack.c.b16 %v3458, %v3456
    %v3533 = vpack.c.b16 %v3461, %v3459
    %v3534 = vpack.c.b16 %v3462, %v3460
    %v3535 = vpack.c.b16 %v3465, %v3463
    %v3536 = vpack.c.b16 %v3466, %v3464
    %v3537 = vpack.c.b16 %v3469, %v3467
    %v3538 = vpack.c.b16 %v3470, %v3468
    %v3539 = vpack.c.b16 %v3473, %v3471
    %v3540 = vpack.c.b16 %v3474, %v3472
    %v3541 = vpack.c.b16 %v3477, %v3475
    %v3542 = vpack.c.b16 %v3478, %v3476
    %v3543 = vpack.c.b16 %v3481, %v3479
    %v3544 = vpack.c.b16 %v3482, %v3480
    %v3545 = vpack.c.b16 %v3485, %v3483
    %v3546 = vpack.c.b16 %v3486, %v3484
    %v3547 = vpack.c.b16 %v3489, %v3487
    %v3548 = vpack.c.b16 %v3490, %v3488
    %v3549 = vpack.c.b16 %v3493, %v3491
    %v3550 = vpack.c.b16 %v3494, %v3492
    %v3551 = vpack.c.b16 %v3497, %v3495
    %v3552 = vpack.c.b16 %v3498, %v3496
    %v3553 = vpack.c.b16 %v3501, %v3499
    %v3554 = vpack.c.b16 %v3502, %v3500
    %v3555 = vpack.c.b16 %v3505, %v3503
    %v3556 = vpack.c.b16 %v3506, %v3504
    %v3557 = vpack.c.b16 %v3509, %v3507
    %v3558 = vpack.c.b16 %v3510, %v3508
    %3607 = vmatprep.subr.bf16.mxu0 %v3512
    %3608 = vmatpush1.bf16.msra.mxu0 %v3511
    %3609 = vmatprep.subr.bf16.mxu0 %v3514
    %3610 = vmatpush1.bf16.msra.mxu0 %v3513
    %3611 = vmatprep.subr.bf16.mxu0 %v3516
    %3612 = vmatpush1.bf16.msra.mxu0 %v3515
    %3613 = vmatprep.subr.bf16.mxu0 %v3518
    %3614 = vmatpush1.bf16.msra.mxu0 %v3517
    %3615 = vmatprep.subr.bf16.mxu0 %v3520
    %3616 = vmatpush1.bf16.msra.mxu0 %v3519
    %3617 = vmatprep.subr.bf16.mxu0 %v3522
    %3618 = vmatpush1.bf16.msra.mxu0 %v3521
    %3619 = vmatprep.subr.bf16.mxu0 %v3524
    %3620 = vmatpush1.bf16.msra.mxu0 %v3523
    %3621 = vmatprep.subr.bf16.mxu0 %v3526
    %3622 = vmatpush1.bf16.msra.mxu0 %v3525
    %3623 = vmatprep.subr.bf16.mxu0 %v3528
    %3624 = vmatpush1.bf16.msra.mxu0 %v3527
    %3625 = vmatprep.subr.bf16.mxu0 %v3530
    %3626 = vmatpush1.bf16.msra.mxu0 %v3529
    %3627 = vmatprep.subr.bf16.mxu0 %v3532
    %3628 = vmatpush1.bf16.msra.mxu0 %v3531
    %3629 = vmatprep.subr.bf16.mxu0 %v3534
    %3630 = vmatpush1.bf16.msra.mxu0 %v3533
    %3631 = vmatprep.subr.bf16.mxu0 %v3536
    %3632 = vmatpush1.bf16.msra.mxu0 %v3535
    %3633 = vmatprep.subr.bf16.mxu0 %v3538
    %3634 = vmatpush1.bf16.msra.mxu0 %v3537
    %3635 = vmatprep.subr.bf16.mxu0 %v3540
    %3636 = vmatpush1.bf16.msra.mxu0 %v3539
    %3637 = vmatprep.subr.bf16.mxu0 %v3542
    %3638 = vmatpush1.bf16.msra.mxu0 %v3541
    %3639 = vmatprep.mubr.bf16.mxu0 %v1906
    %3640 = vmatmul.mubr.bf16.gmra.mrb[0].mxu0 %v1905
    %v3641 = vpop.f32.mrb[0].mxu0
    %v3642 = vadd.f32 0.0, %v3641
    %v3643 = vpop.f32.mrb[0].mxu0
    %v3644 = vadd.f32 0.0, %v3643
    %v3645 = vpop.f32.mrb[0].mxu0
    %v3646 = vadd.f32 0.0, %v3645
    %v3647 = vpop.f32.mrb[0].mxu0
    %v3648 = vadd.f32 0.0, %v3647
    %3649 = vmatprep.mubr.bf16.mxu0 %v1909
    %3650 = vmatmul.mubr.bf16.gmra.mrb[0].mxu0 %v1908
    %v3651 = vpop.f32.mrb[0].mxu0
    %v3652 = vadd.f32 0.0, %v3651
    %v3653 = vpop.f32.mrb[0].mxu0
    %v3654 = vadd.f32 0.0, %v3653
    %v3655 = vpop.f32.mrb[0].mxu0
    %v3656 = vadd.f32 0.0, %v3655
    %v3657 = vpop.f32.mrb[0].mxu0
    %v3658 = vadd.f32 0.0, %v3657
    %3659 = vdwg.mxu0
    %3660 = vmatprep.subr.bf16.mxu0 %v3544
    %3661 = vmatpush1.bf16.msra.mxu0 %v3543
    %3662 = vmatprep.subr.bf16.mxu0 %v3546
    %3663 = vmatpush1.bf16.msra.mxu0 %v3545
    %3664 = vmatprep.subr.bf16.mxu0 %v3548
    %3665 = vmatpush1.bf16.msra.mxu0 %v3547
    %3666 = vmatprep.subr.bf16.mxu0 %v3550
    %3667 = vmatpush1.bf16.msra.mxu0 %v3549
    %3668 = vmatprep.subr.bf16.mxu0 %v3552
    %3669 = vmatpush1.bf16.msra.mxu0 %v3551
    %3670 = vmatprep.subr.bf16.mxu0 %v3554
    %3671 = vmatpush1.bf16.msra.mxu0 %v3553
    %3672 = vmatprep.subr.bf16.mxu0 %v3556
    %3673 = vmatpush1.bf16.msra.mxu0 %v3555
    %3674 = vmatprep.subr.bf16.mxu0 %v3558
    %3675 = vmatpush1.bf16.msra.mxu0 %v3557
    %3676 = vmatprep.subr.bf16.mxu0 0
    %3677 = vmatpush1.bf16.msra.mxu0 0
    %3678 = vmatprep.subr.bf16.mxu0 0
    %3679 = vmatpush1.bf16.msra.mxu0 0
    %3680 = vmatprep.subr.bf16.mxu0 0
    %3681 = vmatpush1.bf16.msra.mxu0 0
    %3682 = vmatprep.subr.bf16.mxu0 0
    %3683 = vmatpush1.bf16.msra.mxu0 0
    %3684 = vmatprep.subr.bf16.mxu0 0
    %3685 = vmatpush1.bf16.msra.mxu0 0
    %3686 = vmatprep.subr.bf16.mxu0 0
    %3687 = vmatpush1.bf16.msra.mxu0 0
    %3688 = vmatprep.subr.bf16.mxu0 0
    %3689 = vmatpush1.bf16.msra.mxu0 0
    %3690 = vmatprep.subr.bf16.mxu0 0
    %3691 = vmatpush1.bf16.msra.mxu0 0
    %3692 = vmatprep.mubr.bf16.mxu0 0
    %3693 = vmatmul.mubr.bf16.gmra.mrb[0].mxu0 %v1907
    %v3694 = vpop.f32.mrb[0].mxu0
    %v3695 = vadd.f32 %v3642, %v3694
    %v3696 = vpop.f32.mrb[0].mxu0
    %v3697 = vadd.f32 %v3644, %v3696
    %v3698 = vpop.f32.mrb[0].mxu0
    %v3699 = vadd.f32 %v3646, %v3698
    %v3700 = vpop.f32.mrb[0].mxu0
    %v3701 = vadd.f32 %v3648, %v3700
    %3702 = vmatprep.mubr.bf16.mxu0 0
    %3703 = vmatmul.mubr.bf16.gmra.mrb[0].mxu0 %v1910
    %v3704 = vpop.f32.mrb[0].mxu0
    %v3705 = vadd.f32 %v3652, %v3704
    %v3706 = vpop.f32.mrb[0].mxu0
    %v3707 = vadd.f32 %v3654, %v3706
    %v3708 = vpop.f32.mrb[0].mxu0
    %v3709 = vadd.f32 %v3656, %v3708
    %v3710 = vpop.f32.mrb[0].mxu0
    %v3711 = vadd.f32 %v3658, %v3710
    %3712 = vdwg.mxu0
    %v3713 = vadd.f32 %v3155, %v3695
    %v3714 = vadd.f32 %v3156, %v3697
    %v3715 = vadd.f32 %v3157, %v3699
    %v3716 = vadd.f32 %v3158, %v3701
    %v3717 = vadd.f32 %v3159, %v3705
    %v3718 = vadd.f32 %v3160, %v3707
    %v3719 = vadd.f32 %v3161, %v3709
    %v3720 = vadd.f32 %v3162, %v3711
    %s3721 = scalar_lea.vmem [#allocation8], 216
    %v3722 = vld [vmem:[%s3721] sm:$0xff]
    %v3723 = vld [vmem:[%s3721 + $0x8] sm:$0xf]
    %v3724 = vld [vmem:[%s3721 + $0xc] sm:$0xff]
    %v3725 = vld [vmem:[%s3721 + $0x14] sm:$0xf]
    %v3726 = vld [vmem:[%s3721 + $0x18] sm:$0xff]
    %v3727 = vld [vmem:[%s3721 + $0x20] sm:$0xf]
    %v3728 = vld [vmem:[%s3721 + $0x24] sm:$0xff]
    %v3729 = vld [vmem:[%s3721 + $0x2c] sm:$0xf]
    %v3738 = vunpack.c.l.b16 %v3722
    %v3739 = vunpack.c.h.b16 %v3722
    %v3740 = vunpack.c.l.b16 %v3723
    %v3741 = vunpack.c.l.b16 %v3724
    %v3742 = vunpack.c.h.b16 %v3724
    %v3743 = vunpack.c.l.b16 %v3725
    %v3744 = vunpack.c.l.b16 %v3726
    %v3745 = vunpack.c.h.b16 %v3726
    %v3746 = vunpack.c.l.b16 %v3727
    %v3747 = vunpack.c.l.b16 %v3728
    %v3748 = vunpack.c.h.b16 %v3728
    %v3749 = vunpack.c.l.b16 %v3729
    %v3750 = vpack.c.b16 %v3741, %v3738
    %v3751 = vpack.c.b16 %v3742, %v3739
    %v3752 = vpack.c.b16 %v3743, %v3740
    %v3753 = vpack.c.b16 %v3747, %v3744
    %v3754 = vpack.c.b16 %v3748, %v3745
    %v3755 = vpack.c.b16 %v3749, %v3746
    %3762 = vmatprep.subr.bf16.mxu0 %v3512
    %3763 = vmatpush1.bf16.msra.mxu0 %v3511
    %3764 = vmatprep.subr.bf16.mxu0 %v3514
    %3765 = vmatpush1.bf16.msra.mxu0 %v3513
    %3766 = vmatprep.subr.bf16.mxu0 %v3516
    %3767 = vmatpush1.bf16.msra.mxu0 %v3515
    %3768 = vmatprep.subr.bf16.mxu0 %v3518
    %3769 = vmatpush1.bf16.msra.mxu0 %v3517
    %3770 = vmatprep.subr.bf16.mxu0 %v3520
    %3771 = vmatpush1.bf16.msra.mxu0 %v3519
    %3772 = vmatprep.subr.bf16.mxu0 %v3522
    %3773 = vmatpush1.bf16.msra.mxu0 %v3521
    %3774 = vmatprep.subr.bf16.mxu0 %v3524
    %3775 = vmatpush1.bf16.msra.mxu0 %v3523
    %3776 = vmatprep.subr.bf16.mxu0 %v3526
    %3777 = vmatpush1.bf16.msra.mxu0 %v3525
    %3778 = vmatprep.subr.bf16.mxu0 %v3528
    %3779 = vmatpush1.bf16.msra.mxu0 %v3527
    %3780 = vmatprep.subr.bf16.mxu0 %v3530
    %3781 = vmatpush1.bf16.msra.mxu0 %v3529
    %3782 = vmatprep.subr.bf16.mxu0 %v3532
    %3783 = vmatpush1.bf16.msra.mxu0 %v3531
    %3784 = vmatprep.subr.bf16.mxu0 %v3534
    %3785 = vmatpush1.bf16.msra.mxu0 %v3533
    %3786 = vmatprep.subr.bf16.mxu0 %v3536
    %3787 = vmatpush1.bf16.msra.mxu0 %v3535
    %3788 = vmatprep.subr.bf16.mxu0 %v3538
    %3789 = vmatpush1.bf16.msra.mxu0 %v3537
    %3790 = vmatprep.subr.bf16.mxu0 %v3540
    %3791 = vmatpush1.bf16.msra.mxu0 %v3539
    %3792 = vmatprep.subr.bf16.mxu0 %v3542
    %3793 = vmatpush1.bf16.msra.mxu0 %v3541
    %3794 = vmatprep.mubr.bf16.mxu0 %v3751
    %3795 = vmatmul.mubr.bf16.gmra.mrb[0].mxu0 %v3750
    %v3796 = vpop.f32.mrb[0].mxu0
    %v3797 = vadd.f32 0.0, %v3796
    %v3798 = vpop.f32.mrb[0].mxu0
    %v3799 = vadd.f32 0.0, %v3798
    %v3800 = vpop.f32.mrb[0].mxu0
    %v3801 = vadd.f32 0.0, %v3800
    %v3802 = vpop.f32.mrb[0].mxu0
    %v3803 = vadd.f32 0.0, %v3802
    %3804 = vmatprep.mubr.bf16.mxu0 %v3754
    %3805 = vmatmul.mubr.bf16.gmra.mrb[0].mxu0 %v3753
    %v3806 = vpop.f32.mrb[0].mxu0
    %v3807 = vadd.f32 0.0, %v3806
    %v3808 = vpop.f32.mrb[0].mxu0
    %v3809 = vadd.f32 0.0, %v3808
    %v3810 = vpop.f32.mrb[0].mxu0
    %v3811 = vadd.f32 0.0, %v3810
    %v3812 = vpop.f32.mrb[0].mxu0
    %v3813 = vadd.f32 0.0, %v3812
    %3814 = vdwg.mxu0
    %3815 = vmatprep.subr.bf16.mxu0 %v3544
    %3816 = vmatpush1.bf16.msra.mxu0 %v3543
    %3817 = vmatprep.subr.bf16.mxu0 %v3546
    %3818 = vmatpush1.bf16.msra.mxu0 %v3545
    %3819 = vmatprep.subr.bf16.mxu0 %v3548
    %3820 = vmatpush1.bf16.msra.mxu0 %v3547
    %3821 = vmatprep.subr.bf16.mxu0 %v3550
    %3822 = vmatpush1.bf16.msra.mxu0 %v3549
    %3823 = vmatprep.subr.bf16.mxu0 %v3552
    %3824 = vmatpush1.bf16.msra.mxu0 %v3551
    %3825 = vmatprep.subr.bf16.mxu0 %v3554
    %3826 = vmatpush1.bf16.msra.mxu0 %v3553
    %3827 = vmatprep.subr.bf16.mxu0 %v3556
    %3828 = vmatpush1.bf16.msra.mxu0 %v3555
    %3829 = vmatprep.subr.bf16.mxu0 %v3558
    %3830 = vmatpush1.bf16.msra.mxu0 %v3557
    %3831 = vmatprep.subr.bf16.mxu0 0
    %3832 = vmatpush1.bf16.msra.mxu0 0
    %3833 = vmatprep.subr.bf16.mxu0 0
    %3834 = vmatpush1.bf16.msra.mxu0 0
    %3835 = vmatprep.subr.bf16.mxu0 0
    %3836 = vmatpush1.bf16.msra.mxu0 0
    %3837 = vmatprep.subr.bf16.mxu0 0
    %3838 = vmatpush1.bf16.msra.mxu0 0
    %3839 = vmatprep.subr.bf16.mxu0 0
    %3840 = vmatpush1.bf16.msra.mxu0 0
    %3841 = vmatprep.subr.bf16.mxu0 0
    %3842 = vmatpush1.bf16.msra.mxu0 0
    %3843 = vmatprep.subr.bf16.mxu0 0
    %3844 = vmatpush1.bf16.msra.mxu0 0
    %3845 = vmatprep.subr.bf16.mxu0 0
    %3846 = vmatpush1.bf16.msra.mxu0 0
    %3847 = vmatprep.mubr.bf16.mxu0 0
    %3848 = vmatmul.mubr.bf16.gmra.mrb[0].mxu0 %v3752
    %v3849 = vpop.f32.mrb[0].mxu0
    %v3850 = vadd.f32 %v3797, %v3849
    %v3851 = vpop.f32.mrb[0].mxu0
    %v3852 = vadd.f32 %v3799, %v3851
    %v3853 = vpop.f32.mrb[0].mxu0
    %v3854 = vadd.f32 %v3801, %v3853
    %v3855 = vpop.f32.mrb[0].mxu0
    %v3856 = vadd.f32 %v3803, %v3855
    %3857 = vmatprep.mubr.bf16.mxu0 0
    %3858 = vmatmul.mubr.bf16.gmra.mrb[0].mxu0 %v3755
    %v3859 = vpop.f32.mrb[0].mxu0
    %v3860 = vadd.f32 %v3807, %v3859
    %v3861 = vpop.f32.mrb[0].mxu0
    %v3862 = vadd.f32 %v3809, %v3861
    %v3863 = vpop.f32.mrb[0].mxu0
    %v3864 = vadd.f32 %v3811, %v3863
    %v3865 = vpop.f32.mrb[0].mxu0
    %v3866 = vadd.f32 %v3813, %v3865
    %3867 = vdwg.mxu0
    %v3868 = vadd.f32 %v3310, %v3850
    %v3869 = vadd.f32 %v3311, %v3852
    %v3870 = vadd.f32 %v3312, %v3854
    %v3871 = vadd.f32 %v3313, %v3856
    %v3872 = vadd.f32 %v3314, %v3860
    %v3873 = vadd.f32 %v3315, %v3862
    %v3874 = vadd.f32 %v3316, %v3864
    %v3875 = vadd.f32 %v3317, %v3866
    %s3876 = scalar_lea.vmem %s0, 1920
    %v3877 = vld [vmem:[%s3876] sm:$0xff]
    %v3878 = vld [vmem:[%s3876 + $0x8] sm:$0xff]
    %v3879 = vld [vmem:[%s3876 + $0x10] sm:$0xff]
    %v3880 = vld [vmem:[%s3876 + $0x18] sm:$0xff]
    %v3881 = vld [vmem:[%s3876 + $0x20] sm:$0xff]
    %v3882 = vld [vmem:[%s3876 + $0x28] sm:$0xff]
    %v3883 = vld [vmem:[%s3876 + $0x30] sm:$0xff]
    %v3884 = vld [vmem:[%s3876 + $0x38] sm:$0xff]
    %v3885 = vld [vmem:[%s3876 + $0x40] sm:$0xff]
    %v3886 = vld [vmem:[%s3876 + $0x48] sm:$0xff]
    %v3887 = vld [vmem:[%s3876 + $0x50] sm:$0xff]
    %v3888 = vld [vmem:[%s3876 + $0x58] sm:$0xff]
    %v3889 = vld [vmem:[%s3876 + $0x60] sm:$0xff]
    %v3890 = vld [vmem:[%s3876 + $0x68] sm:$0xff]
    %v3891 = vld [vmem:[%s3876 + $0x70] sm:$0xff]
    %v3892 = vld [vmem:[%s3876 + $0x78] sm:$0xff]
    %v3893 = vld [vmem:[%s3876 + $0x80] sm:$0xff]
    %v3894 = vld [vmem:[%s3876 + $0x88] sm:$0xff]
    %v3895 = vld [vmem:[%s3876 + $0x90] sm:$0xff]
    %v3896 = vld [vmem:[%s3876 + $0x98] sm:$0xff]
    %v3897 = vld [vmem:[%s3876 + $0xa0] sm:$0xff]
    %v3898 = vld [vmem:[%s3876 + $0xa8] sm:$0xff]
    %v3899 = vld [vmem:[%s3876 + $0xb0] sm:$0xff]
    %v3900 = vld [vmem:[%s3876 + $0xb8] sm:$0xff]
    %v3901 = vld [vmem:[%s3876 + $0xc0] sm:$0xff]
    %v3902 = vld [vmem:[%s3876 + $0xc8] sm:$0xff]
    %v3903 = vld [vmem:[%s3876 + $0xd0] sm:$0xff]
    %v3904 = vld [vmem:[%s3876 + $0xd8] sm:$0xff]
    %v3905 = vld [vmem:[%s3876 + $0xe0] sm:$0xff]
    %v3906 = vld [vmem:[%s3876 + $0xe8] sm:$0xff]
    %v3907 = vld [vmem:[%s3876 + $0xf0] sm:$0xff]
    %v3908 = vld [vmem:[%s3876 + $0xf8] sm:$0xff]
    %v3909 = vld [vmem:[%s3876 + $0x100] sm:$0xff]
    %v3910 = vld [vmem:[%s3876 + $0x108] sm:$0xff]
    %v3911 = vld [vmem:[%s3876 + $0x110] sm:$0xff]
    %v3912 = vld [vmem:[%s3876 + $0x118] sm:$0xff]
    %v3913 = vld [vmem:[%s3876 + $0x120] sm:$0xff]
    %v3914 = vld [vmem:[%s3876 + $0x128] sm:$0xff]
    %v3915 = vld [vmem:[%s3876 + $0x130] sm:$0xff]
    %v3916 = vld [vmem:[%s3876 + $0x138] sm:$0xff]
    %v3917 = vld [vmem:[%s3876 + $0x140] sm:$0xff]
    %v3918 = vld [vmem:[%s3876 + $0x148] sm:$0xff]
    %v3919 = vld [vmem:[%s3876 + $0x150] sm:$0xff]
    %v3920 = vld [vmem:[%s3876 + $0x158] sm:$0xff]
    %v3921 = vld [vmem:[%s3876 + $0x160] sm:$0xff]
    %v3922 = vld [vmem:[%s3876 + $0x168] sm:$0xff]
    %v3923 = vld [vmem:[%s3876 + $0x170] sm:$0xff]
    %v3924 = vld [vmem:[%s3876 + $0x178] sm:$0xff]
    %v3973 = vunpack.c.l.b16 %v3877
    %v3974 = vunpack.c.h.b16 %v3877
    %v3975 = vunpack.c.l.b16 %v3878
    %v3976 = vunpack.c.h.b16 %v3878
    %v3977 = vunpack.c.l.b16 %v3879
    %v3978 = vunpack.c.h.b16 %v3879
    %v3979 = vunpack.c.l.b16 %v3880
    %v3980 = vunpack.c.h.b16 %v3880
    %v3981 = vunpack.c.l.b16 %v3881
    %v3982 = vunpack.c.h.b16 %v3881
    %v3983 = vunpack.c.l.b16 %v3882
    %v3984 = vunpack.c.h.b16 %v3882
    %v3985 = vunpack.c.l.b16 %v3883
    %v3986 = vunpack.c.h.b16 %v3883
    %v3987 = vunpack.c.l.b16 %v3884
    %v3988 = vunpack.c.h.b16 %v3884
    %v3989 = vunpack.c.l.b16 %v3885
    %v3990 = vunpack.c.h.b16 %v3885
    %v3991 = vunpack.c.l.b16 %v3886
    %v3992 = vunpack.c.h.b16 %v3886
    %v3993 = vunpack.c.l.b16 %v3887
    %v3994 = vunpack.c.h.b16 %v3887
    %v3995 = vunpack.c.l.b16 %v3888
    %v3996 = vunpack.c.h.b16 %v3888
    %v3997 = vunpack.c.l.b16 %v3889
    %v3998 = vunpack.c.h.b16 %v3889
    %v3999 = vunpack.c.l.b16 %v3890
    %v4000 = vunpack.c.h.b16 %v3890
    %v4001 = vunpack.c.l.b16 %v3891
    %v4002 = vunpack.c.h.b16 %v3891
    %v4003 = vunpack.c.l.b16 %v3892
    %v4004 = vunpack.c.h.b16 %v3892
    %v4005 = vunpack.c.l.b16 %v3893
    %v4006 = vunpack.c.h.b16 %v3893
    %v4007 = vunpack.c.l.b16 %v3894
    %v4008 = vunpack.c.h.b16 %v3894
    %v4009 = vunpack.c.l.b16 %v3895
    %v4010 = vunpack.c.h.b16 %v3895
    %v4011 = vunpack.c.l.b16 %v3896
    %v4012 = vunpack.c.h.b16 %v3896
    %v4013 = vunpack.c.l.b16 %v3897
    %v4014 = vunpack.c.h.b16 %v3897
    %v4015 = vunpack.c.l.b16 %v3898
    %v4016 = vunpack.c.h.b16 %v3898
    %v4017 = vunpack.c.l.b16 %v3899
    %v4018 = vunpack.c.h.b16 %v3899
    %v4019 = vunpack.c.l.b16 %v3900
    %v4020 = vunpack.c.h.b16 %v3900
    %v4021 = vunpack.c.l.b16 %v3901
    %v4022 = vunpack.c.h.b16 %v3901
    %v4023 = vunpack.c.l.b16 %v3902
    %v4024 = vunpack.c.h.b16 %v3902
    %v4025 = vunpack.c.l.b16 %v3903
    %v4026 = vunpack.c.h.b16 %v3903
    %v4027 = vunpack.c.l.b16 %v3904
    %v4028 = vunpack.c.h.b16 %v3904
    %v4029 = vunpack.c.l.b16 %v3905
    %v4030 = vunpack.c.h.b16 %v3905
    %v4031 = vunpack.c.l.b16 %v3906
    %v4032 = vunpack.c.h.b16 %v3906
    %v4033 = vunpack.c.l.b16 %v3907
    %v4034 = vunpack.c.h.b16 %v3907
    %v4035 = vunpack.c.l.b16 %v3908
    %v4036 = vunpack.c.h.b16 %v3908
    %v4037 = vunpack.c.l.b16 %v3909
    %v4038 = vunpack.c.h.b16 %v3909
    %v4039 = vunpack.c.l.b16 %v3910
    %v4040 = vunpack.c.h.b16 %v3910
    %v4041 = vunpack.c.l.b16 %v3911
    %v4042 = vunpack.c.h.b16 %v3911
    %v4043 = vunpack.c.l.b16 %v3912
    %v4044 = vunpack.c.h.b16 %v3912
    %v4045 = vunpack.c.l.b16 %v3913
    %v4046 = vunpack.c.h.b16 %v3913
    %v4047 = vunpack.c.l.b16 %v3914
    %v4048 = vunpack.c.h.b16 %v3914
    %v4049 = vunpack.c.l.b16 %v3915
    %v4050 = vunpack.c.h.b16 %v3915
    %v4051 = vunpack.c.l.b16 %v3916
    %v4052 = vunpack.c.h.b16 %v3916
    %v4053 = vunpack.c.l.b16 %v3917
    %v4054 = vunpack.c.h.b16 %v3917
    %v4055 = vunpack.c.l.b16 %v3918
    %v4056 = vunpack.c.h.b16 %v3918
    %v4057 = vunpack.c.l.b16 %v3919
    %v4058 = vunpack.c.h.b16 %v3919
    %v4059 = vunpack.c.l.b16 %v3920
    %v4060 = vunpack.c.h.b16 %v3920
    %v4061 = vunpack.c.l.b16 %v3921
    %v4062 = vunpack.c.h.b16 %v3921
    %v4063 = vunpack.c.l.b16 %v3922
    %v4064 = vunpack.c.h.b16 %v3922
    %v4065 = vunpack.c.l.b16 %v3923
    %v4066 = vunpack.c.h.b16 %v3923
    %v4067 = vunpack.c.l.b16 %v3924
    %v4068 = vunpack.c.h.b16 %v3924
    %v4069 = vpack.c.b16 %v3975, %v3973
    %v4070 = vpack.c.b16 %v3976, %v3974
    %v4071 = vpack.c.b16 %v3979, %v3977
    %v4072 = vpack.c.b16 %v3980, %v3978
    %v4073 = vpack.c.b16 %v3983, %v3981
    %v4074 = vpack.c.b16 %v3984, %v3982
    %v4075 = vpack.c.b16 %v3987, %v3985
    %v4076 = vpack.c.b16 %v3988, %v3986
    %v4077 = vpack.c.b16 %v3991, %v3989
    %v4078 = vpack.c.b16 %v3992, %v3990
    %v4079 = vpack.c.b16 %v3995, %v3993
    %v4080 = vpack.c.b16 %v3996, %v3994
    %v4081 = vpack.c.b16 %v3999, %v3997
    %v4082 = vpack.c.b16 %v4000, %v3998
    %v4083 = vpack.c.b16 %v4003, %v4001
    %v4084 = vpack.c.b16 %v4004, %v4002
    %v4085 = vpack.c.b16 %v4007, %v4005
    %v4086 = vpack.c.b16 %v4008, %v4006
    %v4087 = vpack.c.b16 %v4011, %v4009
    %v4088 = vpack.c.b16 %v4012, %v4010
    %v4089 = vpack.c.b16 %v4015, %v4013
    %v4090 = vpack.c.b16 %v4016, %v4014
    %v4091 = vpack.c.b16 %v4019, %v4017
    %v4092 = vpack.c.b16 %v4020, %v4018
    %v4093 = vpack.c.b16 %v4023, %v4021
    %v4094 = vpack.c.b16 %v4024, %v4022
    %v4095 = vpack.c.b16 %v4027, %v4025
    %v4096 = vpack.c.b16 %v4028, %v4026
    %v4097 = vpack.c.b16 %v4031, %v4029
    %v4098 = vpack.c.b16 %v4032, %v4030
    %v4099 = vpack.c.b16 %v4035, %v4033
    %v4100 = vpack.c.b16 %v4036, %v4034
    %v4101 = vpack.c.b16 %v4039, %v4037
    %v4102 = vpack.c.b16 %v4040, %v4038
    %v4103 = vpack.c.b16 %v4043, %v4041
    %v4104 = vpack.c.b16 %v4044, %v4042
    %v4105 = vpack.c.b16 %v4047, %v4045
    %v4106 = vpack.c.b16 %v4048, %v4046
    %v4107 = vpack.c.b16 %v4051, %v4049
    %v4108 = vpack.c.b16 %v4052, %v4050
    %v4109 = vpack.c.b16 %v4055, %v4053
    %v4110 = vpack.c.b16 %v4056, %v4054
    %v4111 = vpack.c.b16 %v4059, %v4057
    %v4112 = vpack.c.b16 %v4060, %v4058
    %v4113 = vpack.c.b16 %v4063, %v4061
    %v4114 = vpack.c.b16 %v4064, %v4062
    %v4115 = vpack.c.b16 %v4067, %v4065
    %v4116 = vpack.c.b16 %v4068, %v4066
    %4165 = vmatprep.subr.bf16.mxu0 %v4070
    %4166 = vmatpush1.bf16.msra.mxu0 %v4069
    %4167 = vmatprep.subr.bf16.mxu0 %v4072
    %4168 = vmatpush1.bf16.msra.mxu0 %v4071
    %4169 = vmatprep.subr.bf16.mxu0 %v4074
    %4170 = vmatpush1.bf16.msra.mxu0 %v4073
    %4171 = vmatprep.subr.bf16.mxu0 %v4076
    %4172 = vmatpush1.bf16.msra.mxu0 %v4075
    %4173 = vmatprep.subr.bf16.mxu0 %v4078
    %4174 = vmatpush1.bf16.msra.mxu0 %v4077
    %4175 = vmatprep.subr.bf16.mxu0 %v4080
    %4176 = vmatpush1.bf16.msra.mxu0 %v4079
    %4177 = vmatprep.subr.bf16.mxu0 %v4082
    %4178 = vmatpush1.bf16.msra.mxu0 %v4081
    %4179 = vmatprep.subr.bf16.mxu0 %v4084
    %4180 = vmatpush1.bf16.msra.mxu0 %v4083
    %4181 = vmatprep.subr.bf16.mxu0 %v4086
    %4182 = vmatpush1.bf16.msra.mxu0 %v4085
    %4183 = vmatprep.subr.bf16.mxu0 %v4088
    %4184 = vmatpush1.bf16.msra.mxu0 %v4087
    %4185 = vmatprep.subr.bf16.mxu0 %v4090
    %4186 = vmatpush1.bf16.msra.mxu0 %v4089
    %4187 = vmatprep.subr.bf16.mxu0 %v4092
    %4188 = vmatpush1.bf16.msra.mxu0 %v4091
    %4189 = vmatprep.subr.bf16.mxu0 %v4094
    %4190 = vmatpush1.bf16.msra.mxu0 %v4093
    %4191 = vmatprep.subr.bf16.mxu0 %v4096
    %4192 = vmatpush1.bf16.msra.mxu0 %v4095
    %4193 = vmatprep.subr.bf16.mxu0 %v4098
    %4194 = vmatpush1.bf16.msra.mxu0 %v4097
    %4195 = vmatprep.subr.bf16.mxu0 %v4100
    %4196 = vmatpush1.bf16.msra.mxu0 %v4099
    %4197 = vmatprep.mubr.bf16.mxu0 %v2635
    %4198 = vmatmul.mubr.bf16.gmra.mrb[0].mxu0 %v2634
    %v4199 = vpop.f32.mrb[0].mxu0
    %v4200 = vadd.f32 0.0, %v4199
    %v4201 = vpop.f32.mrb[0].mxu0
    %v4202 = vadd.f32 0.0, %v4201
    %v4203 = vpop.f32.mrb[0].mxu0
    %v4204 = vadd.f32 0.0, %v4203
    %v4205 = vpop.f32.mrb[0].mxu0
    %v4206 = vadd.f32 0.0, %v4205
    %4207 = vmatprep.mubr.bf16.mxu0 %v2638
    %4208 = vmatmul.mubr.bf16.gmra.mrb[0].mxu0 %v2637
    %v4209 = vpop.f32.mrb[0].mxu0
    %v4210 = vadd.f32 0.0, %v4209
    %v4211 = vpop.f32.mrb[0].mxu0
    %v4212 = vadd.f32 0.0, %v4211
    %v4213 = vpop.f32.mrb[0].mxu0
    %v4214 = vadd.f32 0.0, %v4213
    %v4215 = vpop.f32.mrb[0].mxu0
    %v4216 = vadd.f32 0.0, %v4215
    %4217 = vdwg.mxu0
    %4218 = vmatprep.subr.bf16.mxu0 %v4102
    %4219 = vmatpush1.bf16.msra.mxu0 %v4101
    %4220 = vmatprep.subr.bf16.mxu0 %v4104
    %4221 = vmatpush1.bf16.msra.mxu0 %v4103
    %4222 = vmatprep.subr.bf16.mxu0 %v4106
    %4223 = vmatpush1.bf16.msra.mxu0 %v4105
    %4224 = vmatprep.subr.bf16.mxu0 %v4108
    %4225 = vmatpush1.bf16.msra.mxu0 %v4107
    %4226 = vmatprep.subr.bf16.mxu0 %v4110
    %4227 = vmatpush1.bf16.msra.mxu0 %v4109
    %4228 = vmatprep.subr.bf16.mxu0 %v4112
    %4229 = vmatpush1.bf16.msra.mxu0 %v4111
    %4230 = vmatprep.subr.bf16.mxu0 %v4114
    %4231 = vmatpush1.bf16.msra.mxu0 %v4113
    %4232 = vmatprep.subr.bf16.mxu0 %v4116
    %4233 = vmatpush1.bf16.msra.mxu0 %v4115
    %4234 = vmatprep.subr.bf16.mxu0 0
    %4235 = vmatpush1.bf16.msra.mxu0 0
    %4236 = vmatprep.subr.bf16.mxu0 0
    %4237 = vmatpush1.bf16.msra.mxu0 0
    %4238 = vmatprep.subr.bf16.mxu0 0
    %4239 = vmatpush1.bf16.msra.mxu0 0
    %4240 = vmatprep.subr.bf16.mxu0 0
    %4241 = vmatpush1.bf16.msra.mxu0 0
    %4242 = vmatprep.subr.bf16.mxu0 0
    %4243 = vmatpush1.bf16.msra.mxu0 0
    %4244 = vmatprep.subr.bf16.mxu0 0
    %4245 = vmatpush1.bf16.msra.mxu0 0
    %4246 = vmatprep.subr.bf16.mxu0 0
    %4247 = vmatpush1.bf16.msra.mxu0 0
    %4248 = vmatprep.subr.bf16.mxu0 0
    %4249 = vmatpush1.bf16.msra.mxu0 0
    %4250 = vmatprep.mubr.bf16.mxu0 0
    %4251 = vmatmul.mubr.bf16.gmra.mrb[0].mxu0 %v2636
    %v4252 = vpop.f32.mrb[0].mxu0
    %v4253 = vadd.f32 %v4200, %v4252
    %v4254 = vpop.f32.mrb[0].mxu0
    %v4255 = vadd.f32 %v4202, %v4254
    %v4256 = vpop.f32.mrb[0].mxu0
    %v4257 = vadd.f32 %v4204, %v4256
    %v4258 = vpop.f32.mrb[0].mxu0
    %v4259 = vadd.f32 %v4206, %v4258
    %4260 = vmatprep.mubr.bf16.mxu0 0
    %4261 = vmatmul.mubr.bf16.gmra.mrb[0].mxu0 %v2639
    %v4262 = vpop.f32.mrb[0].mxu0
    %v4263 = vadd.f32 %v4210, %v4262
    %v4264 = vpop.f32.mrb[0].mxu0
    %v4265 = vadd.f32 %v4212, %v4264
    %v4266 = vpop.f32.mrb[0].mxu0
    %v4267 = vadd.f32 %v4214, %v4266
    %v4268 = vpop.f32.mrb[0].mxu0
    %v4269 = vadd.f32 %v4216, %v4268
    %4270 = vdwg.mxu0
    %v4271 = vadd.f32 %v3713, %v4253
    %v4272 = vadd.f32 %v3714, %v4255
    %v4273 = vadd.f32 %v3715, %v4257
    %v4274 = vadd.f32 %v3716, %v4259
    %v4275 = vadd.f32 %v3717, %v4263
    %v4276 = vadd.f32 %v3718, %v4265
    %v4277 = vadd.f32 %v3719, %v4267
    %v4278 = vadd.f32 %v3720, %v4269
    %s4279 = scalar_lea.vmem [#allocation8], 240
    %v4280 = vld [vmem:[%s4279] sm:$0xff]
    %v4281 = vld [vmem:[%s4279 + $0x8] sm:$0xf]
    %v4282 = vld [vmem:[%s4279 + $0xc] sm:$0xff]
    %v4283 = vld [vmem:[%s4279 + $0x14] sm:$0xf]
    %v4284 = vld [vmem:[%s4279 + $0x18] sm:$0xff]
    %v4285 = vld [vmem:[%s4279 + $0x20] sm:$0xf]
    %v4286 = vld [vmem:[%s4279 + $0x24] sm:$0xff]
    %v4287 = vld [vmem:[%s4279 + $0x2c] sm:$0xf]
    %v4296 = vunpack.c.l.b16 %v4280
    %v4297 = vunpack.c.h.b16 %v4280
    %v4298 = vunpack.c.l.b16 %v4281
    %v4299 = vunpack.c.l.b16 %v4282
    %v4300 = vunpack.c.h.b16 %v4282
    %v4301 = vunpack.c.l.b16 %v4283
    %v4302 = vunpack.c.l.b16 %v4284
    %v4303 = vunpack.c.h.b16 %v4284
    %v4304 = vunpack.c.l.b16 %v4285
    %v4305 = vunpack.c.l.b16 %v4286
    %v4306 = vunpack.c.h.b16 %v4286
    %v4307 = vunpack.c.l.b16 %v4287
    %v4308 = vpack.c.b16 %v4299, %v4296
    %v4309 = vpack.c.b16 %v4300, %v4297
    %v4310 = vpack.c.b16 %v4301, %v4298
    %v4311 = vpack.c.b16 %v4305, %v4302
    %v4312 = vpack.c.b16 %v4306, %v4303
    %v4313 = vpack.c.b16 %v4307, %v4304
    %4320 = vmatprep.subr.bf16.mxu0 %v4070
    %4321 = vmatpush1.bf16.msra.mxu0 %v4069
    %4322 = vmatprep.subr.bf16.mxu0 %v4072
    %4323 = vmatpush1.bf16.msra.mxu0 %v4071
    %4324 = vmatprep.subr.bf16.mxu0 %v4074
    %4325 = vmatpush1.bf16.msra.mxu0 %v4073
    %4326 = vmatprep.subr.bf16.mxu0 %v4076
    %4327 = vmatpush1.bf16.msra.mxu0 %v4075
    %4328 = vmatprep.subr.bf16.mxu0 %v4078
    %4329 = vmatpush1.bf16.msra.mxu0 %v4077
    %4330 = vmatprep.subr.bf16.mxu0 %v4080
    %4331 = vmatpush1.bf16.msra.mxu0 %v4079
    %4332 = vmatprep.subr.bf16.mxu0 %v4082
    %4333 = vmatpush1.bf16.msra.mxu0 %v4081
    %4334 = vmatprep.subr.bf16.mxu0 %v4084
    %4335 = vmatpush1.bf16.msra.mxu0 %v4083
    %4336 = vmatprep.subr.bf16.mxu0 %v4086
    %4337 = vmatpush1.bf16.msra.mxu0 %v4085
    %4338 = vmatprep.subr.bf16.mxu0 %v4088
    %4339 = vmatpush1.bf16.msra.mxu0 %v4087
    %4340 = vmatprep.subr.bf16.mxu0 %v4090
    %4341 = vmatpush1.bf16.msra.mxu0 %v4089
    %4342 = vmatprep.subr.bf16.mxu0 %v4092
    %4343 = vmatpush1.bf16.msra.mxu0 %v4091
    %4344 = vmatprep.subr.bf16.mxu0 %v4094
    %4345 = vmatpush1.bf16.msra.mxu0 %v4093
    %4346 = vmatprep.subr.bf16.mxu0 %v4096
    %4347 = vmatpush1.bf16.msra.mxu0 %v4095
    %4348 = vmatprep.subr.bf16.mxu0 %v4098
    %4349 = vmatpush1.bf16.msra.mxu0 %v4097
    %4350 = vmatprep.subr.bf16.mxu0 %v4100
    %4351 = vmatpush1.bf16.msra.mxu0 %v4099
    %4352 = vmatprep.mubr.bf16.mxu0 %v4309
    %4353 = vmatmul.mubr.bf16.gmra.mrb[0].mxu0 %v4308
    %v4354 = vpop.f32.mrb[0].mxu0
    %v4355 = vadd.f32 0.0, %v4354
    %v4356 = vpop.f32.mrb[0].mxu0
    %v4357 = vadd.f32 0.0, %v4356
    %v4358 = vpop.f32.mrb[0].mxu0
    %v4359 = vadd.f32 0.0, %v4358
    %v4360 = vpop.f32.mrb[0].mxu0
    %v4361 = vadd.f32 0.0, %v4360
    %4362 = vmatprep.mubr.bf16.mxu0 %v4312
    %4363 = vmatmul.mubr.bf16.gmra.mrb[0].mxu0 %v4311
    %v4364 = vpop.f32.mrb[0].mxu0
    %v4365 = vadd.f32 0.0, %v4364
    %v4366 = vpop.f32.mrb[0].mxu0
    %v4367 = vadd.f32 0.0, %v4366
    %v4368 = vpop.f32.mrb[0].mxu0
    %v4369 = vadd.f32 0.0, %v4368
    %v4370 = vpop.f32.mrb[0].mxu0
    %v4371 = vadd.f32 0.0, %v4370
    %4372 = vdwg.mxu0
    %4373 = vmatprep.subr.bf16.mxu0 %v4102
    %4374 = vmatpush1.bf16.msra.mxu0 %v4101
    %4375 = vmatprep.subr.bf16.mxu0 %v4104
    %4376 = vmatpush1.bf16.msra.mxu0 %v4103
    %4377 = vmatprep.subr.bf16.mxu0 %v4106
    %4378 = vmatpush1.bf16.msra.mxu0 %v4105
    %4379 = vmatprep.subr.bf16.mxu0 %v4108
    %4380 = vmatpush1.bf16.msra.mxu0 %v4107
    %4381 = vmatprep.subr.bf16.mxu0 %v4110
    %4382 = vmatpush1.bf16.msra.mxu0 %v4109
    %4383 = vmatprep.subr.bf16.mxu0 %v4112
    %4384 = vmatpush1.bf16.msra.mxu0 %v4111
    %4385 = vmatprep.subr.bf16.mxu0 %v4114
    %4386 = vmatpush1.bf16.msra.mxu0 %v4113
    %4387 = vmatprep.subr.bf16.mxu0 %v4116
    %4388 = vmatpush1.bf16.msra.mxu0 %v4115
    %4389 = vmatprep.subr.bf16.mxu0 0
    %4390 = vmatpush1.bf16.msra.mxu0 0
    %4391 = vmatprep.subr.bf16.mxu0 0
    %4392 = vmatpush1.bf16.msra.mxu0 0
    %4393 = vmatprep.subr.bf16.mxu0 0
    %4394 = vmatpush1.bf16.msra.mxu0 0
    %4395 = vmatprep.subr.bf16.mxu0 0
    %4396 = vmatpush1.bf16.msra.mxu0 0
    %4397 = vmatprep.subr.bf16.mxu0 0
    %4398 = vmatpush1.bf16.msra.mxu0 0
    %4399 = vmatprep.subr.bf16.mxu0 0
    %4400 = vmatpush1.bf16.msra.mxu0 0
    %4401 = vmatprep.subr.bf16.mxu0 0
    %4402 = vmatpush1.bf16.msra.mxu0 0
    %4403 = vmatprep.subr.bf16.mxu0 0
    %4404 = vmatpush1.bf16.msra.mxu0 0
    %4405 = vmatprep.mubr.bf16.mxu0 0
    %4406 = vmatmul.mubr.bf16.gmra.mrb[0].mxu0 %v4310
    %v4407 = vpop.f32.mrb[0].mxu0
    %v4408 = vadd.f32 %v4355, %v4407
    %v4409 = vpop.f32.mrb[0].mxu0
    %v4410 = vadd.f32 %v4357, %v4409
    %v4411 = vpop.f32.mrb[0].mxu0
    %v4412 = vadd.f32 %v4359, %v4411
    %v4413 = vpop.f32.mrb[0].mxu0
    %v4414 = vadd.f32 %v4361, %v4413
    %4415 = vmatprep.mubr.bf16.mxu0 0
    %4416 = vmatmul.mubr.bf16.gmra.mrb[0].mxu0 %v4313
    %v4417 = vpop.f32.mrb[0].mxu0
    %v4418 = vadd.f32 %v4365, %v4417
    %v4419 = vpop.f32.mrb[0].mxu0
    %v4420 = vadd.f32 %v4367, %v4419
    %v4421 = vpop.f32.mrb[0].mxu0
    %v4422 = vadd.f32 %v4369, %v4421
    %v4423 = vpop.f32.mrb[0].mxu0
    %v4424 = vadd.f32 %v4371, %v4423
    %4425 = vdwg.mxu0
    %v4426 = vadd.f32 %v3868, %v4408
    %v4427 = vadd.f32 %v3869, %v4410
    %v4428 = vadd.f32 %v3870, %v4412
    %v4429 = vadd.f32 %v3871, %v4414
    %v4430 = vadd.f32 %v3872, %v4418
    %v4431 = vadd.f32 %v3873, %v4420
    %v4432 = vadd.f32 %v3874, %v4422
    %v4433 = vadd.f32 %v3875, %v4424
    %s4434 = scalar_lea.vmem %s0, 2304
    %v4435 = vld [vmem:[%s4434] sm:$0xff]
    %v4436 = vld [vmem:[%s4434 + $0x8] sm:$0xff]
    %v4437 = vld [vmem:[%s4434 + $0x10] sm:$0xff]
    %v4438 = vld [vmem:[%s4434 + $0x18] sm:$0xff]
    %v4439 = vld [vmem:[%s4434 + $0x20] sm:$0xff]
    %v4440 = vld [vmem:[%s4434 + $0x28] sm:$0xff]
    %v4441 = vld [vmem:[%s4434 + $0x30] sm:$0xff]
    %v4442 = vld [vmem:[%s4434 + $0x38] sm:$0xff]
    %v4443 = vld [vmem:[%s4434 + $0x40] sm:$0xff]
    %v4444 = vld [vmem:[%s4434 + $0x48] sm:$0xff]
    %v4445 = vld [vmem:[%s4434 + $0x50] sm:$0xff]
    %v4446 = vld [vmem:[%s4434 + $0x58] sm:$0xff]
    %v4447 = vld [vmem:[%s4434 + $0x60] sm:$0xff]
    %v4448 = vld [vmem:[%s4434 + $0x68] sm:$0xff]
    %v4449 = vld [vmem:[%s4434 + $0x70] sm:$0xff]
    %v4450 = vld [vmem:[%s4434 + $0x78] sm:$0xff]
    %v4451 = vld [vmem:[%s4434 + $0x80] sm:$0xff]
    %v4452 = vld [vmem:[%s4434 + $0x88] sm:$0xff]
    %v4453 = vld [vmem:[%s4434 + $0x90] sm:$0xff]
    %v4454 = vld [vmem:[%s4434 + $0x98] sm:$0xff]
    %v4455 = vld [vmem:[%s4434 + $0xa0] sm:$0xff]
    %v4456 = vld [vmem:[%s4434 + $0xa8] sm:$0xff]
    %v4457 = vld [vmem:[%s4434 + $0xb0] sm:$0xff]
    %v4458 = vld [vmem:[%s4434 + $0xb8] sm:$0xff]
    %v4459 = vld [vmem:[%s4434 + $0xc0] sm:$0xff]
    %v4460 = vld [vmem:[%s4434 + $0xc8] sm:$0xff]
    %v4461 = vld [vmem:[%s4434 + $0xd0] sm:$0xff]
    %v4462 = vld [vmem:[%s4434 + $0xd8] sm:$0xff]
    %v4463 = vld [vmem:[%s4434 + $0xe0] sm:$0xff]
    %v4464 = vld [vmem:[%s4434 + $0xe8] sm:$0xff]
    %v4465 = vld [vmem:[%s4434 + $0xf0] sm:$0xff]
    %v4466 = vld [vmem:[%s4434 + $0xf8] sm:$0xff]
    %v4467 = vld [vmem:[%s4434 + $0x100] sm:$0xff]
    %v4468 = vld [vmem:[%s4434 + $0x108] sm:$0xff]
    %v4469 = vld [vmem:[%s4434 + $0x110] sm:$0xff]
    %v4470 = vld [vmem:[%s4434 + $0x118] sm:$0xff]
    %v4471 = vld [vmem:[%s4434 + $0x120] sm:$0xff]
    %v4472 = vld [vmem:[%s4434 + $0x128] sm:$0xff]
    %v4473 = vld [vmem:[%s4434 + $0x130] sm:$0xff]
    %v4474 = vld [vmem:[%s4434 + $0x138] sm:$0xff]
    %v4475 = vld [vmem:[%s4434 + $0x140] sm:$0xff]
    %v4476 = vld [vmem:[%s4434 + $0x148] sm:$0xff]
    %v4477 = vld [vmem:[%s4434 + $0x150] sm:$0xff]
    %v4478 = vld [vmem:[%s4434 + $0x158] sm:$0xff]
    %v4479 = vld [vmem:[%s4434 + $0x160] sm:$0xff]
    %v4480 = vld [vmem:[%s4434 + $0x168] sm:$0xff]
    %v4481 = vld [vmem:[%s4434 + $0x170] sm:$0xff]
    %v4482 = vld [vmem:[%s4434 + $0x178] sm:$0xff]
    %v4531 = vunpack.c.l.b16 %v4435
    %v4532 = vunpack.c.h.b16 %v4435
    %v4533 = vunpack.c.l.b16 %v4436
    %v4534 = vunpack.c.h.b16 %v4436
    %v4535 = vunpack.c.l.b16 %v4437
    %v4536 = vunpack.c.h.b16 %v4437
    %v4537 = vunpack.c.l.b16 %v4438
    %v4538 = vunpack.c.h.b16 %v4438
    %v4539 = vunpack.c.l.b16 %v4439
    %v4540 = vunpack.c.h.b16 %v4439
    %v4541 = vunpack.c.l.b16 %v4440
    %v4542 = vunpack.c.h.b16 %v4440
    %v4543 = vunpack.c.l.b16 %v4441
    %v4544 = vunpack.c.h.b16 %v4441
    %v4545 = vunpack.c.l.b16 %v4442
    %v4546 = vunpack.c.h.b16 %v4442
    %v4547 = vunpack.c.l.b16 %v4443
    %v4548 = vunpack.c.h.b16 %v4443
    %v4549 = vunpack.c.l.b16 %v4444
    %v4550 = vunpack.c.h.b16 %v4444
    %v4551 = vunpack.c.l.b16 %v4445
    %v4552 = vunpack.c.h.b16 %v4445
    %v4553 = vunpack.c.l.b16 %v4446
    %v4554 = vunpack.c.h.b16 %v4446
    %v4555 = vunpack.c.l.b16 %v4447
    %v4556 = vunpack.c.h.b16 %v4447
    %v4557 = vunpack.c.l.b16 %v4448
    %v4558 = vunpack.c.h.b16 %v4448
    %v4559 = vunpack.c.l.b16 %v4449
    %v4560 = vunpack.c.h.b16 %v4449
    %v4561 = vunpack.c.l.b16 %v4450
    %v4562 = vunpack.c.h.b16 %v4450
    %v4563 = vunpack.c.l.b16 %v4451
    %v4564 = vunpack.c.h.b16 %v4451
    %v4565 = vunpack.c.l.b16 %v4452
    %v4566 = vunpack.c.h.b16 %v4452
    %v4567 = vunpack.c.l.b16 %v4453
    %v4568 = vunpack.c.h.b16 %v4453
    %v4569 = vunpack.c.l.b16 %v4454
    %v4570 = vunpack.c.h.b16 %v4454
    %v4571 = vunpack.c.l.b16 %v4455
    %v4572 = vunpack.c.h.b16 %v4455
    %v4573 = vunpack.c.l.b16 %v4456
    %v4574 = vunpack.c.h.b16 %v4456
    %v4575 = vunpack.c.l.b16 %v4457
    %v4576 = vunpack.c.h.b16 %v4457
    %v4577 = vunpack.c.l.b16 %v4458
    %v4578 = vunpack.c.h.b16 %v4458
    %v4579 = vunpack.c.l.b16 %v4459
    %v4580 = vunpack.c.h.b16 %v4459
    %v4581 = vunpack.c.l.b16 %v4460
    %v4582 = vunpack.c.h.b16 %v4460
    %v4583 = vunpack.c.l.b16 %v4461
    %v4584 = vunpack.c.h.b16 %v4461
    %v4585 = vunpack.c.l.b16 %v4462
    %v4586 = vunpack.c.h.b16 %v4462
    %v4587 = vunpack.c.l.b16 %v4463
    %v4588 = vunpack.c.h.b16 %v4463
    %v4589 = vunpack.c.l.b16 %v4464
    %v4590 = vunpack.c.h.b16 %v4464
    %v4591 = vunpack.c.l.b16 %v4465
    %v4592 = vunpack.c.h.b16 %v4465
    %v4593 = vunpack.c.l.b16 %v4466
    %v4594 = vunpack.c.h.b16 %v4466
    %v4595 = vunpack.c.l.b16 %v4467
    %v4596 = vunpack.c.h.b16 %v4467
    %v4597 = vunpack.c.l.b16 %v4468
    %v4598 = vunpack.c.h.b16 %v4468
    %v4599 = vunpack.c.l.b16 %v4469
    %v4600 = vunpack.c.h.b16 %v4469
    %v4601 = vunpack.c.l.b16 %v4470
    %v4602 = vunpack.c.h.b16 %v4470
    %v4603 = vunpack.c.l.b16 %v4471
    %v4604 = vunpack.c.h.b16 %v4471
    %v4605 = vunpack.c.l.b16 %v4472
    %v4606 = vunpack.c.h.b16 %v4472
    %v4607 = vunpack.c.l.b16 %v4473
    %v4608 = vunpack.c.h.b16 %v4473
    %v4609 = vunpack.c.l.b16 %v4474
    %v4610 = vunpack.c.h.b16 %v4474
    %v4611 = vunpack.c.l.b16 %v4475
    %v4612 = vunpack.c.h.b16 %v4475
    %v4613 = vunpack.c.l.b16 %v4476
    %v4614 = vunpack.c.h.b16 %v4476
    %v4615 = vunpack.c.l.b16 %v4477
    %v4616 = vunpack.c.h.b16 %v4477
    %v4617 = vunpack.c.l.b16 %v4478
    %v4618 = vunpack.c.h.b16 %v4478
    %v4619 = vunpack.c.l.b16 %v4479
    %v4620 = vunpack.c.h.b16 %v4479
    %v4621 = vunpack.c.l.b16 %v4480
    %v4622 = vunpack.c.h.b16 %v4480
    %v4623 = vunpack.c.l.b16 %v4481
    %v4624 = vunpack.c.h.b16 %v4481
    %v4625 = vunpack.c.l.b16 %v4482
    %v4626 = vunpack.c.h.b16 %v4482
    %v4627 = vpack.c.b16 %v4533, %v4531
    %v4628 = vpack.c.b16 %v4534, %v4532
    %v4629 = vpack.c.b16 %v4537, %v4535
    %v4630 = vpack.c.b16 %v4538, %v4536
    %v4631 = vpack.c.b16 %v4541, %v4539
    %v4632 = vpack.c.b16 %v4542, %v4540
    %v4633 = vpack.c.b16 %v4545, %v4543
    %v4634 = vpack.c.b16 %v4546, %v4544
    %v4635 = vpack.c.b16 %v4549, %v4547
    %v4636 = vpack.c.b16 %v4550, %v4548
    %v4637 = vpack.c.b16 %v4553, %v4551
    %v4638 = vpack.c.b16 %v4554, %v4552
    %v4639 = vpack.c.b16 %v4557, %v4555
    %v4640 = vpack.c.b16 %v4558, %v4556
    %v4641 = vpack.c.b16 %v4561, %v4559
    %v4642 = vpack.c.b16 %v4562, %v4560
    %v4643 = vpack.c.b16 %v4565, %v4563
    %v4644 = vpack.c.b16 %v4566, %v4564
    %v4645 = vpack.c.b16 %v4569, %v4567
    %v4646 = vpack.c.b16 %v4570, %v4568
    %v4647 = vpack.c.b16 %v4573, %v4571
    %v4648 = vpack.c.b16 %v4574, %v4572
    %v4649 = vpack.c.b16 %v4577, %v4575
    %v4650 = vpack.c.b16 %v4578, %v4576
    %v4651 = vpack.c.b16 %v4581, %v4579
    %v4652 = vpack.c.b16 %v4582, %v4580
    %v4653 = vpack.c.b16 %v4585, %v4583
    %v4654 = vpack.c.b16 %v4586, %v4584
    %v4655 = vpack.c.b16 %v4589, %v4587
    %v4656 = vpack.c.b16 %v4590, %v4588
    %v4657 = vpack.c.b16 %v4593, %v4591
    %v4658 = vpack.c.b16 %v4594, %v4592
    %v4659 = vpack.c.b16 %v4597, %v4595
    %v4660 = vpack.c.b16 %v4598, %v4596
    %v4661 = vpack.c.b16 %v4601, %v4599
    %v4662 = vpack.c.b16 %v4602, %v4600
    %v4663 = vpack.c.b16 %v4605, %v4603
    %v4664 = vpack.c.b16 %v4606, %v4604
    %v4665 = vpack.c.b16 %v4609, %v4607
    %v4666 = vpack.c.b16 %v4610, %v4608
    %v4667 = vpack.c.b16 %v4613, %v4611
    %v4668 = vpack.c.b16 %v4614, %v4612
    %v4669 = vpack.c.b16 %v4617, %v4615
    %v4670 = vpack.c.b16 %v4618, %v4616
    %v4671 = vpack.c.b16 %v4621, %v4619
    %v4672 = vpack.c.b16 %v4622, %v4620
    %v4673 = vpack.c.b16 %v4625, %v4623
    %v4674 = vpack.c.b16 %v4626, %v4624
    %4723 = vmatprep.subr.bf16.mxu0 %v4628
    %4724 = vmatpush1.bf16.msra.mxu0 %v4627
    %4725 = vmatprep.subr.bf16.mxu0 %v4630
    %4726 = vmatpush1.bf16.msra.mxu0 %v4629
    %4727 = vmatprep.subr.bf16.mxu0 %v4632
    %4728 = vmatpush1.bf16.msra.mxu0 %v4631
    %4729 = vmatprep.subr.bf16.mxu0 %v4634
    %4730 = vmatpush1.bf16.msra.mxu0 %v4633
    %4731 = vmatprep.subr.bf16.mxu0 %v4636
    %4732 = vmatpush1.bf16.msra.mxu0 %v4635
    %4733 = vmatprep.subr.bf16.mxu0 %v4638
    %4734 = vmatpush1.bf16.msra.mxu0 %v4637
    %4735 = vmatprep.subr.bf16.mxu0 %v4640
    %4736 = vmatpush1.bf16.msra.mxu0 %v4639
    %4737 = vmatprep.subr.bf16.mxu0 %v4642
    %4738 = vmatpush1.bf16.msra.mxu0 %v4641
    %4739 = vmatprep.subr.bf16.mxu0 %v4644
    %4740 = vmatpush1.bf16.msra.mxu0 %v4643
    %4741 = vmatprep.subr.bf16.mxu0 %v4646
    %4742 = vmatpush1.bf16.msra.mxu0 %v4645
    %4743 = vmatprep.subr.bf16.mxu0 %v4648
    %4744 = vmatpush1.bf16.msra.mxu0 %v4647
    %4745 = vmatprep.subr.bf16.mxu0 %v4650
    %4746 = vmatpush1.bf16.msra.mxu0 %v4649
    %4747 = vmatprep.subr.bf16.mxu0 %v4652
    %4748 = vmatpush1.bf16.msra.mxu0 %v4651
    %4749 = vmatprep.subr.bf16.mxu0 %v4654
    %4750 = vmatpush1.bf16.msra.mxu0 %v4653
    %4751 = vmatprep.subr.bf16.mxu0 %v4656
    %4752 = vmatpush1.bf16.msra.mxu0 %v4655
    %4753 = vmatprep.subr.bf16.mxu0 %v4658
    %4754 = vmatpush1.bf16.msra.mxu0 %v4657
    %4755 = vmatprep.mubr.bf16.mxu0 %v3193
    %4756 = vmatmul.mubr.bf16.gmra.mrb[0].mxu0 %v3192
    %v4757 = vpop.f32.mrb[0].mxu0
    %v4758 = vadd.f32 0.0, %v4757
    %v4759 = vpop.f32.mrb[0].mxu0
    %v4760 = vadd.f32 0.0, %v4759
    %v4761 = vpop.f32.mrb[0].mxu0
    %v4762 = vadd.f32 0.0, %v4761
    %v4763 = vpop.f32.mrb[0].mxu0
    %v4764 = vadd.f32 0.0, %v4763
    %4765 = vmatprep.mubr.bf16.mxu0 %v3196
    %4766 = vmatmul.mubr.bf16.gmra.mrb[0].mxu0 %v3195
    %v4767 = vpop.f32.mrb[0].mxu0
    %v4768 = vadd.f32 0.0, %v4767
    %v4769 = vpop.f32.mrb[0].mxu0
    %v4770 = vadd.f32 0.0, %v4769
    %v4771 = vpop.f32.mrb[0].mxu0
    %v4772 = vadd.f32 0.0, %v4771
    %v4773 = vpop.f32.mrb[0].mxu0
    %v4774 = vadd.f32 0.0, %v4773
    %4775 = vdwg.mxu0
    %4776 = vmatprep.subr.bf16.mxu0 %v4660
    %4777 = vmatpush1.bf16.msra.mxu0 %v4659
    %4778 = vmatprep.subr.bf16.mxu0 %v4662
    %4779 = vmatpush1.bf16.msra.mxu0 %v4661
    %4780 = vmatprep.subr.bf16.mxu0 %v4664
    %4781 = vmatpush1.bf16.msra.mxu0 %v4663
    %4782 = vmatprep.subr.bf16.mxu0 %v4666
    %4783 = vmatpush1.bf16.msra.mxu0 %v4665
    %4784 = vmatprep.subr.bf16.mxu0 %v4668
    %4785 = vmatpush1.bf16.msra.mxu0 %v4667
    %4786 = vmatprep.subr.bf16.mxu0 %v4670
    %4787 = vmatpush1.bf16.msra.mxu0 %v4669
    %4788 = vmatprep.subr.bf16.mxu0 %v4672
    %4789 = vmatpush1.bf16.msra.mxu0 %v4671
    %4790 = vmatprep.subr.bf16.mxu0 %v4674
    %4791 = vmatpush1.bf16.msra.mxu0 %v4673
    %4792 = vmatprep.subr.bf16.mxu0 0
    %4793 = vmatpush1.bf16.msra.mxu0 0
    %4794 = vmatprep.subr.bf16.mxu0 0
    %4795 = vmatpush1.bf16.msra.mxu0 0
    %4796 = vmatprep.subr.bf16.mxu0 0
    %4797 = vmatpush1.bf16.msra.mxu0 0
    %4798 = vmatprep.subr.bf16.mxu0 0
    %4799 = vmatpush1.bf16.msra.mxu0 0
    %4800 = vmatprep.subr.bf16.mxu0 0
    %4801 = vmatpush1.bf16.msra.mxu0 0
    %4802 = vmatprep.subr.bf16.mxu0 0
    %4803 = vmatpush1.bf16.msra.mxu0 0
    %4804 = vmatprep.subr.bf16.mxu0 0
    %4805 = vmatpush1.bf16.msra.mxu0 0
    %4806 = vmatprep.subr.bf16.mxu0 0
    %4807 = vmatpush1.bf16.msra.mxu0 0
    %4808 = vmatprep.mubr.bf16.mxu0 0
    %4809 = vmatmul.mubr.bf16.gmra.mrb[0].mxu0 %v3194
    %v4810 = vpop.f32.mrb[0].mxu0
    %v4811 = vadd.f32 %v4758, %v4810
    %v4812 = vpop.f32.mrb[0].mxu0
    %v4813 = vadd.f32 %v4760, %v4812
    %v4814 = vpop.f32.mrb[0].mxu0
    %v4815 = vadd.f32 %v4762, %v4814
    %v4816 = vpop.f32.mrb[0].mxu0
    %v4817 = vadd.f32 %v4764, %v4816
    %4818 = vmatprep.mubr.bf16.mxu0 0
    %4819 = vmatmul.mubr.bf16.gmra.mrb[0].mxu0 %v3197
    %v4820 = vpop.f32.mrb[0].mxu0
    %v4821 = vadd.f32 %v4768, %v4820
    %v4822 = vpop.f32.mrb[0].mxu0
    %v4823 = vadd.f32 %v4770, %v4822
    %v4824 = vpop.f32.mrb[0].mxu0
    %v4825 = vadd.f32 %v4772, %v4824
    %v4826 = vpop.f32.mrb[0].mxu0
    %v4827 = vadd.f32 %v4774, %v4826
    %4828 = vdwg.mxu0
    %v4829 = vadd.f32 %v4271, %v4811
    %v4830 = vadd.f32 %v4272, %v4813
    %v4831 = vadd.f32 %v4273, %v4815
    %v4832 = vadd.f32 %v4274, %v4817
    %v4833 = vadd.f32 %v4275, %v4821
    %v4834 = vadd.f32 %v4276, %v4823
    %v4835 = vadd.f32 %v4277, %v4825
    %v4836 = vadd.f32 %v4278, %v4827
    %s4837 = scalar_lea.vmem [#allocation8], 288
    %v4838 = vld [vmem:[%s4837] sm:$0xff]
    %v4839 = vld [vmem:[%s4837 + $0x8] sm:$0xf]
    %v4840 = vld [vmem:[%s4837 + $0xc] sm:$0xff]
    %v4841 = vld [vmem:[%s4837 + $0x14] sm:$0xf]
    %v4842 = vld [vmem:[%s4837 + $0x18] sm:$0xff]
    %v4843 = vld [vmem:[%s4837 + $0x20] sm:$0xf]
    %v4844 = vld [vmem:[%s4837 + $0x24] sm:$0xff]
    %v4845 = vld [vmem:[%s4837 + $0x2c] sm:$0xf]
    %v4854 = vunpack.c.l.b16 %v4838
    %v4855 = vunpack.c.h.b16 %v4838
    %v4856 = vunpack.c.l.b16 %v4839
    %v4857 = vunpack.c.l.b16 %v4840
    %v4858 = vunpack.c.h.b16 %v4840
    %v4859 = vunpack.c.l.b16 %v4841
    %v4860 = vunpack.c.l.b16 %v4842
    %v4861 = vunpack.c.h.b16 %v4842
    %v4862 = vunpack.c.l.b16 %v4843
    %v4863 = vunpack.c.l.b16 %v4844
    %v4864 = vunpack.c.h.b16 %v4844
    %v4865 = vunpack.c.l.b16 %v4845
    %v4866 = vpack.c.b16 %v4857, %v4854
    %v4867 = vpack.c.b16 %v4858, %v4855
    %v4868 = vpack.c.b16 %v4859, %v4856
    %v4869 = vpack.c.b16 %v4863, %v4860
    %v4870 = vpack.c.b16 %v4864, %v4861
    %v4871 = vpack.c.b16 %v4865, %v4862
    %4878 = vmatprep.subr.bf16.mxu0 %v4628
    %4879 = vmatpush1.bf16.msra.mxu0 %v4627
    %4880 = vmatprep.subr.bf16.mxu0 %v4630
    %4881 = vmatpush1.bf16.msra.mxu0 %v4629
    %4882 = vmatprep.subr.bf16.mxu0 %v4632
    %4883 = vmatpush1.bf16.msra.mxu0 %v4631
    %4884 = vmatprep.subr.bf16.mxu0 %v4634
    %4885 = vmatpush1.bf16.msra.mxu0 %v4633
    %4886 = vmatprep.subr.bf16.mxu0 %v4636
    %4887 = vmatpush1.bf16.msra.mxu0 %v4635
    %4888 = vmatprep.subr.bf16.mxu0 %v4638
    %4889 = vmatpush1.bf16.msra.mxu0 %v4637
    %4890 = vmatprep.subr.bf16.mxu0 %v4640
    %4891 = vmatpush1.bf16.msra.mxu0 %v4639
    %4892 = vmatprep.subr.bf16.mxu0 %v4642
    %4893 = vmatpush1.bf16.msra.mxu0 %v4641
    %4894 = vmatprep.subr.bf16.mxu0 %v4644
    %4895 = vmatpush1.bf16.msra.mxu0 %v4643
    %4896 = vmatprep.subr.bf16.mxu0 %v4646
    %4897 = vmatpush1.bf16.msra.mxu0 %v4645
    %4898 = vmatprep.subr.bf16.mxu0 %v4648
    %4899 = vmatpush1.bf16.msra.mxu0 %v4647
    %4900 = vmatprep.subr.bf16.mxu0 %v4650
    %4901 = vmatpush1.bf16.msra.mxu0 %v4649
    %4902 = vmatprep.subr.bf16.mxu0 %v4652
    %4903 = vmatpush1.bf16.msra.mxu0 %v4651
    %4904 = vmatprep.subr.bf16.mxu0 %v4654
    %4905 = vmatpush1.bf16.msra.mxu0 %v4653
    %4906 = vmatprep.subr.bf16.mxu0 %v4656
    %4907 = vmatpush1.bf16.msra.mxu0 %v4655
    %4908 = vmatprep.subr.bf16.mxu0 %v4658
    %4909 = vmatpush1.bf16.msra.mxu0 %v4657
    %4910 = vmatprep.mubr.bf16.mxu0 %v4867
    %4911 = vmatmul.mubr.bf16.gmra.mrb[0].mxu0 %v4866
    %v4912 = vpop.f32.mrb[0].mxu0
    %v4913 = vadd.f32 0.0, %v4912
    %v4914 = vpop.f32.mrb[0].mxu0
    %v4915 = vadd.f32 0.0, %v4914
    %v4916 = vpop.f32.mrb[0].mxu0
    %v4917 = vadd.f32 0.0, %v4916
    %v4918 = vpop.f32.mrb[0].mxu0
    %v4919 = vadd.f32 0.0, %v4918
    %4920 = vmatprep.mubr.bf16.mxu0 %v4870
    %4921 = vmatmul.mubr.bf16.gmra.mrb[0].mxu0 %v4869
    %v4922 = vpop.f32.mrb[0].mxu0
    %v4923 = vadd.f32 0.0, %v4922
    %v4924 = vpop.f32.mrb[0].mxu0
    %v4925 = vadd.f32 0.0, %v4924
    %v4926 = vpop.f32.mrb[0].mxu0
    %v4927 = vadd.f32 0.0, %v4926
    %v4928 = vpop.f32.mrb[0].mxu0
    %v4929 = vadd.f32 0.0, %v4928
    %4930 = vdwg.mxu0
    %4931 = vmatprep.subr.bf16.mxu0 %v4660
    %4932 = vmatpush1.bf16.msra.mxu0 %v4659
    %4933 = vmatprep.subr.bf16.mxu0 %v4662
    %4934 = vmatpush1.bf16.msra.mxu0 %v4661
    %4935 = vmatprep.subr.bf16.mxu0 %v4664
    %4936 = vmatpush1.bf16.msra.mxu0 %v4663
    %4937 = vmatprep.subr.bf16.mxu0 %v4666
    %4938 = vmatpush1.bf16.msra.mxu0 %v4665
    %4939 = vmatprep.subr.bf16.mxu0 %v4668
    %4940 = vmatpush1.bf16.msra.mxu0 %v4667
    %4941 = vmatprep.subr.bf16.mxu0 %v4670
    %4942 = vmatpush1.bf16.msra.mxu0 %v4669
    %4943 = vmatprep.subr.bf16.mxu0 %v4672
    %4944 = vmatpush1.bf16.msra.mxu0 %v4671
    %4945 = vmatprep.subr.bf16.mxu0 %v4674
    %4946 = vmatpush1.bf16.msra.mxu0 %v4673
    %4947 = vmatprep.subr.bf16.mxu0 0
    %4948 = vmatpush1.bf16.msra.mxu0 0
    %4949 = vmatprep.subr.bf16.mxu0 0
    %4950 = vmatpush1.bf16.msra.mxu0 0
    %4951 = vmatprep.subr.bf16.mxu0 0
    %4952 = vmatpush1.bf16.msra.mxu0 0
    %4953 = vmatprep.subr.bf16.mxu0 0
    %4954 = vmatpush1.bf16.msra.mxu0 0
    %4955 = vmatprep.subr.bf16.mxu0 0
    %4956 = vmatpush1.bf16.msra.mxu0 0
    %4957 = vmatprep.subr.bf16.mxu0 0
    %4958 = vmatpush1.bf16.msra.mxu0 0
    %4959 = vmatprep.subr.bf16.mxu0 0
    %4960 = vmatpush1.bf16.msra.mxu0 0
    %4961 = vmatprep.subr.bf16.mxu0 0
    %4962 = vmatpush1.bf16.msra.mxu0 0
    %4963 = vmatprep.mubr.bf16.mxu0 0
    %4964 = vmatmul.mubr.bf16.gmra.mrb[0].mxu0 %v4868
    %v4965 = vpop.f32.mrb[0].mxu0
    %v4966 = vadd.f32 %v4913, %v4965
    %v4967 = vpop.f32.mrb[0].mxu0
    %v4968 = vadd.f32 %v4915, %v4967
    %v4969 = vpop.f32.mrb[0].mxu0
    %v4970 = vadd.f32 %v4917, %v4969
    %v4971 = vpop.f32.mrb[0].mxu0
    %v4972 = vadd.f32 %v4919, %v4971
    %4973 = vmatprep.mubr.bf16.mxu0 0
    %4974 = vmatmul.mubr.bf16.gmra.mrb[0].mxu0 %v4871
    %v4975 = vpop.f32.mrb[0].mxu0
    %v4976 = vadd.f32 %v4923, %v4975
    %v4977 = vpop.f32.mrb[0].mxu0
    %v4978 = vadd.f32 %v4925, %v4977
    %v4979 = vpop.f32.mrb[0].mxu0
    %v4980 = vadd.f32 %v4927, %v4979
    %v4981 = vpop.f32.mrb[0].mxu0
    %v4982 = vadd.f32 %v4929, %v4981
    %4983 = vdwg.mxu0
    %v4984 = vadd.f32 %v4426, %v4966
    %v4985 = vadd.f32 %v4427, %v4968
    %v4986 = vadd.f32 %v4428, %v4970
    %v4987 = vadd.f32 %v4429, %v4972
    %v4988 = vadd.f32 %v4430, %v4976
    %v4989 = vadd.f32 %v4431, %v4978
    %v4990 = vadd.f32 %v4432, %v4980
    %v4991 = vadd.f32 %v4433, %v4982
    %s4992 = scalar_lea.vmem %s0, 2688
    %v4993 = vld [vmem:[%s4992] sm:$0xff]
    %v4994 = vld [vmem:[%s4992 + $0x8] sm:$0xff]
    %v4995 = vld [vmem:[%s4992 + $0x10] sm:$0xff]
    %v4996 = vld [vmem:[%s4992 + $0x18] sm:$0xff]
    %v4997 = vld [vmem:[%s4992 + $0x20] sm:$0xff]
    %v4998 = vld [vmem:[%s4992 + $0x28] sm:$0xff]
    %v4999 = vld [vmem:[%s4992 + $0x30] sm:$0xff]
    %v5000 = vld [vmem:[%s4992 + $0x38] sm:$0xff]
    %v5001 = vld [vmem:[%s4992 + $0x40] sm:$0xff]
    %v5002 = vld [vmem:[%s4992 + $0x48] sm:$0xff]
    %v5003 = vld [vmem:[%s4992 + $0x50] sm:$0xff]
    %v5004 = vld [vmem:[%s4992 + $0x58] sm:$0xff]
    %v5005 = vld [vmem:[%s4992 + $0x60] sm:$0xff]
    %v5006 = vld [vmem:[%s4992 + $0x68] sm:$0xff]
    %v5007 = vld [vmem:[%s4992 + $0x70] sm:$0xff]
    %v5008 = vld [vmem:[%s4992 + $0x78] sm:$0xff]
    %v5009 = vld [vmem:[%s4992 + $0x80] sm:$0xff]
    %v5010 = vld [vmem:[%s4992 + $0x88] sm:$0xff]
    %v5011 = vld [vmem:[%s4992 + $0x90] sm:$0xff]
    %v5012 = vld [vmem:[%s4992 + $0x98] sm:$0xff]
    %v5013 = vld [vmem:[%s4992 + $0xa0] sm:$0xff]
    %v5014 = vld [vmem:[%s4992 + $0xa8] sm:$0xff]
    %v5015 = vld [vmem:[%s4992 + $0xb0] sm:$0xff]
    %v5016 = vld [vmem:[%s4992 + $0xb8] sm:$0xff]
    %v5017 = vld [vmem:[%s4992 + $0xc0] sm:$0xff]
    %v5018 = vld [vmem:[%s4992 + $0xc8] sm:$0xff]
    %v5019 = vld [vmem:[%s4992 + $0xd0] sm:$0xff]
    %v5020 = vld [vmem:[%s4992 + $0xd8] sm:$0xff]
    %v5021 = vld [vmem:[%s4992 + $0xe0] sm:$0xff]
    %v5022 = vld [vmem:[%s4992 + $0xe8] sm:$0xff]
    %v5023 = vld [vmem:[%s4992 + $0xf0] sm:$0xff]
    %v5024 = vld [vmem:[%s4992 + $0xf8] sm:$0xff]
    %v5025 = vld [vmem:[%s4992 + $0x100] sm:$0xff]
    %v5026 = vld [vmem:[%s4992 + $0x108] sm:$0xff]
    %v5027 = vld [vmem:[%s4992 + $0x110] sm:$0xff]
    %v5028 = vld [vmem:[%s4992 + $0x118] sm:$0xff]
    %v5029 = vld [vmem:[%s4992 + $0x120] sm:$0xff]
    %v5030 = vld [vmem:[%s4992 + $0x128] sm:$0xff]
    %v5031 = vld [vmem:[%s4992 + $0x130] sm:$0xff]
    %v5032 = vld [vmem:[%s4992 + $0x138] sm:$0xff]
    %v5033 = vld [vmem:[%s4992 + $0x140] sm:$0xff]
    %v5034 = vld [vmem:[%s4992 + $0x148] sm:$0xff]
    %v5035 = vld [vmem:[%s4992 + $0x150] sm:$0xff]
    %v5036 = vld [vmem:[%s4992 + $0x158] sm:$0xff]
    %v5037 = vld [vmem:[%s4992 + $0x160] sm:$0xff]
    %v5038 = vld [vmem:[%s4992 + $0x168] sm:$0xff]
    %v5039 = vld [vmem:[%s4992 + $0x170] sm:$0xff]
    %v5040 = vld [vmem:[%s4992 + $0x178] sm:$0xff]
    %v5089 = vunpack.c.l.b16 %v4993
    %v5090 = vunpack.c.h.b16 %v4993
    %v5091 = vunpack.c.l.b16 %v4994
    %v5092 = vunpack.c.h.b16 %v4994
    %v5093 = vunpack.c.l.b16 %v4995
    %v5094 = vunpack.c.h.b16 %v4995
    %v5095 = vunpack.c.l.b16 %v4996
    %v5096 = vunpack.c.h.b16 %v4996
    %v5097 = vunpack.c.l.b16 %v4997
    %v5098 = vunpack.c.h.b16 %v4997
    %v5099 = vunpack.c.l.b16 %v4998
    %v5100 = vunpack.c.h.b16 %v4998
    %v5101 = vunpack.c.l.b16 %v4999
    %v5102 = vunpack.c.h.b16 %v4999
    %v5103 = vunpack.c.l.b16 %v5000
    %v5104 = vunpack.c.h.b16 %v5000
    %v5105 = vunpack.c.l.b16 %v5001
    %v5106 = vunpack.c.h.b16 %v5001
    %v5107 = vunpack.c.l.b16 %v5002
    %v5108 = vunpack.c.h.b16 %v5002
    %v5109 = vunpack.c.l.b16 %v5003
    %v5110 = vunpack.c.h.b16 %v5003
    %v5111 = vunpack.c.l.b16 %v5004
    %v5112 = vunpack.c.h.b16 %v5004
    %v5113 = vunpack.c.l.b16 %v5005
    %v5114 = vunpack.c.h.b16 %v5005
    %v5115 = vunpack.c.l.b16 %v5006
    %v5116 = vunpack.c.h.b16 %v5006
    %v5117 = vunpack.c.l.b16 %v5007
    %v5118 = vunpack.c.h.b16 %v5007
    %v5119 = vunpack.c.l.b16 %v5008
    %v5120 = vunpack.c.h.b16 %v5008
    %v5121 = vunpack.c.l.b16 %v5009
    %v5122 = vunpack.c.h.b16 %v5009
    %v5123 = vunpack.c.l.b16 %v5010
    %v5124 = vunpack.c.h.b16 %v5010
    %v5125 = vunpack.c.l.b16 %v5011
    %v5126 = vunpack.c.h.b16 %v5011
    %v5127 = vunpack.c.l.b16 %v5012
    %v5128 = vunpack.c.h.b16 %v5012
    %v5129 = vunpack.c.l.b16 %v5013
    %v5130 = vunpack.c.h.b16 %v5013
    %v5131 = vunpack.c.l.b16 %v5014
    %v5132 = vunpack.c.h.b16 %v5014
    %v5133 = vunpack.c.l.b16 %v5015
    %v5134 = vunpack.c.h.b16 %v5015
    %v5135 = vunpack.c.l.b16 %v5016
    %v5136 = vunpack.c.h.b16 %v5016
    %v5137 = vunpack.c.l.b16 %v5017
    %v5138 = vunpack.c.h.b16 %v5017
    %v5139 = vunpack.c.l.b16 %v5018
    %v5140 = vunpack.c.h.b16 %v5018
    %v5141 = vunpack.c.l.b16 %v5019
    %v5142 = vunpack.c.h.b16 %v5019
    %v5143 = vunpack.c.l.b16 %v5020
    %v5144 = vunpack.c.h.b16 %v5020
    %v5145 = vunpack.c.l.b16 %v5021
    %v5146 = vunpack.c.h.b16 %v5021
    %v5147 = vunpack.c.l.b16 %v5022
    %v5148 = vunpack.c.h.b16 %v5022
    %v5149 = vunpack.c.l.b16 %v5023
    %v5150 = vunpack.c.h.b16 %v5023
    %v5151 = vunpack.c.l.b16 %v5024
    %v5152 = vunpack.c.h.b16 %v5024
    %v5153 = vunpack.c.l.b16 %v5025
    %v5154 = vunpack.c.h.b16 %v5025
    %v5155 = vunpack.c.l.b16 %v5026
    %v5156 = vunpack.c.h.b16 %v5026
    %v5157 = vunpack.c.l.b16 %v5027
    %v5158 = vunpack.c.h.b16 %v5027
    %v5159 = vunpack.c.l.b16 %v5028
    %v5160 = vunpack.c.h.b16 %v5028
    %v5161 = vunpack.c.l.b16 %v5029
    %v5162 = vunpack.c.h.b16 %v5029
    %v5163 = vunpack.c.l.b16 %v5030
    %v5164 = vunpack.c.h.b16 %v5030
    %v5165 = vunpack.c.l.b16 %v5031
    %v5166 = vunpack.c.h.b16 %v5031
    %v5167 = vunpack.c.l.b16 %v5032
    %v5168 = vunpack.c.h.b16 %v5032
    %v5169 = vunpack.c.l.b16 %v5033
    %v5170 = vunpack.c.h.b16 %v5033
    %v5171 = vunpack.c.l.b16 %v5034
    %v5172 = vunpack.c.h.b16 %v5034
    %v5173 = vunpack.c.l.b16 %v5035
    %v5174 = vunpack.c.h.b16 %v5035
    %v5175 = vunpack.c.l.b16 %v5036
    %v5176 = vunpack.c.h.b16 %v5036
    %v5177 = vunpack.c.l.b16 %v5037
    %v5178 = vunpack.c.h.b16 %v5037
    %v5179 = vunpack.c.l.b16 %v5038
    %v5180 = vunpack.c.h.b16 %v5038
    %v5181 = vunpack.c.l.b16 %v5039
    %v5182 = vunpack.c.h.b16 %v5039
    %v5183 = vunpack.c.l.b16 %v5040
    %v5184 = vunpack.c.h.b16 %v5040
    %v5185 = vpack.c.b16 %v5091, %v5089
    %v5186 = vpack.c.b16 %v5092, %v5090
    %v5187 = vpack.c.b16 %v5095, %v5093
    %v5188 = vpack.c.b16 %v5096, %v5094
    %v5189 = vpack.c.b16 %v5099, %v5097
    %v5190 = vpack.c.b16 %v5100, %v5098
    %v5191 = vpack.c.b16 %v5103, %v5101
    %v5192 = vpack.c.b16 %v5104, %v5102
    %v5193 = vpack.c.b16 %v5107, %v5105
    %v5194 = vpack.c.b16 %v5108, %v5106
    %v5195 = vpack.c.b16 %v5111, %v5109
    %v5196 = vpack.c.b16 %v5112, %v5110
    %v5197 = vpack.c.b16 %v5115, %v5113
    %v5198 = vpack.c.b16 %v5116, %v5114
    %v5199 = vpack.c.b16 %v5119, %v5117
    %v5200 = vpack.c.b16 %v5120, %v5118
    %v5201 = vpack.c.b16 %v5123, %v5121
    %v5202 = vpack.c.b16 %v5124, %v5122
    %v5203 = vpack.c.b16 %v5127, %v5125
    %v5204 = vpack.c.b16 %v5128, %v5126
    %v5205 = vpack.c.b16 %v5131, %v5129
    %v5206 = vpack.c.b16 %v5132, %v5130
    %v5207 = vpack.c.b16 %v5135, %v5133
    %v5208 = vpack.c.b16 %v5136, %v5134
    %v5209 = vpack.c.b16 %v5139, %v5137
    %v5210 = vpack.c.b16 %v5140, %v5138
    %v5211 = vpack.c.b16 %v5143, %v5141
    %v5212 = vpack.c.b16 %v5144, %v5142
    %v5213 = vpack.c.b16 %v5147, %v5145
    %v5214 = vpack.c.b16 %v5148, %v5146
    %v5215 = vpack.c.b16 %v5151, %v5149
    %v5216 = vpack.c.b16 %v5152, %v5150
    %v5217 = vpack.c.b16 %v5155, %v5153
    %v5218 = vpack.c.b16 %v5156, %v5154
    %v5219 = vpack.c.b16 %v5159, %v5157
    %v5220 = vpack.c.b16 %v5160, %v5158
    %v5221 = vpack.c.b16 %v5163, %v5161
    %v5222 = vpack.c.b16 %v5164, %v5162
    %v5223 = vpack.c.b16 %v5167, %v5165
    %v5224 = vpack.c.b16 %v5168, %v5166
    %v5225 = vpack.c.b16 %v5171, %v5169
    %v5226 = vpack.c.b16 %v5172, %v5170
    %v5227 = vpack.c.b16 %v5175, %v5173
    %v5228 = vpack.c.b16 %v5176, %v5174
    %v5229 = vpack.c.b16 %v5179, %v5177
    %v5230 = vpack.c.b16 %v5180, %v5178
    %v5231 = vpack.c.b16 %v5183, %v5181
    %v5232 = vpack.c.b16 %v5184, %v5182
    %5281 = vmatprep.subr.bf16.mxu0 %v5186
    %5282 = vmatpush1.bf16.msra.mxu0 %v5185
    %5283 = vmatprep.subr.bf16.mxu0 %v5188
    %5284 = vmatpush1.bf16.msra.mxu0 %v5187
    %5285 = vmatprep.subr.bf16.mxu0 %v5190
    %5286 = vmatpush1.bf16.msra.mxu0 %v5189
    %5287 = vmatprep.subr.bf16.mxu0 %v5192
    %5288 = vmatpush1.bf16.msra.mxu0 %v5191
    %5289 = vmatprep.subr.bf16.mxu0 %v5194
    %5290 = vmatpush1.bf16.msra.mxu0 %v5193
    %5291 = vmatprep.subr.bf16.mxu0 %v5196
    %5292 = vmatpush1.bf16.msra.mxu0 %v5195
    %5293 = vmatprep.subr.bf16.mxu0 %v5198
    %5294 = vmatpush1.bf16.msra.mxu0 %v5197
    %5295 = vmatprep.subr.bf16.mxu0 %v5200
    %5296 = vmatpush1.bf16.msra.mxu0 %v5199
    %5297 = vmatprep.subr.bf16.mxu0 %v5202
    %5298 = vmatpush1.bf16.msra.mxu0 %v5201
    %5299 = vmatprep.subr.bf16.mxu0 %v5204
    %5300 = vmatpush1.bf16.msra.mxu0 %v5203
    %5301 = vmatprep.subr.bf16.mxu0 %v5206
    %5302 = vmatpush1.bf16.msra.mxu0 %v5205
    %5303 = vmatprep.subr.bf16.mxu0 %v5208
    %5304 = vmatpush1.bf16.msra.mxu0 %v5207
    %5305 = vmatprep.subr.bf16.mxu0 %v5210
    %5306 = vmatpush1.bf16.msra.mxu0 %v5209
    %5307 = vmatprep.subr.bf16.mxu0 %v5212
    %5308 = vmatpush1.bf16.msra.mxu0 %v5211
    %5309 = vmatprep.subr.bf16.mxu0 %v5214
    %5310 = vmatpush1.bf16.msra.mxu0 %v5213
    %5311 = vmatprep.subr.bf16.mxu0 %v5216
    %5312 = vmatpush1.bf16.msra.mxu0 %v5215
    %5313 = vmatprep.mubr.bf16.mxu0 %v3751
    %5314 = vmatmul.mubr.bf16.gmra.mrb[0].mxu0 %v3750
    %v5315 = vpop.f32.mrb[0].mxu0
    %v5316 = vadd.f32 0.0, %v5315
    %v5317 = vpop.f32.mrb[0].mxu0
    %v5318 = vadd.f32 0.0, %v5317
    %v5319 = vpop.f32.mrb[0].mxu0
    %v5320 = vadd.f32 0.0, %v5319
    %v5321 = vpop.f32.mrb[0].mxu0
    %v5322 = vadd.f32 0.0, %v5321
    %5323 = vmatprep.mubr.bf16.mxu0 %v3754
    %5324 = vmatmul.mubr.bf16.gmra.mrb[0].mxu0 %v3753
    %v5325 = vpop.f32.mrb[0].mxu0
    %v5326 = vadd.f32 0.0, %v5325
    %v5327 = vpop.f32.mrb[0].mxu0
    %v5328 = vadd.f32 0.0, %v5327
    %v5329 = vpop.f32.mrb[0].mxu0
    %v5330 = vadd.f32 0.0, %v5329
    %v5331 = vpop.f32.mrb[0].mxu0
    %v5332 = vadd.f32 0.0, %v5331
    %5333 = vdwg.mxu0
    %5334 = vmatprep.subr.bf16.mxu0 %v5218
    %5335 = vmatpush1.bf16.msra.mxu0 %v5217
    %5336 = vmatprep.subr.bf16.mxu0 %v5220
    %5337 = vmatpush1.bf16.msra.mxu0 %v5219
    %5338 = vmatprep.subr.bf16.mxu0 %v5222
    %5339 = vmatpush1.bf16.msra.mxu0 %v5221
    %5340 = vmatprep.subr.bf16.mxu0 %v5224
    %5341 = vmatpush1.bf16.msra.mxu0 %v5223
    %5342 = vmatprep.subr.bf16.mxu0 %v5226
    %5343 = vmatpush1.bf16.msra.mxu0 %v5225
    %5344 = vmatprep.subr.bf16.mxu0 %v5228
    %5345 = vmatpush1.bf16.msra.mxu0 %v5227
    %5346 = vmatprep.subr.bf16.mxu0 %v5230
    %5347 = vmatpush1.bf16.msra.mxu0 %v5229
    %5348 = vmatprep.subr.bf16.mxu0 %v5232
    %5349 = vmatpush1.bf16.msra.mxu0 %v5231
    %5350 = vmatprep.subr.bf16.mxu0 0
    %5351 = vmatpush1.bf16.msra.mxu0 0
    %5352 = vmatprep.subr.bf16.mxu0 0
    %5353 = vmatpush1.bf16.msra.mxu0 0
    %5354 = vmatprep.subr.bf16.mxu0 0
    %5355 = vmatpush1.bf16.msra.mxu0 0
    %5356 = vmatprep.subr.bf16.mxu0 0
    %5357 = vmatpush1.bf16.msra.mxu0 0
    %5358 = vmatprep.subr.bf16.mxu0 0
    %5359 = vmatpush1.bf16.msra.mxu0 0
    %5360 = vmatprep.subr.bf16.mxu0 0
    %5361 = vmatpush1.bf16.msra.mxu0 0
    %5362 = vmatprep.subr.bf16.mxu0 0
    %5363 = vmatpush1.bf16.msra.mxu0 0
    %5364 = vmatprep.subr.bf16.mxu0 0
    %5365 = vmatpush1.bf16.msra.mxu0 0
    %5366 = vmatprep.mubr.bf16.mxu0 0
    %5367 = vmatmul.mubr.bf16.gmra.mrb[0].mxu0 %v3752
    %v5368 = vpop.f32.mrb[0].mxu0
    %v5369 = vadd.f32 %v5316, %v5368
    %v5370 = vpop.f32.mrb[0].mxu0
    %v5371 = vadd.f32 %v5318, %v5370
    %v5372 = vpop.f32.mrb[0].mxu0
    %v5373 = vadd.f32 %v5320, %v5372
    %v5374 = vpop.f32.mrb[0].mxu0
    %v5375 = vadd.f32 %v5322, %v5374
    %5376 = vmatprep.mubr.bf16.mxu0 0
    %5377 = vmatmul.mubr.bf16.gmra.mrb[0].mxu0 %v3755
    %v5378 = vpop.f32.mrb[0].mxu0
    %v5379 = vadd.f32 %v5326, %v5378
    %v5380 = vpop.f32.mrb[0].mxu0
    %v5381 = vadd.f32 %v5328, %v5380
    %v5382 = vpop.f32.mrb[0].mxu0
    %v5383 = vadd.f32 %v5330, %v5382
    %v5384 = vpop.f32.mrb[0].mxu0
    %v5385 = vadd.f32 %v5332, %v5384
    %5386 = vdwg.mxu0
    %v5387 = vadd.f32 %v4829, %v5369
    %v5388 = vadd.f32 %v4830, %v5371
    %v5389 = vadd.f32 %v4831, %v5373
    %v5390 = vadd.f32 %v4832, %v5375
    %v5391 = vadd.f32 %v4833, %v5379
    %v5392 = vadd.f32 %v4834, %v5381
    %v5393 = vadd.f32 %v4835, %v5383
    %v5394 = vadd.f32 %v4836, %v5385
    %s5395 = scalar_lea.vmem [#allocation8], 312
    %v5396 = vld [vmem:[%s5395] sm:$0xff]
    %v5397 = vld [vmem:[%s5395 + $0x8] sm:$0xf]
    %v5398 = vld [vmem:[%s5395 + $0xc] sm:$0xff]
    %v5399 = vld [vmem:[%s5395 + $0x14] sm:$0xf]
    %v5400 = vld [vmem:[%s5395 + $0x18] sm:$0xff]
    %v5401 = vld [vmem:[%s5395 + $0x20] sm:$0xf]
    %v5402 = vld [vmem:[%s5395 + $0x24] sm:$0xff]
    %v5403 = vld [vmem:[%s5395 + $0x2c] sm:$0xf]
    %v5412 = vunpack.c.l.b16 %v5396
    %v5413 = vunpack.c.h.b16 %v5396
    %v5414 = vunpack.c.l.b16 %v5397
    %v5415 = vunpack.c.l.b16 %v5398
    %v5416 = vunpack.c.h.b16 %v5398
    %v5417 = vunpack.c.l.b16 %v5399
    %v5418 = vunpack.c.l.b16 %v5400
    %v5419 = vunpack.c.h.b16 %v5400
    %v5420 = vunpack.c.l.b16 %v5401
    %v5421 = vunpack.c.l.b16 %v5402
    %v5422 = vunpack.c.h.b16 %v5402
    %v5423 = vunpack.c.l.b16 %v5403
    %v5424 = vpack.c.b16 %v5415, %v5412
    %v5425 = vpack.c.b16 %v5416, %v5413
    %v5426 = vpack.c.b16 %v5417, %v5414
    %v5427 = vpack.c.b16 %v5421, %v5418
    %v5428 = vpack.c.b16 %v5422, %v5419
    %v5429 = vpack.c.b16 %v5423, %v5420
    %5436 = vmatprep.subr.bf16.mxu0 %v5186
    %5437 = vmatpush1.bf16.msra.mxu0 %v5185
    %5438 = vmatprep.subr.bf16.mxu0 %v5188
    %5439 = vmatpush1.bf16.msra.mxu0 %v5187
    %5440 = vmatprep.subr.bf16.mxu0 %v5190
    %5441 = vmatpush1.bf16.msra.mxu0 %v5189
    %5442 = vmatprep.subr.bf16.mxu0 %v5192
    %5443 = vmatpush1.bf16.msra.mxu0 %v5191
    %5444 = vmatprep.subr.bf16.mxu0 %v5194
    %5445 = vmatpush1.bf16.msra.mxu0 %v5193
    %5446 = vmatprep.subr.bf16.mxu0 %v5196
    %5447 = vmatpush1.bf16.msra.mxu0 %v5195
    %5448 = vmatprep.subr.bf16.mxu0 %v5198
    %5449 = vmatpush1.bf16.msra.mxu0 %v5197
    %5450 = vmatprep.subr.bf16.mxu0 %v5200
    %5451 = vmatpush1.bf16.msra.mxu0 %v5199
    %5452 = vmatprep.subr.bf16.mxu0 %v5202
    %5453 = vmatpush1.bf16.msra.mxu0 %v5201
    %5454 = vmatprep.subr.bf16.mxu0 %v5204
    %5455 = vmatpush1.bf16.msra.mxu0 %v5203
    %5456 = vmatprep.subr.bf16.mxu0 %v5206
    %5457 = vmatpush1.bf16.msra.mxu0 %v5205
    %5458 = vmatprep.subr.bf16.mxu0 %v5208
    %5459 = vmatpush1.bf16.msra.mxu0 %v5207
    %5460 = vmatprep.subr.bf16.mxu0 %v5210
    %5461 = vmatpush1.bf16.msra.mxu0 %v5209
    %5462 = vmatprep.subr.bf16.mxu0 %v5212
    %5463 = vmatpush1.bf16.msra.mxu0 %v5211
    %5464 = vmatprep.subr.bf16.mxu0 %v5214
    %5465 = vmatpush1.bf16.msra.mxu0 %v5213
    %5466 = vmatprep.subr.bf16.mxu0 %v5216
    %5467 = vmatpush1.bf16.msra.mxu0 %v5215
    %5468 = vmatprep.mubr.bf16.mxu0 %v5425
    %5469 = vmatmul.mubr.bf16.gmra.mrb[0].mxu0 %v5424
    %v5470 = vpop.f32.mrb[0].mxu0
    %v5471 = vadd.f32 0.0, %v5470
    %v5472 = vpop.f32.mrb[0].mxu0
    %v5473 = vadd.f32 0.0, %v5472
    %v5474 = vpop.f32.mrb[0].mxu0
    %v5475 = vadd.f32 0.0, %v5474
    %v5476 = vpop.f32.mrb[0].mxu0
    %v5477 = vadd.f32 0.0, %v5476
    %5478 = vmatprep.mubr.bf16.mxu0 %v5428
    %5479 = vmatmul.mubr.bf16.gmra.mrb[0].mxu0 %v5427
    %v5480 = vpop.f32.mrb[0].mxu0
    %v5481 = vadd.f32 0.0, %v5480
    %v5482 = vpop.f32.mrb[0].mxu0
    %v5483 = vadd.f32 0.0, %v5482
    %v5484 = vpop.f32.mrb[0].mxu0
    %v5485 = vadd.f32 0.0, %v5484
    %v5486 = vpop.f32.mrb[0].mxu0
    %v5487 = vadd.f32 0.0, %v5486
    %5488 = vdwg.mxu0
    %5489 = vmatprep.subr.bf16.mxu0 %v5218
    %5490 = vmatpush1.bf16.msra.mxu0 %v5217
    %5491 = vmatprep.subr.bf16.mxu0 %v5220
    %5492 = vmatpush1.bf16.msra.mxu0 %v5219
    %5493 = vmatprep.subr.bf16.mxu0 %v5222
    %5494 = vmatpush1.bf16.msra.mxu0 %v5221
    %5495 = vmatprep.subr.bf16.mxu0 %v5224
    %5496 = vmatpush1.bf16.msra.mxu0 %v5223
    %5497 = vmatprep.subr.bf16.mxu0 %v5226
    %5498 = vmatpush1.bf16.msra.mxu0 %v5225
    %5499 = vmatprep.subr.bf16.mxu0 %v5228
    %5500 = vmatpush1.bf16.msra.mxu0 %v5227
    %5501 = vmatprep.subr.bf16.mxu0 %v5230
    %5502 = vmatpush1.bf16.msra.mxu0 %v5229
    %5503 = vmatprep.subr.bf16.mxu0 %v5232
    %5504 = vmatpush1.bf16.msra.mxu0 %v5231
    %5505 = vmatprep.subr.bf16.mxu0 0
    %5506 = vmatpush1.bf16.msra.mxu0 0
    %5507 = vmatprep.subr.bf16.mxu0 0
    %5508 = vmatpush1.bf16.msra.mxu0 0
    %5509 = vmatprep.subr.bf16.mxu0 0
    %5510 = vmatpush1.bf16.msra.mxu0 0
    %5511 = vmatprep.subr.bf16.mxu0 0
    %5512 = vmatpush1.bf16.msra.mxu0 0
    %5513 = vmatprep.subr.bf16.mxu0 0
    %5514 = vmatpush1.bf16.msra.mxu0 0
    %5515 = vmatprep.subr.bf16.mxu0 0
    %5516 = vmatpush1.bf16.msra.mxu0 0
    %5517 = vmatprep.subr.bf16.mxu0 0
    %5518 = vmatpush1.bf16.msra.mxu0 0
    %5519 = vmatprep.subr.bf16.mxu0 0
    %5520 = vmatpush1.bf16.msra.mxu0 0
    %5521 = vmatprep.mubr.bf16.mxu0 0
    %5522 = vmatmul.mubr.bf16.gmra.mrb[0].mxu0 %v5426
    %v5523 = vpop.f32.mrb[0].mxu0
    %v5524 = vadd.f32 %v5471, %v5523
    %v5525 = vpop.f32.mrb[0].mxu0
    %v5526 = vadd.f32 %v5473, %v5525
    %v5527 = vpop.f32.mrb[0].mxu0
    %v5528 = vadd.f32 %v5475, %v5527
    %v5529 = vpop.f32.mrb[0].mxu0
    %v5530 = vadd.f32 %v5477, %v5529
    %5531 = vmatprep.mubr.bf16.mxu0 0
    %5532 = vmatmul.mubr.bf16.gmra.mrb[0].mxu0 %v5429
    %v5533 = vpop.f32.mrb[0].mxu0
    %v5534 = vadd.f32 %v5481, %v5533
    %v5535 = vpop.f32.mrb[0].mxu0
    %v5536 = vadd.f32 %v5483, %v5535
    %v5537 = vpop.f32.mrb[0].mxu0
    %v5538 = vadd.f32 %v5485, %v5537
    %v5539 = vpop.f32.mrb[0].mxu0
    %v5540 = vadd.f32 %v5487, %v5539
    %5541 = vdwg.mxu0
    %v5542 = vadd.f32 %v4984, %v5524
    %v5543 = vadd.f32 %v4985, %v5526
    %v5544 = vadd.f32 %v4986, %v5528
    %v5545 = vadd.f32 %v4987, %v5530
    %v5546 = vadd.f32 %v4988, %v5534
    %v5547 = vadd.f32 %v4989, %v5536
    %v5548 = vadd.f32 %v4990, %v5538
    %v5549 = vadd.f32 %v4991, %v5540
    %s5550 = scalar_lea.vmem %s0, 3072
    %v5551 = vld [vmem:[%s5550] sm:$0xff]
    %v5552 = vld [vmem:[%s5550 + $0x8] sm:$0xff]
    %v5553 = vld [vmem:[%s5550 + $0x10] sm:$0xff]
    %v5554 = vld [vmem:[%s5550 + $0x18] sm:$0xff]
    %v5555 = vld [vmem:[%s5550 + $0x20] sm:$0xff]
    %v5556 = vld [vmem:[%s5550 + $0x28] sm:$0xff]
    %v5557 = vld [vmem:[%s5550 + $0x30] sm:$0xff]
    %v5558 = vld [vmem:[%s5550 + $0x38] sm:$0xff]
    %v5559 = vld [vmem:[%s5550 + $0x40] sm:$0xff]
    %v5560 = vld [vmem:[%s5550 + $0x48] sm:$0xff]
    %v5561 = vld [vmem:[%s5550 + $0x50] sm:$0xff]
    %v5562 = vld [vmem:[%s5550 + $0x58] sm:$0xff]
    %v5563 = vld [vmem:[%s5550 + $0x60] sm:$0xff]
    %v5564 = vld [vmem:[%s5550 + $0x68] sm:$0xff]
    %v5565 = vld [vmem:[%s5550 + $0x70] sm:$0xff]
    %v5566 = vld [vmem:[%s5550 + $0x78] sm:$0xff]
    %v5567 = vld [vmem:[%s5550 + $0x80] sm:$0xff]
    %v5568 = vld [vmem:[%s5550 + $0x88] sm:$0xff]
    %v5569 = vld [vmem:[%s5550 + $0x90] sm:$0xff]
    %v5570 = vld [vmem:[%s5550 + $0x98] sm:$0xff]
    %v5571 = vld [vmem:[%s5550 + $0xa0] sm:$0xff]
    %v5572 = vld [vmem:[%s5550 + $0xa8] sm:$0xff]
    %v5573 = vld [vmem:[%s5550 + $0xb0] sm:$0xff]
    %v5574 = vld [vmem:[%s5550 + $0xb8] sm:$0xff]
    %v5575 = vld [vmem:[%s5550 + $0xc0] sm:$0xff]
    %v5576 = vld [vmem:[%s5550 + $0xc8] sm:$0xff]
    %v5577 = vld [vmem:[%s5550 + $0xd0] sm:$0xff]
    %v5578 = vld [vmem:[%s5550 + $0xd8] sm:$0xff]
    %v5579 = vld [vmem:[%s5550 + $0xe0] sm:$0xff]
    %v5580 = vld [vmem:[%s5550 + $0xe8] sm:$0xff]
    %v5581 = vld [vmem:[%s5550 + $0xf0] sm:$0xff]
    %v5582 = vld [vmem:[%s5550 + $0xf8] sm:$0xff]
    %v5583 = vld [vmem:[%s5550 + $0x100] sm:$0xff]
    %v5584 = vld [vmem:[%s5550 + $0x108] sm:$0xff]
    %v5585 = vld [vmem:[%s5550 + $0x110] sm:$0xff]
    %v5586 = vld [vmem:[%s5550 + $0x118] sm:$0xff]
    %v5587 = vld [vmem:[%s5550 + $0x120] sm:$0xff]
    %v5588 = vld [vmem:[%s5550 + $0x128] sm:$0xff]
    %v5589 = vld [vmem:[%s5550 + $0x130] sm:$0xff]
    %v5590 = vld [vmem:[%s5550 + $0x138] sm:$0xff]
    %v5591 = vld [vmem:[%s5550 + $0x140] sm:$0xff]
    %v5592 = vld [vmem:[%s5550 + $0x148] sm:$0xff]
    %v5593 = vld [vmem:[%s5550 + $0x150] sm:$0xff]
    %v5594 = vld [vmem:[%s5550 + $0x158] sm:$0xff]
    %v5595 = vld [vmem:[%s5550 + $0x160] sm:$0xff]
    %v5596 = vld [vmem:[%s5550 + $0x168] sm:$0xff]
    %v5597 = vld [vmem:[%s5550 + $0x170] sm:$0xff]
    %v5598 = vld [vmem:[%s5550 + $0x178] sm:$0xff]
    %v5647 = vunpack.c.l.b16 %v5551
    %v5648 = vunpack.c.h.b16 %v5551
    %v5649 = vunpack.c.l.b16 %v5552
    %v5650 = vunpack.c.h.b16 %v5552
    %v5651 = vunpack.c.l.b16 %v5553
    %v5652 = vunpack.c.h.b16 %v5553
    %v5653 = vunpack.c.l.b16 %v5554
    %v5654 = vunpack.c.h.b16 %v5554
    %v5655 = vunpack.c.l.b16 %v5555
    %v5656 = vunpack.c.h.b16 %v5555
    %v5657 = vunpack.c.l.b16 %v5556
    %v5658 = vunpack.c.h.b16 %v5556
    %v5659 = vunpack.c.l.b16 %v5557
    %v5660 = vunpack.c.h.b16 %v5557
    %v5661 = vunpack.c.l.b16 %v5558
    %v5662 = vunpack.c.h.b16 %v5558
    %v5663 = vunpack.c.l.b16 %v5559
    %v5664 = vunpack.c.h.b16 %v5559
    %v5665 = vunpack.c.l.b16 %v5560
    %v5666 = vunpack.c.h.b16 %v5560
    %v5667 = vunpack.c.l.b16 %v5561
    %v5668 = vunpack.c.h.b16 %v5561
    %v5669 = vunpack.c.l.b16 %v5562
    %v5670 = vunpack.c.h.b16 %v5562
    %v5671 = vunpack.c.l.b16 %v5563
    %v5672 = vunpack.c.h.b16 %v5563
    %v5673 = vunpack.c.l.b16 %v5564
    %v5674 = vunpack.c.h.b16 %v5564
    %v5675 = vunpack.c.l.b16 %v5565
    %v5676 = vunpack.c.h.b16 %v5565
    %v5677 = vunpack.c.l.b16 %v5566
    %v5678 = vunpack.c.h.b16 %v5566
    %v5679 = vunpack.c.l.b16 %v5567
    %v5680 = vunpack.c.h.b16 %v5567
    %v5681 = vunpack.c.l.b16 %v5568
    %v5682 = vunpack.c.h.b16 %v5568
    %v5683 = vunpack.c.l.b16 %v5569
    %v5684 = vunpack.c.h.b16 %v5569
    %v5685 = vunpack.c.l.b16 %v5570
    %v5686 = vunpack.c.h.b16 %v5570
    %v5687 = vunpack.c.l.b16 %v5571
    %v5688 = vunpack.c.h.b16 %v5571
    %v5689 = vunpack.c.l.b16 %v5572
    %v5690 = vunpack.c.h.b16 %v5572
    %v5691 = vunpack.c.l.b16 %v5573
    %v5692 = vunpack.c.h.b16 %v5573
    %v5693 = vunpack.c.l.b16 %v5574
    %v5694 = vunpack.c.h.b16 %v5574
    %v5695 = vunpack.c.l.b16 %v5575
    %v5696 = vunpack.c.h.b16 %v5575
    %v5697 = vunpack.c.l.b16 %v5576
    %v5698 = vunpack.c.h.b16 %v5576
    %v5699 = vunpack.c.l.b16 %v5577
    %v5700 = vunpack.c.h.b16 %v5577
    %v5701 = vunpack.c.l.b16 %v5578
    %v5702 = vunpack.c.h.b16 %v5578
    %v5703 = vunpack.c.l.b16 %v5579
    %v5704 = vunpack.c.h.b16 %v5579
    %v5705 = vunpack.c.l.b16 %v5580
    %v5706 = vunpack.c.h.b16 %v5580
    %v5707 = vunpack.c.l.b16 %v5581
    %v5708 = vunpack.c.h.b16 %v5581
    %v5709 = vunpack.c.l.b16 %v5582
    %v5710 = vunpack.c.h.b16 %v5582
    %v5711 = vunpack.c.l.b16 %v5583
    %v5712 = vunpack.c.h.b16 %v5583
    %v5713 = vunpack.c.l.b16 %v5584
    %v5714 = vunpack.c.h.b16 %v5584
    %v5715 = vunpack.c.l.b16 %v5585
    %v5716 = vunpack.c.h.b16 %v5585
    %v5717 = vunpack.c.l.b16 %v5586
    %v5718 = vunpack.c.h.b16 %v5586
    %v5719 = vunpack.c.l.b16 %v5587
    %v5720 = vunpack.c.h.b16 %v5587
    %v5721 = vunpack.c.l.b16 %v5588
    %v5722 = vunpack.c.h.b16 %v5588
    %v5723 = vunpack.c.l.b16 %v5589
    %v5724 = vunpack.c.h.b16 %v5589
    %v5725 = vunpack.c.l.b16 %v5590
    %v5726 = vunpack.c.h.b16 %v5590
    %v5727 = vunpack.c.l.b16 %v5591
    %v5728 = vunpack.c.h.b16 %v5591
    %v5729 = vunpack.c.l.b16 %v5592
    %v5730 = vunpack.c.h.b16 %v5592
    %v5731 = vunpack.c.l.b16 %v5593
    %v5732 = vunpack.c.h.b16 %v5593
    %v5733 = vunpack.c.l.b16 %v5594
    %v5734 = vunpack.c.h.b16 %v5594
    %v5735 = vunpack.c.l.b16 %v5595
    %v5736 = vunpack.c.h.b16 %v5595
    %v5737 = vunpack.c.l.b16 %v5596
    %v5738 = vunpack.c.h.b16 %v5596
    %v5739 = vunpack.c.l.b16 %v5597
    %v5740 = vunpack.c.h.b16 %v5597
    %v5741 = vunpack.c.l.b16 %v5598
    %v5742 = vunpack.c.h.b16 %v5598
    %v5743 = vpack.c.b16 %v5649, %v5647
    %v5744 = vpack.c.b16 %v5650, %v5648
    %v5745 = vpack.c.b16 %v5653, %v5651
    %v5746 = vpack.c.b16 %v5654, %v5652
    %v5747 = vpack.c.b16 %v5657, %v5655
    %v5748 = vpack.c.b16 %v5658, %v5656
    %v5749 = vpack.c.b16 %v5661, %v5659
    %v5750 = vpack.c.b16 %v5662, %v5660
    %v5751 = vpack.c.b16 %v5665, %v5663
    %v5752 = vpack.c.b16 %v5666, %v5664
    %v5753 = vpack.c.b16 %v5669, %v5667
    %v5754 = vpack.c.b16 %v5670, %v5668
    %v5755 = vpack.c.b16 %v5673, %v5671
    %v5756 = vpack.c.b16 %v5674, %v5672
    %v5757 = vpack.c.b16 %v5677, %v5675
    %v5758 = vpack.c.b16 %v5678, %v5676
    %v5759 = vpack.c.b16 %v5681, %v5679
    %v5760 = vpack.c.b16 %v5682, %v5680
    %v5761 = vpack.c.b16 %v5685, %v5683
    %v5762 = vpack.c.b16 %v5686, %v5684
    %v5763 = vpack.c.b16 %v5689, %v5687
    %v5764 = vpack.c.b16 %v5690, %v5688
    %v5765 = vpack.c.b16 %v5693, %v5691
    %v5766 = vpack.c.b16 %v5694, %v5692
    %v5767 = vpack.c.b16 %v5697, %v5695
    %v5768 = vpack.c.b16 %v5698, %v5696
    %v5769 = vpack.c.b16 %v5701, %v5699
    %v5770 = vpack.c.b16 %v5702, %v5700
    %v5771 = vpack.c.b16 %v5705, %v5703
    %v5772 = vpack.c.b16 %v5706, %v5704
    %v5773 = vpack.c.b16 %v5709, %v5707
    %v5774 = vpack.c.b16 %v5710, %v5708
    %v5775 = vpack.c.b16 %v5713, %v5711
    %v5776 = vpack.c.b16 %v5714, %v5712
    %v5777 = vpack.c.b16 %v5717, %v5715
    %v5778 = vpack.c.b16 %v5718, %v5716
    %v5779 = vpack.c.b16 %v5721, %v5719
    %v5780 = vpack.c.b16 %v5722, %v5720
    %v5781 = vpack.c.b16 %v5725, %v5723
    %v5782 = vpack.c.b16 %v5726, %v5724
    %v5783 = vpack.c.b16 %v5729, %v5727
    %v5784 = vpack.c.b16 %v5730, %v5728
    %v5785 = vpack.c.b16 %v5733, %v5731
    %v5786 = vpack.c.b16 %v5734, %v5732
    %v5787 = vpack.c.b16 %v5737, %v5735
    %v5788 = vpack.c.b16 %v5738, %v5736
    %v5789 = vpack.c.b16 %v5741, %v5739
    %v5790 = vpack.c.b16 %v5742, %v5740
    %5839 = vmatprep.subr.bf16.mxu0 %v5744
    %5840 = vmatpush1.bf16.msra.mxu0 %v5743
    %5841 = vmatprep.subr.bf16.mxu0 %v5746
    %5842 = vmatpush1.bf16.msra.mxu0 %v5745
    %5843 = vmatprep.subr.bf16.mxu0 %v5748
    %5844 = vmatpush1.bf16.msra.mxu0 %v5747
    %5845 = vmatprep.subr.bf16.mxu0 %v5750
    %5846 = vmatpush1.bf16.msra.mxu0 %v5749
    %5847 = vmatprep.subr.bf16.mxu0 %v5752
    %5848 = vmatpush1.bf16.msra.mxu0 %v5751
    %5849 = vmatprep.subr.bf16.mxu0 %v5754
    %5850 = vmatpush1.bf16.msra.mxu0 %v5753
    %5851 = vmatprep.subr.bf16.mxu0 %v5756
    %5852 = vmatpush1.bf16.msra.mxu0 %v5755
    %5853 = vmatprep.subr.bf16.mxu0 %v5758
    %5854 = vmatpush1.bf16.msra.mxu0 %v5757
    %5855 = vmatprep.subr.bf16.mxu0 %v5760
    %5856 = vmatpush1.bf16.msra.mxu0 %v5759
    %5857 = vmatprep.subr.bf16.mxu0 %v5762
    %5858 = vmatpush1.bf16.msra.mxu0 %v5761
    %5859 = vmatprep.subr.bf16.mxu0 %v5764
    %5860 = vmatpush1.bf16.msra.mxu0 %v5763
    %5861 = vmatprep.subr.bf16.mxu0 %v5766
    %5862 = vmatpush1.bf16.msra.mxu0 %v5765
    %5863 = vmatprep.subr.bf16.mxu0 %v5768
    %5864 = vmatpush1.bf16.msra.mxu0 %v5767
    %5865 = vmatprep.subr.bf16.mxu0 %v5770
    %5866 = vmatpush1.bf16.msra.mxu0 %v5769
    %5867 = vmatprep.subr.bf16.mxu0 %v5772
    %5868 = vmatpush1.bf16.msra.mxu0 %v5771
    %5869 = vmatprep.subr.bf16.mxu0 %v5774
    %5870 = vmatpush1.bf16.msra.mxu0 %v5773
    %5871 = vmatprep.mubr.bf16.mxu0 %v4309
    %5872 = vmatmul.mubr.bf16.gmra.mrb[0].mxu0 %v4308
    %v5873 = vpop.f32.mrb[0].mxu0
    %v5874 = vadd.f32 0.0, %v5873
    %v5875 = vpop.f32.mrb[0].mxu0
    %v5876 = vadd.f32 0.0, %v5875
    %v5877 = vpop.f32.mrb[0].mxu0
    %v5878 = vadd.f32 0.0, %v5877
    %v5879 = vpop.f32.mrb[0].mxu0
    %v5880 = vadd.f32 0.0, %v5879
    %5881 = vmatprep.mubr.bf16.mxu0 %v4312
    %5882 = vmatmul.mubr.bf16.gmra.mrb[0].mxu0 %v4311
    %v5883 = vpop.f32.mrb[0].mxu0
    %v5884 = vadd.f32 0.0, %v5883
    %v5885 = vpop.f32.mrb[0].mxu0
    %v5886 = vadd.f32 0.0, %v5885
    %v5887 = vpop.f32.mrb[0].mxu0
    %v5888 = vadd.f32 0.0, %v5887
    %v5889 = vpop.f32.mrb[0].mxu0
    %v5890 = vadd.f32 0.0, %v5889
    %5891 = vdwg.mxu0
    %5892 = vmatprep.subr.bf16.mxu0 %v5776
    %5893 = vmatpush1.bf16.msra.mxu0 %v5775
    %5894 = vmatprep.subr.bf16.mxu0 %v5778
    %5895 = vmatpush1.bf16.msra.mxu0 %v5777
    %5896 = vmatprep.subr.bf16.mxu0 %v5780
    %5897 = vmatpush1.bf16.msra.mxu0 %v5779
    %5898 = vmatprep.subr.bf16.mxu0 %v5782
    %5899 = vmatpush1.bf16.msra.mxu0 %v5781
    %5900 = vmatprep.subr.bf16.mxu0 %v5784
    %5901 = vmatpush1.bf16.msra.mxu0 %v5783
    %5902 = vmatprep.subr.bf16.mxu0 %v5786
    %5903 = vmatpush1.bf16.msra.mxu0 %v5785
    %5904 = vmatprep.subr.bf16.mxu0 %v5788
    %5905 = vmatpush1.bf16.msra.mxu0 %v5787
    %5906 = vmatprep.subr.bf16.mxu0 %v5790
    %5907 = vmatpush1.bf16.msra.mxu0 %v5789
    %5908 = vmatprep.subr.bf16.mxu0 0
    %5909 = vmatpush1.bf16.msra.mxu0 0
    %5910 = vmatprep.subr.bf16.mxu0 0
    %5911 = vmatpush1.bf16.msra.mxu0 0
    %5912 = vmatprep.subr.bf16.mxu0 0
    %5913 = vmatpush1.bf16.msra.mxu0 0
    %5914 = vmatprep.subr.bf16.mxu0 0
    %5915 = vmatpush1.bf16.msra.mxu0 0
    %5916 = vmatprep.subr.bf16.mxu0 0
    %5917 = vmatpush1.bf16.msra.mxu0 0
    %5918 = vmatprep.subr.bf16.mxu0 0
    %5919 = vmatpush1.bf16.msra.mxu0 0
    %5920 = vmatprep.subr.bf16.mxu0 0
    %5921 = vmatpush1.bf16.msra.mxu0 0
    %5922 = vmatprep.subr.bf16.mxu0 0
    %5923 = vmatpush1.bf16.msra.mxu0 0
    %5924 = vmatprep.mubr.bf16.mxu0 0
    %5925 = vmatmul.mubr.bf16.gmra.mrb[0].mxu0 %v4310
    %v5926 = vpop.f32.mrb[0].mxu0
    %v5927 = vadd.f32 %v5874, %v5926
    %v5928 = vpop.f32.mrb[0].mxu0
    %v5929 = vadd.f32 %v5876, %v5928
    %v5930 = vpop.f32.mrb[0].mxu0
    %v5931 = vadd.f32 %v5878, %v5930
    %v5932 = vpop.f32.mrb[0].mxu0
    %v5933 = vadd.f32 %v5880, %v5932
    %5934 = vmatprep.mubr.bf16.mxu0 0
    %5935 = vmatmul.mubr.bf16.gmra.mrb[0].mxu0 %v4313
    %v5936 = vpop.f32.mrb[0].mxu0
    %v5937 = vadd.f32 %v5884, %v5936
    %v5938 = vpop.f32.mrb[0].mxu0
    %v5939 = vadd.f32 %v5886, %v5938
    %v5940 = vpop.f32.mrb[0].mxu0
    %v5941 = vadd.f32 %v5888, %v5940
    %v5942 = vpop.f32.mrb[0].mxu0
    %v5943 = vadd.f32 %v5890, %v5942
    %5944 = vdwg.mxu0
    %v5945 = vadd.f32 %v5387, %v5927
    %v5946 = vadd.f32 %v5388, %v5929
    %v5947 = vadd.f32 %v5389, %v5931
    %v5948 = vadd.f32 %v5390, %v5933
    %v5949 = vadd.f32 %v5391, %v5937
    %v5950 = vadd.f32 %v5392, %v5939
    %v5951 = vadd.f32 %v5393, %v5941
    %v5952 = vadd.f32 %v5394, %v5943
    %s5953 = scalar_lea.vmem [#allocation8], 336
    %v5954 = vld [vmem:[%s5953] sm:$0xff]
    %v5955 = vld [vmem:[%s5953 + $0x8] sm:$0xf]
    %v5956 = vld [vmem:[%s5953 + $0xc] sm:$0xff]
    %v5957 = vld [vmem:[%s5953 + $0x14] sm:$0xf]
    %v5958 = vld [vmem:[%s5953 + $0x18] sm:$0xff]
    %v5959 = vld [vmem:[%s5953 + $0x20] sm:$0xf]
    %v5960 = vld [vmem:[%s5953 + $0x24] sm:$0xff]
    %v5961 = vld [vmem:[%s5953 + $0x2c] sm:$0xf]
    %v5970 = vunpack.c.l.b16 %v5954
    %v5971 = vunpack.c.h.b16 %v5954
    %v5972 = vunpack.c.l.b16 %v5955
    %v5973 = vunpack.c.l.b16 %v5956
    %v5974 = vunpack.c.h.b16 %v5956
    %v5975 = vunpack.c.l.b16 %v5957
    %v5976 = vunpack.c.l.b16 %v5958
    %v5977 = vunpack.c.h.b16 %v5958
    %v5978 = vunpack.c.l.b16 %v5959
    %v5979 = vunpack.c.l.b16 %v5960
    %v5980 = vunpack.c.h.b16 %v5960
    %v5981 = vunpack.c.l.b16 %v5961
    %v5982 = vpack.c.b16 %v5973, %v5970
    %v5983 = vpack.c.b16 %v5974, %v5971
    %v5984 = vpack.c.b16 %v5975, %v5972
    %v5985 = vpack.c.b16 %v5979, %v5976
    %v5986 = vpack.c.b16 %v5980, %v5977
    %v5987 = vpack.c.b16 %v5981, %v5978
    %5994 = vmatprep.subr.bf16.mxu0 %v5744
    %5995 = vmatpush1.bf16.msra.mxu0 %v5743
    %5996 = vmatprep.subr.bf16.mxu0 %v5746
    %5997 = vmatpush1.bf16.msra.mxu0 %v5745
    %5998 = vmatprep.subr.bf16.mxu0 %v5748
    %5999 = vmatpush1.bf16.msra.mxu0 %v5747
    %6000 = vmatprep.subr.bf16.mxu0 %v5750
    %6001 = vmatpush1.bf16.msra.mxu0 %v5749
    %6002 = vmatprep.subr.bf16.mxu0 %v5752
    %6003 = vmatpush1.bf16.msra.mxu0 %v5751
    %6004 = vmatprep.subr.bf16.mxu0 %v5754
    %6005 = vmatpush1.bf16.msra.mxu0 %v5753
    %6006 = vmatprep.subr.bf16.mxu0 %v5756
    %6007 = vmatpush1.bf16.msra.mxu0 %v5755
    %6008 = vmatprep.subr.bf16.mxu0 %v5758
    %6009 = vmatpush1.bf16.msra.mxu0 %v5757
    %6010 = vmatprep.subr.bf16.mxu0 %v5760
    %6011 = vmatpush1.bf16.msra.mxu0 %v5759
    %6012 = vmatprep.subr.bf16.mxu0 %v5762
    %6013 = vmatpush1.bf16.msra.mxu0 %v5761
    %6014 = vmatprep.subr.bf16.mxu0 %v5764
    %6015 = vmatpush1.bf16.msra.mxu0 %v5763
    %6016 = vmatprep.subr.bf16.mxu0 %v5766
    %6017 = vmatpush1.bf16.msra.mxu0 %v5765
    %6018 = vmatprep.subr.bf16.mxu0 %v5768
    %6019 = vmatpush1.bf16.msra.mxu0 %v5767
    %6020 = vmatprep.subr.bf16.mxu0 %v5770
    %6021 = vmatpush1.bf16.msra.mxu0 %v5769
    %6022 = vmatprep.subr.bf16.mxu0 %v5772
    %6023 = vmatpush1.bf16.msra.mxu0 %v5771
    %6024 = vmatprep.subr.bf16.mxu0 %v5774
    %6025 = vmatpush1.bf16.msra.mxu0 %v5773
    %6026 = vmatprep.mubr.bf16.mxu0 %v5983
    %6027 = vmatmul.mubr.bf16.gmra.mrb[0].mxu0 %v5982
    %v6028 = vpop.f32.mrb[0].mxu0
    %v6029 = vadd.f32 0.0, %v6028
    %v6030 = vpop.f32.mrb[0].mxu0
    %v6031 = vadd.f32 0.0, %v6030
    %v6032 = vpop.f32.mrb[0].mxu0
    %v6033 = vadd.f32 0.0, %v6032
    %v6034 = vpop.f32.mrb[0].mxu0
    %v6035 = vadd.f32 0.0, %v6034
    %6036 = vmatprep.mubr.bf16.mxu0 %v5986
    %6037 = vmatmul.mubr.bf16.gmra.mrb[0].mxu0 %v5985
    %v6038 = vpop.f32.mrb[0].mxu0
    %v6039 = vadd.f32 0.0, %v6038
    %v6040 = vpop.f32.mrb[0].mxu0
    %v6041 = vadd.f32 0.0, %v6040
    %v6042 = vpop.f32.mrb[0].mxu0
    %v6043 = vadd.f32 0.0, %v6042
    %v6044 = vpop.f32.mrb[0].mxu0
    %v6045 = vadd.f32 0.0, %v6044
    %6046 = vdwg.mxu0
    %6047 = vmatprep.subr.bf16.mxu0 %v5776
    %6048 = vmatpush1.bf16.msra.mxu0 %v5775
    %6049 = vmatprep.subr.bf16.mxu0 %v5778
    %6050 = vmatpush1.bf16.msra.mxu0 %v5777
    %6051 = vmatprep.subr.bf16.mxu0 %v5780
    %6052 = vmatpush1.bf16.msra.mxu0 %v5779
    %6053 = vmatprep.subr.bf16.mxu0 %v5782
    %6054 = vmatpush1.bf16.msra.mxu0 %v5781
    %6055 = vmatprep.subr.bf16.mxu0 %v5784
    %6056 = vmatpush1.bf16.msra.mxu0 %v5783
    %6057 = vmatprep.subr.bf16.mxu0 %v5786
    %6058 = vmatpush1.bf16.msra.mxu0 %v5785
    %6059 = vmatprep.subr.bf16.mxu0 %v5788
    %6060 = vmatpush1.bf16.msra.mxu0 %v5787
    %6061 = vmatprep.subr.bf16.mxu0 %v5790
    %6062 = vmatpush1.bf16.msra.mxu0 %v5789
    %6063 = vmatprep.subr.bf16.mxu0 0
    %6064 = vmatpush1.bf16.msra.mxu0 0
    %6065 = vmatprep.subr.bf16.mxu0 0
    %6066 = vmatpush1.bf16.msra.mxu0 0
    %6067 = vmatprep.subr.bf16.mxu0 0
    %6068 = vmatpush1.bf16.msra.mxu0 0
    %6069 = vmatprep.subr.bf16.mxu0 0
    %6070 = vmatpush1.bf16.msra.mxu0 0
    %6071 = vmatprep.subr.bf16.mxu0 0
    %6072 = vmatpush1.bf16.msra.mxu0 0
    %6073 = vmatprep.subr.bf16.mxu0 0
    %6074 = vmatpush1.bf16.msra.mxu0 0
    %6075 = vmatprep.subr.bf16.mxu0 0
    %6076 = vmatpush1.bf16.msra.mxu0 0
    %6077 = vmatprep.subr.bf16.mxu0 0
    %6078 = vmatpush1.bf16.msra.mxu0 0
    %6079 = vmatprep.mubr.bf16.mxu0 0
    %6080 = vmatmul.mubr.bf16.gmra.mrb[0].mxu0 %v5984
    %v6081 = vpop.f32.mrb[0].mxu0
    %v6082 = vadd.f32 %v6029, %v6081
    %v6083 = vpop.f32.mrb[0].mxu0
    %v6084 = vadd.f32 %v6031, %v6083
    %v6085 = vpop.f32.mrb[0].mxu0
    %v6086 = vadd.f32 %v6033, %v6085
    %v6087 = vpop.f32.mrb[0].mxu0
    %v6088 = vadd.f32 %v6035, %v6087
    %6089 = vmatprep.mubr.bf16.mxu0 0
    %6090 = vmatmul.mubr.bf16.gmra.mrb[0].mxu0 %v5987
    %v6091 = vpop.f32.mrb[0].mxu0
    %v6092 = vadd.f32 %v6039, %v6091
    %v6093 = vpop.f32.mrb[0].mxu0
    %v6094 = vadd.f32 %v6041, %v6093
    %v6095 = vpop.f32.mrb[0].mxu0
    %v6096 = vadd.f32 %v6043, %v6095
    %v6097 = vpop.f32.mrb[0].mxu0
    %v6098 = vadd.f32 %v6045, %v6097
    %6099 = vdwg.mxu0
    %v6100 = vadd.f32 %v5542, %v6082
    %v6101 = vadd.f32 %v5543, %v6084
    %v6102 = vadd.f32 %v5544, %v6086
    %v6103 = vadd.f32 %v5545, %v6088
    %v6104 = vadd.f32 %v5546, %v6092
    %v6105 = vadd.f32 %v5547, %v6094
    %v6106 = vadd.f32 %v5548, %v6096
    %v6107 = vadd.f32 %v5549, %v6098
    %v6109 = vlaneseq
    %v6110 = vshrl.u32 %v6109, 7
    %v6111 = vsub.s32 0, %v6110
    %v6112 = vrot.slane %v993, %v6111
    %v6113 = vlaneseq
    %v6114 = vshrl.u32 %v6113, 7
    %v6115 = vsub.s32 1, %v6114
    %v6116 = vrot.slane %v993, %v6115
    %v6119 = vadd.f32 %v5945, %v6112
    %v6120 = vadd.f32 %v5946, %v6116
    %v6121 = vadd.f32 %v5947, %v6112
    %v6122 = vadd.f32 %v5948, %v6116
    %v6123 = vadd.f32 %v5949, %v6112
    %v6124 = vadd.f32 %v5950, %v6116
    %v6125 = vadd.f32 %v5951, %v6112
    %v6126 = vadd.f32 %v5952, %v6116
    %vm6127 = vcmp.ge.f32.partialorder %v6119, 0.0
    %vm6128 = vcmp.ge.f32.partialorder %v6120, 0.0
    %vm6129 = vcmp.ge.f32.partialorder %v6121, 0.0
    %vm6130 = vcmp.ge.f32.partialorder %v6122, 0.0
    %vm6131 = vcmp.ge.f32.partialorder %v6123, 0.0
    %vm6132 = vcmp.ge.f32.partialorder %v6124, 0.0
    %vm6133 = vcmp.ge.f32.partialorder %v6125, 0.0
    %vm6134 = vcmp.ge.f32.partialorder %v6126, 0.0
    %v6135 = vmul.f32 %v6119, 0.01
    %v6136 = vmul.f32 %v6120, 0.01
    %v6137 = vmul.f32 %v6121, 0.01
    %v6138 = vmul.f32 %v6122, 0.01
    %v6139 = vmul.f32 %v6123, 0.01
    %v6140 = vmul.f32 %v6124, 0.01
    %v6141 = vmul.f32 %v6125, 0.01
    %v6142 = vmul.f32 %v6126, 0.01
    %v6143 = vsel %vm6127, %v6119, %v6135
    %v6144 = vsel %vm6128, %v6120, %v6136
    %v6145 = vsel %vm6129, %v6121, %v6137
    %v6146 = vsel %vm6130, %v6122, %v6138
    %v6147 = vsel %vm6131, %v6123, %v6139
    %v6148 = vsel %vm6132, %v6124, %v6140
    %v6149 = vsel %vm6133, %v6125, %v6141
    %v6150 = vsel %vm6134, %v6126, %v6142
    %v6151 = vpack.c.bf16 %v6145, %v6143
    %v6152 = vpack.c.bf16 %v6146, %v6144
    %v6153 = vpack.c.bf16 %v6149, %v6147
    %v6154 = vpack.c.bf16 %v6150, %v6148
    %v6155 = vadd.f32 %v6100, %v6112
    %v6156 = vadd.f32 %v6101, %v6116
    %v6157 = vadd.f32 %v6102, %v6112
    %v6158 = vadd.f32 %v6103, %v6116
    %v6159 = vadd.f32 %v6104, %v6112
    %v6160 = vadd.f32 %v6105, %v6116
    %v6161 = vadd.f32 %v6106, %v6112
    %v6162 = vadd.f32 %v6107, %v6116
    %vm6163 = vcmp.ge.f32.partialorder %v6155, 0.0
    %vm6164 = vcmp.ge.f32.partialorder %v6156, 0.0
    %vm6165 = vcmp.ge.f32.partialorder %v6157, 0.0
    %vm6166 = vcmp.ge.f32.partialorder %v6158, 0.0
    %vm6167 = vcmp.ge.f32.partialorder %v6159, 0.0
    %vm6168 = vcmp.ge.f32.partialorder %v6160, 0.0
    %vm6169 = vcmp.ge.f32.partialorder %v6161, 0.0
    %vm6170 = vcmp.ge.f32.partialorder %v6162, 0.0
    %v6171 = vmul.f32 %v6155, 0.01
    %v6172 = vmul.f32 %v6156, 0.01
    %v6173 = vmul.f32 %v6157, 0.01
    %v6174 = vmul.f32 %v6158, 0.01
    %v6175 = vmul.f32 %v6159, 0.01
    %v6176 = vmul.f32 %v6160, 0.01
    %v6177 = vmul.f32 %v6161, 0.01
    %v6178 = vmul.f32 %v6162, 0.01
    %v6179 = vsel %vm6163, %v6155, %v6171
    %v6180 = vsel %vm6164, %v6156, %v6172
    %v6181 = vsel %vm6165, %v6157, %v6173
    %v6182 = vsel %vm6166, %v6158, %v6174
    %v6183 = vsel %vm6167, %v6159, %v6175
    %v6184 = vsel %vm6168, %v6160, %v6176
    %v6185 = vsel %vm6169, %v6161, %v6177
    %v6186 = vsel %vm6170, %v6162, %v6178
    %v6187 = vpack.c.bf16 %v6181, %v6179
    %v6188 = vpack.c.bf16 %v6182, %v6180
    %v6189 = vpack.c.bf16 %v6185, %v6183
    %v6190 = vpack.c.bf16 %v6186, %v6184
    %6193 = vrot.lane.b32.xlu0 %v6153, 64
    %v6194 = vpop.permute.xlu0 %6193
    %6195 = vrot.lane.b32.xlu0 %v6154, 64
    %v6196 = vpop.permute.xlu0 %6195
    %vm6197 = vcmask 523264
    %v6198 = vsel %vm6197, %v6194, %v6196
    %6202 = vrot.lane.b32.xlu0 %v6189, 64
    %v6203 = vpop.permute.xlu0 %6202
    %6204 = vrot.lane.b32.xlu0 %v6190, 64
    %v6205 = vpop.permute.xlu0 %6204
    %v6206 = vsel %vm6197, %v6203, %v6205
    %vm6208 = vcmask 523264
    %v6211 = vsel %vm6208, %v6152, %v6194
    %v6215 = vsel %vm6208, %v6188, %v6203
    %v6217 = vld [vmem:[%s2] sm:$0xf]
    %v6218 = vld [vmem:[%s2 + $0x4] sm:$0xf]
    %v6219 = vld [vmem:[%s2 + $0x8] sm:$0xf]
    %v6220 = vld [vmem:[%s2 + $0xc] sm:$0xf]
    %v6221 = vld [vmem:[%s2 + $0x10] sm:$0xf]
    %v6222 = vld [vmem:[%s2 + $0x14] sm:$0xf]
    %v6223 = vld [vmem:[%s2 + $0x18] sm:$0xf]
    %v6224 = vld [vmem:[%s2 + $0x1c] sm:$0xf]
    %v6225 = vld [vmem:[%s2 + $0x20] sm:$0xf]
    %v6226 = vld [vmem:[%s2 + $0x24] sm:$0xf]
    %v6227 = vld [vmem:[%s2 + $0x28] sm:$0xf]
    %v6228 = vld [vmem:[%s2 + $0x2c] sm:$0xf]
    %v6229 = vld [vmem:[%s2 + $0x30] sm:$0xf]
    %v6230 = vld [vmem:[%s2 + $0x34] sm:$0xf]
    %v6231 = vld [vmem:[%s2 + $0x38] sm:$0xf]
    %v6232 = vld [vmem:[%s2 + $0x3c] sm:$0xf]
    %v6233 = vld [vmem:[%s2 + $0x40] sm:$0xf]
    %v6234 = vld [vmem:[%s2 + $0x44] sm:$0xf]
    %v6235 = vld [vmem:[%s2 + $0x48] sm:$0xf]
    %v6236 = vld [vmem:[%s2 + $0x4c] sm:$0xf]
    %v6237 = vld [vmem:[%s2 + $0x50] sm:$0xf]
    %v6238 = vld [vmem:[%s2 + $0x54] sm:$0xf]
    %v6239 = vld [vmem:[%s2 + $0x58] sm:$0xf]
    %v6240 = vld [vmem:[%s2 + $0x5c] sm:$0xf]
    %v6241 = vld [vmem:[%s2 + $0x60] sm:$0xf]
    %v6242 = vld [vmem:[%s2 + $0x64] sm:$0xf]
    %v6243 = vld [vmem:[%s2 + $0x68] sm:$0xf]
    %v6244 = vld [vmem:[%s2 + $0x6c] sm:$0xf]
    %v6245 = vld [vmem:[%s2 + $0x70] sm:$0xf]
    %v6246 = vld [vmem:[%s2 + $0x74] sm:$0xf]
    %v6247 = vld [vmem:[%s2 + $0x78] sm:$0xf]
    %v6248 = vld [vmem:[%s2 + $0x7c] sm:$0xf]
    %v6249 = vld [vmem:[%s2 + $0x80] sm:$0xf]
    %v6250 = vld [vmem:[%s2 + $0x84] sm:$0xf]
    %v6251 = vld [vmem:[%s2 + $0x88] sm:$0xf]
    %v6252 = vld [vmem:[%s2 + $0x8c] sm:$0xf]
    %v6253 = vld [vmem:[%s2 + $0x90] sm:$0xf]
    %v6254 = vld [vmem:[%s2 + $0x94] sm:$0xf]
    %v6255 = vld [vmem:[%s2 + $0x98] sm:$0xf]
    %v6256 = vld [vmem:[%s2 + $0x9c] sm:$0xf]
    %v6257 = vld [vmem:[%s2 + $0xa0] sm:$0xf]
    %v6258 = vld [vmem:[%s2 + $0xa4] sm:$0xf]
    %v6259 = vld [vmem:[%s2 + $0xa8] sm:$0xf]
    %v6260 = vld [vmem:[%s2 + $0xac] sm:$0xf]
    %v6261 = vld [vmem:[%s2 + $0xb0] sm:$0xf]
    %v6262 = vld [vmem:[%s2 + $0xb4] sm:$0xf]
    %v6263 = vld [vmem:[%s2 + $0xb8] sm:$0xf]
    %v6264 = vld [vmem:[%s2 + $0xbc] sm:$0xf]
    %v6265 = vld [vmem:[%s2 + $0xc0] sm:$0xf]
    %v6266 = vld [vmem:[%s2 + $0xc4] sm:$0xf]
    %v6267 = vld [vmem:[%s2 + $0xc8] sm:$0xf]
    %v6268 = vld [vmem:[%s2 + $0xcc] sm:$0xf]
    %v6269 = vld [vmem:[%s2 + $0xd0] sm:$0xf]
    %v6270 = vld [vmem:[%s2 + $0xd4] sm:$0xf]
    %v6271 = vld [vmem:[%s2 + $0xd8] sm:$0xf]
    %v6272 = vld [vmem:[%s2 + $0xdc] sm:$0xf]
    %v6273 = vld [vmem:[%s2 + $0xe0] sm:$0xf]
    %v6274 = vld [vmem:[%s2 + $0xe4] sm:$0xf]
    %v6275 = vld [vmem:[%s2 + $0xe8] sm:$0xf]
    %v6276 = vld [vmem:[%s2 + $0xec] sm:$0xf]
    %v6277 = vld [vmem:[%s2 + $0xf0] sm:$0xf]
    %v6278 = vld [vmem:[%s2 + $0xf4] sm:$0xf]
    %v6279 = vld [vmem:[%s2 + $0xf8] sm:$0xf]
    %v6280 = vld [vmem:[%s2 + $0xfc] sm:$0xf]
    %v6281 = vld [vmem:[%s2 + $0x100] sm:$0xf]
    %v6282 = vld [vmem:[%s2 + $0x104] sm:$0xf]
    %v6283 = vld [vmem:[%s2 + $0x108] sm:$0xf]
    %v6284 = vld [vmem:[%s2 + $0x10c] sm:$0xf]
    %v6285 = vld [vmem:[%s2 + $0x110] sm:$0xf]
    %v6286 = vld [vmem:[%s2 + $0x114] sm:$0xf]
    %v6287 = vld [vmem:[%s2 + $0x118] sm:$0xf]
    %v6288 = vld [vmem:[%s2 + $0x11c] sm:$0xf]
    %v6289 = vld [vmem:[%s2 + $0x120] sm:$0xf]
    %v6290 = vld [vmem:[%s2 + $0x124] sm:$0xf]
    %v6291 = vld [vmem:[%s2 + $0x128] sm:$0xf]
    %v6292 = vld [vmem:[%s2 + $0x12c] sm:$0xf]
    %v6293 = vld [vmem:[%s2 + $0x130] sm:$0xf]
    %v6294 = vld [vmem:[%s2 + $0x134] sm:$0xf]
    %v6295 = vld [vmem:[%s2 + $0x138] sm:$0xf]
    %v6296 = vld [vmem:[%s2 + $0x13c] sm:$0xf]
    %v6297 = vld [vmem:[%s2 + $0x140] sm:$0xf]
    %v6298 = vld [vmem:[%s2 + $0x144] sm:$0xf]
    %v6299 = vld [vmem:[%s2 + $0x148] sm:$0xf]
    %v6300 = vld [vmem:[%s2 + $0x14c] sm:$0xf]
    %v6301 = vld [vmem:[%s2 + $0x150] sm:$0xf]
    %v6302 = vld [vmem:[%s2 + $0x154] sm:$0xf]
    %v6303 = vld [vmem:[%s2 + $0x158] sm:$0xf]
    %v6304 = vld [vmem:[%s2 + $0x15c] sm:$0xf]
    %v6305 = vld [vmem:[%s2 + $0x160] sm:$0xf]
    %v6306 = vld [vmem:[%s2 + $0x164] sm:$0xf]
    %v6307 = vld [vmem:[%s2 + $0x168] sm:$0xf]
    %v6308 = vld [vmem:[%s2 + $0x16c] sm:$0xf]
    %v6309 = vld [vmem:[%s2 + $0x170] sm:$0xf]
    %v6310 = vld [vmem:[%s2 + $0x174] sm:$0xf]
    %v6311 = vld [vmem:[%s2 + $0x178] sm:$0xf]
    %v6312 = vld [vmem:[%s2 + $0x17c] sm:$0xf]
    %v6314 = vlaneseq
    %v6315 = vshrl.u32 %v6314, 7
    %v6316 = vsub.s32 0, %v6315
    %v6317 = vrot.slane %v994, %v6316
    %v6415 = vunpack.c.l.b16 %v6217
    %v6416 = vunpack.c.l.b16 %v6218
    %v6417 = vunpack.c.l.b16 %v6219
    %v6418 = vunpack.c.l.b16 %v6220
    %v6419 = vunpack.c.l.b16 %v6221
    %v6420 = vunpack.c.l.b16 %v6222
    %v6421 = vunpack.c.l.b16 %v6223
    %v6422 = vunpack.c.l.b16 %v6224
    %v6423 = vunpack.c.l.b16 %v6225
    %v6424 = vunpack.c.l.b16 %v6226
    %v6425 = vunpack.c.l.b16 %v6227
    %v6426 = vunpack.c.l.b16 %v6228
    %v6427 = vunpack.c.l.b16 %v6229
    %v6428 = vunpack.c.l.b16 %v6230
    %v6429 = vunpack.c.l.b16 %v6231
    %v6430 = vunpack.c.l.b16 %v6232
    %v6431 = vunpack.c.l.b16 %v6233
    %v6432 = vunpack.c.l.b16 %v6234
    %v6433 = vunpack.c.l.b16 %v6235
    %v6434 = vunpack.c.l.b16 %v6236
    %v6435 = vunpack.c.l.b16 %v6237
    %v6436 = vunpack.c.l.b16 %v6238
    %v6437 = vunpack.c.l.b16 %v6239
    %v6438 = vunpack.c.l.b16 %v6240
    %v6439 = vunpack.c.l.b16 %v6241
    %v6440 = vunpack.c.l.b16 %v6242
    %v6441 = vunpack.c.l.b16 %v6243
    %v6442 = vunpack.c.l.b16 %v6244
    %v6443 = vunpack.c.l.b16 %v6245
    %v6444 = vunpack.c.l.b16 %v6246
    %v6445 = vunpack.c.l.b16 %v6247
    %v6446 = vunpack.c.l.b16 %v6248
    %v6447 = vunpack.c.l.b16 %v6249
    %v6448 = vunpack.c.l.b16 %v6250
    %v6449 = vunpack.c.l.b16 %v6251
    %v6450 = vunpack.c.l.b16 %v6252
    %v6451 = vunpack.c.l.b16 %v6253
    %v6452 = vunpack.c.l.b16 %v6254
    %v6453 = vunpack.c.l.b16 %v6255
    %v6454 = vunpack.c.l.b16 %v6256
    %v6455 = vunpack.c.l.b16 %v6257
    %v6456 = vunpack.c.l.b16 %v6258
    %v6457 = vunpack.c.l.b16 %v6259
    %v6458 = vunpack.c.l.b16 %v6260
    %v6459 = vunpack.c.l.b16 %v6261
    %v6460 = vunpack.c.l.b16 %v6262
    %v6461 = vunpack.c.l.b16 %v6263
    %v6462 = vunpack.c.l.b16 %v6264
    %v6463 = vunpack.c.l.b16 %v6265
    %v6464 = vunpack.c.l.b16 %v6266
    %v6465 = vunpack.c.l.b16 %v6267
    %v6466 = vunpack.c.l.b16 %v6268
    %v6467 = vunpack.c.l.b16 %v6269
    %v6468 = vunpack.c.l.b16 %v6270
    %v6469 = vunpack.c.l.b16 %v6271
    %v6470 = vunpack.c.l.b16 %v6272
    %v6471 = vunpack.c.l.b16 %v6273
    %v6472 = vunpack.c.l.b16 %v6274
    %v6473 = vunpack.c.l.b16 %v6275
    %v6474 = vunpack.c.l.b16 %v6276
    %v6475 = vunpack.c.l.b16 %v6277
    %v6476 = vunpack.c.l.b16 %v6278
    %v6477 = vunpack.c.l.b16 %v6279
    %v6478 = vunpack.c.l.b16 %v6280
    %v6479 = vunpack.c.l.b16 %v6281
    %v6480 = vunpack.c.l.b16 %v6282
    %v6481 = vunpack.c.l.b16 %v6283
    %v6482 = vunpack.c.l.b16 %v6284
    %v6483 = vunpack.c.l.b16 %v6285
    %v6484 = vunpack.c.l.b16 %v6286
    %v6485 = vunpack.c.l.b16 %v6287
    %v6486 = vunpack.c.l.b16 %v6288
    %v6487 = vunpack.c.l.b16 %v6289
    %v6488 = vunpack.c.l.b16 %v6290
    %v6489 = vunpack.c.l.b16 %v6291
    %v6490 = vunpack.c.l.b16 %v6292
    %v6491 = vunpack.c.l.b16 %v6293
    %v6492 = vunpack.c.l.b16 %v6294
    %v6493 = vunpack.c.l.b16 %v6295
    %v6494 = vunpack.c.l.b16 %v6296
    %v6495 = vunpack.c.l.b16 %v6297
    %v6496 = vunpack.c.l.b16 %v6298
    %v6497 = vunpack.c.l.b16 %v6299
    %v6498 = vunpack.c.l.b16 %v6300
    %v6499 = vunpack.c.l.b16 %v6301
    %v6500 = vunpack.c.l.b16 %v6302
    %v6501 = vunpack.c.l.b16 %v6303
    %v6502 = vunpack.c.l.b16 %v6304
    %v6503 = vunpack.c.l.b16 %v6305
    %v6504 = vunpack.c.l.b16 %v6306
    %v6505 = vunpack.c.l.b16 %v6307
    %v6506 = vunpack.c.l.b16 %v6308
    %v6507 = vunpack.c.l.b16 %v6309
    %v6508 = vunpack.c.l.b16 %v6310
    %v6509 = vunpack.c.l.b16 %v6311
    %v6510 = vunpack.c.l.b16 %v6312
    %v6511 = vpack.c.b16 %v6416, %v6415
    %v6512 = vpack.c.b16 %v6418, %v6417
    %v6513 = vpack.c.b16 %v6420, %v6419
    %v6514 = vpack.c.b16 %v6422, %v6421
    %v6515 = vpack.c.b16 %v6424, %v6423
    %v6516 = vpack.c.b16 %v6426, %v6425
    %v6517 = vpack.c.b16 %v6428, %v6427
    %v6518 = vpack.c.b16 %v6430, %v6429
    %v6519 = vpack.c.b16 %v6432, %v6431
    %v6520 = vpack.c.b16 %v6434, %v6433
    %v6521 = vpack.c.b16 %v6436, %v6435
    %v6522 = vpack.c.b16 %v6438, %v6437
    %v6523 = vpack.c.b16 %v6440, %v6439
    %v6524 = vpack.c.b16 %v6442, %v6441
    %v6525 = vpack.c.b16 %v6444, %v6443
    %v6526 = vpack.c.b16 %v6446, %v6445
    %v6527 = vpack.c.b16 %v6448, %v6447
    %v6528 = vpack.c.b16 %v6450, %v6449
    %v6529 = vpack.c.b16 %v6452, %v6451
    %v6530 = vpack.c.b16 %v6454, %v6453
    %v6531 = vpack.c.b16 %v6456, %v6455
    %v6532 = vpack.c.b16 %v6458, %v6457
    %v6533 = vpack.c.b16 %v6460, %v6459
    %v6534 = vpack.c.b16 %v6462, %v6461
    %v6535 = vpack.c.b16 %v6464, %v6463
    %v6536 = vpack.c.b16 %v6466, %v6465
    %v6537 = vpack.c.b16 %v6468, %v6467
    %v6538 = vpack.c.b16 %v6470, %v6469
    %v6539 = vpack.c.b16 %v6472, %v6471
    %v6540 = vpack.c.b16 %v6474, %v6473
    %v6541 = vpack.c.b16 %v6476, %v6475
    %v6542 = vpack.c.b16 %v6478, %v6477
    %v6543 = vpack.c.b16 %v6480, %v6479
    %v6544 = vpack.c.b16 %v6482, %v6481
    %v6545 = vpack.c.b16 %v6484, %v6483
    %v6546 = vpack.c.b16 %v6486, %v6485
    %v6547 = vpack.c.b16 %v6488, %v6487
    %v6548 = vpack.c.b16 %v6490, %v6489
    %v6549 = vpack.c.b16 %v6492, %v6491
    %v6550 = vpack.c.b16 %v6494, %v6493
    %v6551 = vpack.c.b16 %v6496, %v6495
    %v6552 = vpack.c.b16 %v6498, %v6497
    %v6553 = vpack.c.b16 %v6500, %v6499
    %v6554 = vpack.c.b16 %v6502, %v6501
    %v6555 = vpack.c.b16 %v6504, %v6503
    %v6556 = vpack.c.b16 %v6506, %v6505
    %v6557 = vpack.c.b16 %v6508, %v6507
    %v6558 = vpack.c.b16 %v6510, %v6509
    %6607 = vmatprep.subr.bf16.mxu0 0
    %6608 = vmatpush1.bf16.msra.mxu0 %v6511
    %6609 = vmatprep.subr.bf16.mxu0 0
    %6610 = vmatpush1.bf16.msra.mxu0 %v6512
    %6611 = vmatprep.subr.bf16.mxu0 0
    %6612 = vmatpush1.bf16.msra.mxu0 %v6513
    %6613 = vmatprep.subr.bf16.mxu0 0
    %6614 = vmatpush1.bf16.msra.mxu0 %v6514
    %6615 = vmatprep.subr.bf16.mxu0 0
    %6616 = vmatpush1.bf16.msra.mxu0 %v6515
    %6617 = vmatprep.subr.bf16.mxu0 0
    %6618 = vmatpush1.bf16.msra.mxu0 %v6516
    %6619 = vmatprep.subr.bf16.mxu0 0
    %6620 = vmatpush1.bf16.msra.mxu0 %v6517
    %6621 = vmatprep.subr.bf16.mxu0 0
    %6622 = vmatpush1.bf16.msra.mxu0 %v6518
    %6623 = vmatprep.subr.bf16.mxu0 0
    %6624 = vmatpush1.bf16.msra.mxu0 %v6519
    %6625 = vmatprep.subr.bf16.mxu0 0
    %6626 = vmatpush1.bf16.msra.mxu0 %v6520
    %6627 = vmatprep.subr.bf16.mxu0 0
    %6628 = vmatpush1.bf16.msra.mxu0 %v6521
    %6629 = vmatprep.subr.bf16.mxu0 0
    %6630 = vmatpush1.bf16.msra.mxu0 %v6522
    %6631 = vmatprep.subr.bf16.mxu0 0
    %6632 = vmatpush1.bf16.msra.mxu0 %v6523
    %6633 = vmatprep.subr.bf16.mxu0 0
    %6634 = vmatpush1.bf16.msra.mxu0 %v6524
    %6635 = vmatprep.subr.bf16.mxu0 0
    %6636 = vmatpush1.bf16.msra.mxu0 %v6525
    %6637 = vmatprep.subr.bf16.mxu0 0
    %6638 = vmatpush1.bf16.msra.mxu0 %v6526
    %6639 = vmatprep.mubr.bf16.mxu0 %v6211
    %6640 = vmatmul.mubr.bf16.gmra.mrb[0].mxu0 %v6151
    %v6641 = vpop.f32.mrb[0].mxu0
    %v6642 = vadd.f32 %v6317, %v6641
    %v6643 = vpop.f32.mrb[0].mxu0
    %v6644 = vpop.f32.mrb[0].mxu0
    %v6645 = vadd.f32 %v6317, %v6644
    %v6646 = vpop.f32.mrb[0].mxu0
    %6647 = vdwg.mxu0
    %6648 = vmatprep.subr.bf16.mxu0 0
    %6649 = vmatpush1.bf16.msra.mxu0 %v6527
    %6650 = vmatprep.subr.bf16.mxu0 0
    %6651 = vmatpush1.bf16.msra.mxu0 %v6528
    %6652 = vmatprep.subr.bf16.mxu0 0
    %6653 = vmatpush1.bf16.msra.mxu0 %v6529
    %6654 = vmatprep.subr.bf16.mxu0 0
    %6655 = vmatpush1.bf16.msra.mxu0 %v6530
    %6656 = vmatprep.subr.bf16.mxu0 0
    %6657 = vmatpush1.bf16.msra.mxu0 %v6531
    %6658 = vmatprep.subr.bf16.mxu0 0
    %6659 = vmatpush1.bf16.msra.mxu0 %v6532
    %6660 = vmatprep.subr.bf16.mxu0 0
    %6661 = vmatpush1.bf16.msra.mxu0 %v6533
    %6662 = vmatprep.subr.bf16.mxu0 0
    %6663 = vmatpush1.bf16.msra.mxu0 %v6534
    %6664 = vmatprep.subr.bf16.mxu0 0
    %6665 = vmatpush1.bf16.msra.mxu0 %v6535
    %6666 = vmatprep.subr.bf16.mxu0 0
    %6667 = vmatpush1.bf16.msra.mxu0 %v6536
    %6668 = vmatprep.subr.bf16.mxu0 0
    %6669 = vmatpush1.bf16.msra.mxu0 %v6537
    %6670 = vmatprep.subr.bf16.mxu0 0
    %6671 = vmatpush1.bf16.msra.mxu0 %v6538
    %6672 = vmatprep.subr.bf16.mxu0 0
    %6673 = vmatpush1.bf16.msra.mxu0 %v6539
    %6674 = vmatprep.subr.bf16.mxu0 0
    %6675 = vmatpush1.bf16.msra.mxu0 %v6540
    %6676 = vmatprep.subr.bf16.mxu0 0
    %6677 = vmatpush1.bf16.msra.mxu0 %v6541
    %6678 = vmatprep.subr.bf16.mxu0 0
    %6679 = vmatpush1.bf16.msra.mxu0 %v6542
    %6680 = vmatprep.mubr.bf16.mxu0 %v6187
    %6681 = vmatmul.mubr.bf16.gmra.mrb[0].mxu0 %v6198
    %v6682 = vpop.f32.mrb[0].mxu0
    %v6683 = vadd.f32 %v6642, %v6682
    %v6684 = vpop.f32.mrb[0].mxu0
    %v6685 = vpop.f32.mrb[0].mxu0
    %v6686 = vadd.f32 %v6645, %v6685
    %v6687 = vpop.f32.mrb[0].mxu0
    %6688 = vdwg.mxu0
    %6689 = vmatprep.subr.bf16.mxu0 0
    %6690 = vmatpush1.bf16.msra.mxu0 %v6543
    %6691 = vmatprep.subr.bf16.mxu0 0
    %6692 = vmatpush1.bf16.msra.mxu0 %v6544
    %6693 = vmatprep.subr.bf16.mxu0 0
    %6694 = vmatpush1.bf16.msra.mxu0 %v6545
    %6695 = vmatprep.subr.bf16.mxu0 0
    %6696 = vmatpush1.bf16.msra.mxu0 %v6546
    %6697 = vmatprep.subr.bf16.mxu0 0
    %6698 = vmatpush1.bf16.msra.mxu0 %v6547
    %6699 = vmatprep.subr.bf16.mxu0 0
    %6700 = vmatpush1.bf16.msra.mxu0 %v6548
    %6701 = vmatprep.subr.bf16.mxu0 0
    %6702 = vmatpush1.bf16.msra.mxu0 %v6549
    %6703 = vmatprep.subr.bf16.mxu0 0
    %6704 = vmatpush1.bf16.msra.mxu0 %v6550
    %6705 = vmatprep.subr.bf16.mxu0 0
    %6706 = vmatpush1.bf16.msra.mxu0 %v6551
    %6707 = vmatprep.subr.bf16.mxu0 0
    %6708 = vmatpush1.bf16.msra.mxu0 %v6552
    %6709 = vmatprep.subr.bf16.mxu0 0
    %6710 = vmatpush1.bf16.msra.mxu0 %v6553
    %6711 = vmatprep.subr.bf16.mxu0 0
    %6712 = vmatpush1.bf16.msra.mxu0 %v6554
    %6713 = vmatprep.subr.bf16.mxu0 0
    %6714 = vmatpush1.bf16.msra.mxu0 %v6555
    %6715 = vmatprep.subr.bf16.mxu0 0
    %6716 = vmatpush1.bf16.msra.mxu0 %v6556
    %6717 = vmatprep.subr.bf16.mxu0 0
    %6718 = vmatpush1.bf16.msra.mxu0 %v6557
    %6719 = vmatprep.subr.bf16.mxu0 0
    %6720 = vmatpush1.bf16.msra.mxu0 %v6558
    %6721 = vmatprep.mubr.bf16.mxu0 %v6206
    %6722 = vmatmul.mubr.bf16.gmra.mrb[0].mxu0 %v6215
    %v6723 = vpop.f32.mrb[0].mxu0
    %v6724 = vadd.f32 %v6683, %v6723
    %v6725 = vpop.f32.mrb[0].mxu0
    %v6726 = vpop.f32.mrb[0].mxu0
    %v6727 = vadd.f32 %v6686, %v6726
    %v6728 = vpop.f32.mrb[0].mxu0
    %6729 = vdwg.mxu0
    %vm6730 = vcmp.ge.f32.partialorder %v6724, 0.0
    %vm6731 = vcmp.ge.f32.partialorder %v6727, 0.0
    %v6732 = vmul.f32 %v6724, 0.01
    %v6733 = vmul.f32 %v6727, 0.01
    %v6734 = vsel %vm6730, %v6724, %v6732
    %v6735 = vsel %vm6731, %v6727, %v6733
    %v6737 = vlaneseq
    %v6738 = vshrl.u32 %v6737, 7
    %v6739 = vsub.s32 0, %v6738
    %v6740 = vrot.slane %v995, %v6739
    %v6742 = vmul.f32 %v6734, %v6740
    %v6743 = vmul.f32 %v6735, %v6740
    %v6744 = vsel %vm6208, %v6742, 0.0
    %6745 = vadd.xlane.f32.xlu0 %v6744
    %v6746 = vpop.xlane.xlu0 %6745
    %v6747 = vsel %vm6208, %v6743, 0.0
    %6748 = vadd.xlane.f32.xlu0 %v6747
    %v6749 = vpop.xlane.xlu0 %6748
    %v6751 = vlaneseq
    %v6752 = vshrl.u32 %v6751, 7
    %v6753 = vsub.s32 0, %v6752
    %v6754 = vrot.slane %v996, %v6753
    %v6756 = vadd.f32 %v6746, %v6754
    %v6757 = vadd.f32 %v6749, %v6754
    %vm6758 = vcmp.ge.f32.partialorder %v6756, 0.0
    %vm6759 = vcmp.ge.f32.partialorder %v6757, 0.0
    %v6760 = vmul.f32 %v6756, 0.01
    %v6761 = vmul.f32 %v6757, 0.01
    %v6762 = vsel %vm6758, %v6756, %v6760
    %v6763 = vsel %vm6759, %v6757, %v6761
    %vm6764 = vcmask 7168
    %6765 = vst.msk [vmem:[%s8] sm:$0xff] %vm6764, %v6762
    %6766 = vst.msk [vmem:[%s8 + $0x8] sm:$0xff] %vm6764, %v6763
    // Predicated region
    $region30: #{discriminator_forward.2} parent=1 // pred_check
      _
    $region31: #{discriminator_forward.2} parent=1 // pred_check_branch
      %6768 = sbr.rel (0) target = $region33
    $region32: #{discriminator_forward.2} parent=1 // pred_region
      _
    $region33: #{discriminator_forward.2} parent=1 // pred_fallthru
      _
    // Predicated region
    $region34: #{discriminator_forward.2} parent=1 // pred_check
      _
    $region35: #{discriminator_forward.2} parent=1 // pred_check_branch
      %6770 = sbr.rel (0) target = $region37
    $region36: #{discriminator_forward.2} parent=1 // pred_region
      _
    $region37: #{discriminator_forward.2} parent=1 // pred_fallthru
      _

</llo_original>
